<compile_context>
chip_gen: v7x
topology: tpu7x:2x2x1
jax: 0.10.0
libtpu: 0.0.40
codegen_flags: <defaults>
</compile_context>

<pallas_src>
import functools

import jax
import jax.numpy as jnp
import numpy as np
from jax import lax
from jax.experimental import pallas as pl
from jax.experimental.pallas import tpu as pltpu

# Keep the wrapper-side folding einsums and the pure-JAX reference at full f32.
jax.config.update("jax_default_matmul_precision", "highest")
_HIGHEST = lax.Precision.HIGHEST


def _patch_embed_kernel(xim_ref, wf_ref, bf_ref, pool_ref, wpt_ref, bp_ref,
                        o_ref, *, mm_precision):
    # xim_ref:  (1, T1, K*H)   im2col'd input for one batch element
    # wf_ref:   (K*H, C)       conv1*conv2 weights folded with the BN scale
    # bf_ref:   (1, C)         conv biases + BatchNorm shift, folded
    # pool_ref: (2*T2, 2*T1)   block-diagonal overlapping avg-pool matrix
    # wpt_ref:  (C, E)         1x1 projection weight, pre-transposed
    # bp_ref:   (1, E)         projection bias
    # o_ref:    (1, T2, E)     output tile (lane axis = embedding channels)
    t2 = pool_ref.shape[0] // 2

    # Fused Conv2d(1,40,(1,25)) + Conv2d(40,40,(22,1)) + BN scale/shift:
    # a single deep [T1, K*H] x [K*H, C] MXU matmul (contraction depth 550).
    z = jnp.dot(xim_ref[0], wf_ref[...],
                preferred_element_type=jnp.float32,
                precision=mm_precision) + bf_ref[...]          # [T1, C]

    # ELU.  (exp(z)-1 instead of expm1: matches the f32 reference math; the
    # absolute error near z=0- is < f32 eps and well inside tolerance.)
    z = jnp.where(z > 0, z, jnp.exp(z) - 1.0)

    # VarPool2d((1,75),(1,15)): fuse E[z] and E[z^2] into ONE pooling matmul.
    # Stack z and z*z along sublanes (tile-aligned, cheap) and hit them with a
    # block-diagonal pooling matrix; keep this path at full f32 precision
    # because var = E[z^2] - E[z]^2 is cancellation-sensitive.
    zz = jnp.concatenate([z, z * z], axis=0)                   # [2*T1, C]
    pooled = jnp.dot(pool_ref[...], zz,
                     preferred_element_type=jnp.float32,
                     precision=_HIGHEST)                       # [2*T2, C]
    mu = pooled[:t2]
    musq = pooled[t2:]
    var = musq - mu * mu                                       # [T2, C]

    # Dropout(0.5) is identity at inference.
    # TODO(synk): training-mode Dropout(0.5) not implemented (inference kernel).

    # 1x1 Conv2d(C, E) + Rearrange 'b e h w -> b (h w) e':
    # already oriented [T2, E], so the store is lane-dense in E, no transpose.
    out = jnp.dot(var, wpt_ref[...], preferred_element_type=jnp.float32,
                  precision=mm_precision) + bp_ref[...]
    o_ref[0] = out.astype(o_ref.dtype)


def patch_embedding(x, params, *, eps=1e-5, mm_precision=lax.Precision.HIGH):
    """x: [B, 1, H, W] float32. Returns [B, T2, emb] (PatchEmbedding.forward)."""
    w1, b1, w2, b2, gamma, beta, rmean, rvar, wp, bp = params
    B, cin, H, W = x.shape
    assert cin == 1, "PatchEmbedding expects a single input channel"
    C, K = w1.shape[0], w1.shape[-1]          # 40, 25
    assert w2.shape == (C, C, H, 1)
    E = wp.shape[0]
    PW, PS = 75, 15                           # VarPool window / stride
    T1 = W - K + 1
    assert T1 >= PW, "input too short for VarPool2d((1,75),(1,15))"
    T2 = (T1 - PW) // PS + 1
    KH = K * H

    f32 = jnp.float32
    w1f = w1[:, 0, 0, :].astype(f32)          # [C, K]   (c, k)
    w2f = w2[:, :, :, 0].astype(f32)          # [O, C, H](o, c, h)
    scale = gamma.astype(f32) / jnp.sqrt(rvar.astype(f32) + eps)      # [C]
    # Fold conv1, conv2 and the BatchNorm affine (inference) wrapper-side into
    # one dense 2-D [K*H, C] weight (row index = k*H + h).
    wfold = jnp.einsum('och,ck,o->kho', w2f, w1f, scale)              # [K, H, C]
    wfold2 = wfold.reshape(KH, C)
    beff = b2.astype(f32) + jnp.einsum('och,c->o', w2f, b1.astype(f32))
    bfold = (scale * (beff - rmean.astype(f32)) + beta.astype(f32)).reshape(1, C)
    # TODO(synk): BatchNorm2d training-mode (batch statistics) not implemented.

    # im2col: xim[b, t, k*H + h] = x[b, 0, h, t + k].  Column order matches
    # the wfold2 row order above.
    x0 = x[:, 0].astype(f32)                                          # [B, H, W]
    cols = jnp.stack([lax.slice_in_dim(x0, k, k + T1, axis=2)
                      for k in range(K)], axis=1)                     # [B, K, H, T1]
    xim = jnp.transpose(cols, (0, 3, 1, 2)).reshape(B, T1, KH)        # [B, T1, K*H]

    # Block-diagonal overlapping-window average-pool matrix:
    #   rows [0, T2)   pool the z     part (rows [0, T1)   of zz)
    #   rows [T2, 2T2) pool the z*z   part (rows [T1, 2T1) of zz)
    pool = np.zeros((2 * T2, 2 * T1), np.float32)
    for widx in range(T2):
        pool[widx, widx * PS: widx * PS + PW] = 1.0 / PW
        pool[T2 + widx, T1 + widx * PS: T1 + widx * PS + PW] = 1.0 / PW
    pool = jnp.asarray(pool)

    wpt = wp[:, :, 0, 0].astype(f32).T        # [C, E]
    bp2 = bp.astype(f32).reshape(1, E)

    kernel = functools.partial(_patch_embed_kernel, mm_precision=mm_precision)

    cost = pl.CostEstimate(
        flops=2 * B * (T1 * KH * C + (2 * T2) * (2 * T1) * C + T2 * C * E),
        transcendentals=B * T1 * C,
        bytes_accessed=4 * (B * T1 * KH + KH * C + C
                            + (2 * T2) * (2 * T1) + C * E + E + B * T2 * E),
    )

    return pl.pallas_call(
        kernel,
        out_shape=jax.ShapeDtypeStruct((B, T2, E), jnp.float32),
        grid_spec=pltpu.PrefetchScalarGridSpec(
            num_scalar_prefetch=0,
            grid=(B,),
            in_specs=[
                pl.BlockSpec((1, T1, KH), lambda b: (b, 0, 0)),
                pl.BlockSpec((KH, C), lambda b: (0, 0)),
                pl.BlockSpec((1, C), lambda b: (0, 0)),
                pl.BlockSpec((2 * T2, 2 * T1), lambda b: (0, 0)),
                pl.BlockSpec((C, E), lambda b: (0, 0)),
                pl.BlockSpec((1, E), lambda b: (0, 0)),
            ],
            out_specs=pl.BlockSpec((1, T2, E), lambda b: (b, 0, 0)),
        ),
        compiler_params=pltpu.CompilerParams(
            dimension_semantics=("parallel",)),
        cost_estimate=cost,
    )(xim, wfold2, bfold, pool, wpt, bp2)


def _reference(x, params, *, eps=1e-5):
    """Pure-JAX replica of PatchEmbedding.forward (eval mode)."""
    w1, b1, w2, b2, gamma, beta, rmean, rvar, wp, bp = params
    B, _, H, W = x.shape
    C, K = w1.shape[0], w1.shape[-1]
    T1 = W - K + 1
    PW, PS = 75, 15
    T2 = (T1 - PW) // PS + 1

    # Conv2d(1, C, (1, K))
    patches = jnp.stack([x[:, 0, :, k:k + T1] for k in range(K)], axis=-1)
    y1 = jnp.einsum('bhtk,ck->bcht', patches, w1[:, 0, 0, :]) \
        + b1[None, :, None, None]
    # Conv2d(C, C, (H, 1)) -> collapses H
    y2 = jnp.einsum('bcht,och->bot', y1, w2[:, :, :, 0]) + b2[None, :, None]
    # BatchNorm2d (inference) + ELU
    z = gamma[None, :, None] * (y2 - rmean[None, :, None]) \
        / jnp.sqrt(rvar[None, :, None] + eps) + beta[None, :, None]
    z = jnp.where(z > 0, z, jnp.exp(z) - 1.0)
    # VarPool2d((1,75),(1,15)) = avgpool(z^2) - avgpool(z)^2
    wins = jnp.stack([z[:, :, s * PS:s * PS + PW] for s in range(T2)], axis=2)
    mu = wins.mean(axis=-1)
    var = (wins ** 2).mean(axis=-1) - mu ** 2                 # [B, C, T2]
    # Dropout(0.5): identity at inference.
    # projection: Conv2d(C, E, (1,1)) + Rearrange 'b e h w -> b (h w) e'
    out = jnp.einsum('eo,bot->bet', wp[:, :, 0, 0], var) + bp[None, :, None]
    return jnp.transpose(out, (0, 2, 1))                      # [B, T2, E]


if __name__ == "__main__":
    # Shapes implied by the module: 1 input channel, 22 electrodes (conv2 kernel
    # (22,1)), 40 channels, 25-tap temporal conv, VarPool (1,75)/(1,15).
    B, CIN, H, W = 2, 1, 22, 144
    C, E, K = 40, 40, 25
    T2 = ((W - K + 1) - 75) // 15 + 1         # 4 output tokens

    key = jax.random.PRNGKey(0)
    ks = jax.random.split(key, 11)
    x = jax.random.normal(ks[0], (B, CIN, H, W), dtype=jnp.float32)
    # Deterministic synthetic parameters for every layer.
    w1 = jax.random.normal(ks[1], (C, CIN, 1, K), dtype=jnp.float32) * 0.1
    b1 = jax.random.normal(ks[2], (C,), dtype=jnp.float32) * 0.1
    w2 = jax.random.normal(ks[3], (C, C, H, 1), dtype=jnp.float32) * 0.05
    b2 = jax.random.normal(ks[4], (C,), dtype=jnp.float32) * 0.1
    gamma = 1.0 + 0.1 * jax.random.normal(ks[5], (C,), dtype=jnp.float32)
    beta = 0.1 * jax.random.normal(ks[6], (C,), dtype=jnp.float32)
    rmean = 0.1 * jax.random.normal(ks[7], (C,), dtype=jnp.float32)
    rvar = jax.random.uniform(ks[8], (C,), dtype=jnp.float32,
                              minval=0.5, maxval=1.5)
    wp = jax.random.normal(ks[9], (E, C, 1, 1), dtype=jnp.float32) * 0.1
    bp = jax.random.normal(ks[10], (E,), dtype=jnp.float32) * 0.1
    params = (w1, b1, w2, b2, gamma, beta, rmean, rvar, wp, bp)

    ref = _reference(x, params)

    # Prefer the 3-pass bf16x3 MXU path (Precision.HIGH) for the conv and
    # projection matmuls; if this Mosaic build rejects HIGH (or maps it to
    # something too loose for a 550-deep contraction), fall back to the
    # always-supported 6-pass f32 HIGHEST path.  Correctness is identical;
    # only the MXU pass count differs.
    out = None
    try:
        cand = jax.block_until_ready(
            patch_embedding(x, params, mm_precision=lax.Precision.HIGH))
        if np.allclose(np.asarray(cand), np.asarray(ref),
                       rtol=5e-4, atol=5e-4):
            out = cand
    except Exception:
        out = None
    if out is None:
        out = jax.block_until_ready(
            patch_embedding(x, params, mm_precision=lax.Precision.HIGHEST))

    assert out.shape == (B, T2, E)
    np.testing.assert_allclose(np.asarray(out), np.asarray(ref),
                               rtol=5e-4, atol=5e-4)
    print("KERNEL_OK")
</pallas_src>

<mosaic_0001>
module attributes {stable_mosaic.version = 11 : i64} {
  func.func @_patch_embed_kernel(%arg0: i32, %arg1: memref<1x120x550xf32, #tpu.memory_space<vmem>>, %arg2: memref<550x40xf32, #tpu.memory_space<vmem>>, %arg3: memref<1x40xf32, #tpu.memory_space<vmem>>, %arg4: memref<8x240xf32, #tpu.memory_space<vmem>>, %arg5: memref<40x40xf32, #tpu.memory_space<vmem>>, %arg6: memref<1x40xf32, #tpu.memory_space<vmem>>, %arg7: memref<1x4x40xf32, #tpu.memory_space<vmem>>) attributes {dimension_semantics = [#tpu.dimension_semantics<parallel>], iteration_bounds = array<i64: 2>, scalar_prefetch = 0 : i64, scratch_operands = 0 : i64, tpu.core_type = #tpu.core_type<tc>, window_params = [{transform_indices = @transform_0, window_bounds = array<i64: 1, 120, 550>}, {pipeline_mode = #tpu.pipeline_mode<synchronous>, transform_indices = @transform_1, window_bounds = array<i64: 550, 40>}, {pipeline_mode = #tpu.pipeline_mode<synchronous>, transform_indices = @transform_2, window_bounds = array<i64: 1, 40>}, {pipeline_mode = #tpu.pipeline_mode<synchronous>, transform_indices = @transform_3, window_bounds = array<i64: 8, 240>}, {pipeline_mode = #tpu.pipeline_mode<synchronous>, transform_indices = @transform_4, window_bounds = array<i64: 40, 40>}, {pipeline_mode = #tpu.pipeline_mode<synchronous>, transform_indices = @transform_5, window_bounds = array<i64: 1, 40>}, {transform_indices = @transform_6, window_bounds = array<i64: 1, 4, 40>}]} {
    %c0 = arith.constant 0 : index
    %c0_0 = arith.constant 0 : index
    %c0_1 = arith.constant 0 : index
    %0 = vector.load %arg1[%c0, %c0_0, %c0_1] : memref<1x120x550xf32, #tpu.memory_space<vmem>>, vector<1x120x550xf32>
    %1 = vector.shape_cast %0 : vector<1x120x550xf32> to vector<120x550xf32>
    %c0_2 = arith.constant 0 : index
    %c0_3 = arith.constant 0 : index
    %2 = vector.load %arg2[%c0_2, %c0_3] : memref<550x40xf32, #tpu.memory_space<vmem>>, vector<550x40xf32>
    %cst = arith.constant dense<0.000000e+00> : vector<120x40xf32>
    %3 = tpu.matmul %1, %2, %cst {dimension_numbers = #tpu.dot_dimension_numbers<[1], [0], [0], [1], [0, 0, 1, 1], [], []>, precision = #tpu.contract_precision<fp32>} : vector<120x550xf32>, vector<550x40xf32>, vector<120x40xf32> -> vector<120x40xf32>
    %c0_4 = arith.constant 0 : index
    %c0_5 = arith.constant 0 : index
    %4 = vector.load %arg3[%c0_4, %c0_5] : memref<1x40xf32, #tpu.memory_space<vmem>>, vector<1x40xf32>
    %5 = vector.broadcast %4 : vector<1x40xf32> to vector<120x40xf32>
    %6 = arith.addf %3, %5 : vector<120x40xf32>
    %cst_6 = arith.constant 0.000000e+00 : f32
    %7 = vector.broadcast %cst_6 : f32 to vector<120x40xf32>
    %8 = arith.cmpf ogt, %6, %7 : vector<120x40xf32>
    %9 = math.exp %6 : vector<120x40xf32>
    %cst_7 = arith.constant 1.000000e+00 : f32
    %10 = vector.broadcast %cst_7 : f32 to vector<120x40xf32>
    %11 = arith.subf %9, %10 : vector<120x40xf32>
    %12 = arith.select %8, %6, %11 : vector<120x40xi1>, vector<120x40xf32>
    %13 = arith.mulf %12, %12 : vector<120x40xf32>
    %14 = tpu.concatenate %12, %13 in 0 : vector<120x40xf32>, vector<120x40xf32> -> vector<240x40xf32>
    %c0_8 = arith.constant 0 : index
    %c0_9 = arith.constant 0 : index
    %15 = vector.load %arg4[%c0_8, %c0_9] : memref<8x240xf32, #tpu.memory_space<vmem>>, vector<8x240xf32>
    %cst_10 = arith.constant dense<0.000000e+00> : vector<8x40xf32>
    %16 = tpu.matmul %15, %14, %cst_10 {dimension_numbers = #tpu.dot_dimension_numbers<[1], [0], [0], [1], [0, 0, 1, 1], [], []>, precision = #tpu.contract_precision<fp32>} : vector<8x240xf32>, vector<240x40xf32>, vector<8x40xf32> -> vector<8x40xf32>
    %17 = vector.extract_strided_slice %16 {offsets = [0, 0], sizes = [4, 40], strides = [1, 1]} : vector<8x40xf32> to vector<4x40xf32>
    %18 = vector.extract_strided_slice %16 {offsets = [4, 0], sizes = [4, 40], strides = [1, 1]} : vector<8x40xf32> to vector<4x40xf32>
    %19 = arith.mulf %17, %17 : vector<4x40xf32>
    %20 = arith.subf %18, %19 : vector<4x40xf32>
    %c0_11 = arith.constant 0 : index
    %c0_12 = arith.constant 0 : index
    %21 = vector.load %arg5[%c0_11, %c0_12] : memref<40x40xf32, #tpu.memory_space<vmem>>, vector<40x40xf32>
    %cst_13 = arith.constant dense<0.000000e+00> : vector<4x40xf32>
    %22 = tpu.matmul %20, %21, %cst_13 {dimension_numbers = #tpu.dot_dimension_numbers<[1], [0], [0], [1], [0, 0, 1, 1], [], []>, precision = #tpu.contract_precision<fp32>} : vector<4x40xf32>, vector<40x40xf32>, vector<4x40xf32> -> vector<4x40xf32>
    %c0_14 = arith.constant 0 : index
    %c0_15 = arith.constant 0 : index
    %23 = vector.load %arg6[%c0_14, %c0_15] : memref<1x40xf32, #tpu.memory_space<vmem>>, vector<1x40xf32>
    %24 = vector.broadcast %23 : vector<1x40xf32> to vector<4x40xf32>
    %25 = arith.addf %22, %24 : vector<4x40xf32>
    %c0_16 = arith.constant 0 : index
    %c0_17 = arith.constant 0 : index
    %c0_18 = arith.constant 0 : index
    %26 = vector.load %arg7[%c0_16, %c0_17, %c0_18] : memref<1x4x40xf32, #tpu.memory_space<vmem>>, vector<1x4x40xf32>
    %27 = vector.shape_cast %26 : vector<1x4x40xf32> to vector<4x40xf32>
    %28 = vector.shape_cast %25 : vector<4x40xf32> to vector<1x4x40xf32>
    tpu.vector_store %arg7[%c0_16, %c0_17, %c0_18], %28 {strides = array<i32>} : memref<1x4x40xf32, #tpu.memory_space<vmem>>, vector<1x4x40xf32>,
    return
  }
  func.func @transform_0(%arg0: i32) -> (i32, i32, i32) {
    %c0_i32 = arith.constant 0 : i32
    %c0_i32_0 = arith.constant 0 : i32
    %c0_i32_1 = arith.constant 0 : i32
    return %arg0, %c0_i32, %c0_i32_0 : i32, i32, i32
  }
  func.func @transform_1(%arg0: i32) -> (i32, i32) {
    %c0_i32 = arith.constant 0 : i32
    %c0_i32_0 = arith.constant 0 : i32
    %c0_i32_1 = arith.constant 0 : i32
    return %c0_i32, %c0_i32_0 : i32, i32
  }
  func.func @transform_2(%arg0: i32) -> (i32, i32) {
    %c0_i32 = arith.constant 0 : i32
    %c0_i32_0 = arith.constant 0 : i32
    %c0_i32_1 = arith.constant 0 : i32
    return %c0_i32, %c0_i32_0 : i32, i32
  }
  func.func @transform_3(%arg0: i32) -> (i32, i32) {
    %c0_i32 = arith.constant 0 : i32
    %c0_i32_0 = arith.constant 0 : i32
    %c0_i32_1 = arith.constant 0 : i32
    return %c0_i32, %c0_i32_0 : i32, i32
  }
  func.func @transform_4(%arg0: i32) -> (i32, i32) {
    %c0_i32 = arith.constant 0 : i32
    %c0_i32_0 = arith.constant 0 : i32
    %c0_i32_1 = arith.constant 0 : i32
    return %c0_i32, %c0_i32_0 : i32, i32
  }
  func.func @transform_5(%arg0: i32) -> (i32, i32) {
    %c0_i32 = arith.constant 0 : i32
    %c0_i32_0 = arith.constant 0 : i32
    %c0_i32_1 = arith.constant 0 : i32
    return %c0_i32, %c0_i32_0 : i32, i32
  }
  func.func @transform_6(%arg0: i32) -> (i32, i32, i32) {
    %c0_i32 = arith.constant 0 : i32
    %c0_i32_0 = arith.constant 0 : i32
    %c0_i32_1 = arith.constant 0 : i32
    return %arg0, %c0_i32, %c0_i32_0 : i32, i32, i32
  }
}

</mosaic_0001>

<llo_original>
// kernel: tpu_custom_call.1
$region0: #{tpu_custom_call.1}
  #allocation0 [shape = 'u32[]', space=smem, size = 0x4, offset = 0x4, fixed_abs, tag = 'smem constant byte address 0x4 - core index']
  #allocation1 [shape = 'u32[144,128]{1,0:T(1,128)}', space=vmem, size = 0x12000, scoped, tag = 'internal scratch']
  %s0 = inlined_call_operand.vmem [shape: f32[2,120,550], index: 0, kind: input, shape index: {}]
  %s1 = inlined_call_operand.vmem [shape: f32[550,40], index: 1, kind: input, shape index: {}]
  %s2 = inlined_call_operand.vmem [shape: f32[1,40], index: 2, kind: input, shape index: {}]
  %s3 = inlined_call_operand.vmem [shape: f32[8,240], index: 3, kind: input, shape index: {}]
  %s4 = inlined_call_operand.vmem [shape: f32[40,40], index: 4, kind: input, shape index: {}]
  %s5 = inlined_call_operand.vmem [shape: f32[1,40], index: 5, kind: input, shape index: {}]
  %s6 = inlined_call_operand.hbm [shape: f32[2,4,40], index: 6, kind: output, shape index: {}]
  %s7 = sld [smem:[#allocation0]]
  $region57: #{tpu_custom_call.1} parent=0
    _
  %s9 = ssub.s32 1, %s7
  %s10 = scalar_select 0, %s9, %s7
  $region1: #{tpu_custom_call.1} parent=0
    #allocation2 [shape = 'u8[4096]{0}', space=vmem, size = 0x1000, scoped, tag = 'output window, operand 0']
    #allocation3 [shape = 's32[2]{0}', space=sflag, size = 0x8, scoped, tag = 'scoped memory for tpu_custom_call.1']
    %11 = vsyncpa [#allocation3], 0
    %s12 = scalar_lea.sflag [#allocation3], 1
    %13 = vsyncpa %s12, 0
    loop: start=0, step=1, limit=4
    $region2: #{tpu_custom_call.1} parent=1 // loop_pre_header
      _
    $region3: #{tpu_custom_call.1} parent=1 // loop_header
      %s15 = sphi 0, %s19
      %p16 = scmp.ge.s32.totalorder %s15, 4
      %s25 = sphi 0, %s27
      %s28 = sphi 0, %s25
      %s29 = sphi 0, %s28
      %s45 = sphi 0, %s29
      %s49 = sphi 0, %s49
      %s51 = sphi 0, %s49
      %s52 = sphi 0, %s51
      %s66 = sphi 0, %s52
      %s70 = sphi 0, %s70
      %s72 = sphi 0, %s70
      %s73 = sphi 0, %s72
      %s87 = sphi 0, %s73
      %s91 = sphi 0, %s91
      %s93 = sphi 0, %s91
      %s94 = sphi 0, %s93
      %s108 = sphi 0, %s94
      %s112 = sphi 0, %s112
      %s114 = sphi 0, %s112
      %s115 = sphi 0, %s114
      %s129 = sphi 0, %s115
      %s133 = sphi 0, %s133
      %s135 = sphi 0, %s133
      %s136 = sphi 0, %s135
      %s150 = sphi 0, %s136
      %s156 = sphi 0, %s158
      %s159 = sphi 0, %s156
      %s160 = sphi 0, %s159
      %s176 = sphi 0, %s160
    $region4: #{tpu_custom_call.1} parent=1 // loop_header_branch
      %18 = sbr.rel (%p16) target = $region8
    $region5: #{tpu_custom_call.1} parent=1 // loop_body
      %s20 = ssub.s32 %s15, 1
      %s21 = ssub.s32 %s15, 2
      %s22 = sadd.s32 %s15, 1
      %s23 = ssub.s32 %s15, %s22
      %p24 = scmp.eq.s32.totalorder %s23, 0
      %s26 = sadd.s32 %s25, 1
      %s27 = scalar_select %p24, %s25, %s26
      %p30 = pneg %p24
      %p31 = scmp.eq.s32.totalorder %s15, 1
      %p32 = por %p30, %p31
      %p33 = scmp.ne.s32.totalorder %s25, %s28
      %p34 = scmp.eq.s32.totalorder %s15, 0
      %p35 = por %p33, %p34
      %p36 = scmp.ne.s32.totalorder %s25, %s28
      %p37 = scmp.eq.s32.totalorder %s20, 1
      %p38 = por %p36, %p37
      %p39 = scmp.ne.s32.totalorder %s28, %s29
      %p40 = scmp.eq.s32.totalorder %s20, 0
      %p41 = por %p39, %p40
      %p42 = scmp.ne.s32.totalorder %s28, %s29
      %p43 = scmp.eq.s32.totalorder %s21, 1
      %p44 = por %p42, %p43
      %p46 = scmp.ne.s32.totalorder %s29, %s45
      %p47 = scmp.eq.s32.totalorder %s21, 0
      %p48 = por %p46, %p47
      %s50 = sadd.s32 %s49, 1
      %p53 = scmp.eq.s32.totalorder %s15, 1
      %p54 = scmp.ne.s32.totalorder %s49, %s51
      %p55 = scmp.eq.s32.totalorder %s15, 0
      %p56 = por %p54, %p55
      %p57 = scmp.ne.s32.totalorder %s49, %s51
      %p58 = scmp.eq.s32.totalorder %s20, 1
      %p59 = por %p57, %p58
      %p60 = scmp.ne.s32.totalorder %s51, %s52
      %p61 = scmp.eq.s32.totalorder %s20, 0
      %p62 = por %p60, %p61
      %p63 = scmp.ne.s32.totalorder %s51, %s52
      %p64 = scmp.eq.s32.totalorder %s21, 1
      %p65 = por %p63, %p64
      %p67 = scmp.ne.s32.totalorder %s52, %s66
      %p68 = scmp.eq.s32.totalorder %s21, 0
      %p69 = por %p67, %p68
      %s71 = sadd.s32 %s70, 1
      %p74 = scmp.eq.s32.totalorder %s15, 1
      %p75 = scmp.ne.s32.totalorder %s70, %s72
      %p76 = scmp.eq.s32.totalorder %s15, 0
      %p77 = por %p75, %p76
      %p78 = scmp.ne.s32.totalorder %s70, %s72
      %p79 = scmp.eq.s32.totalorder %s20, 1
      %p80 = por %p78, %p79
      %p81 = scmp.ne.s32.totalorder %s72, %s73
      %p82 = scmp.eq.s32.totalorder %s20, 0
      %p83 = por %p81, %p82
      %p84 = scmp.ne.s32.totalorder %s72, %s73
      %p85 = scmp.eq.s32.totalorder %s21, 1
      %p86 = por %p84, %p85
      %p88 = scmp.ne.s32.totalorder %s73, %s87
      %p89 = scmp.eq.s32.totalorder %s21, 0
      %p90 = por %p88, %p89
      %s92 = sadd.s32 %s91, 1
      %p95 = scmp.eq.s32.totalorder %s15, 1
      %p96 = scmp.ne.s32.totalorder %s91, %s93
      %p97 = scmp.eq.s32.totalorder %s15, 0
      %p98 = por %p96, %p97
      %p99 = scmp.ne.s32.totalorder %s91, %s93
      %p100 = scmp.eq.s32.totalorder %s20, 1
      %p101 = por %p99, %p100
      %p102 = scmp.ne.s32.totalorder %s93, %s94
      %p103 = scmp.eq.s32.totalorder %s20, 0
      %p104 = por %p102, %p103
      %p105 = scmp.ne.s32.totalorder %s93, %s94
      %p106 = scmp.eq.s32.totalorder %s21, 1
      %p107 = por %p105, %p106
      %p109 = scmp.ne.s32.totalorder %s94, %s108
      %p110 = scmp.eq.s32.totalorder %s21, 0
      %p111 = por %p109, %p110
      %s113 = sadd.s32 %s112, 1
      %p116 = scmp.eq.s32.totalorder %s15, 1
      %p117 = scmp.ne.s32.totalorder %s112, %s114
      %p118 = scmp.eq.s32.totalorder %s15, 0
      %p119 = por %p117, %p118
      %p120 = scmp.ne.s32.totalorder %s112, %s114
      %p121 = scmp.eq.s32.totalorder %s20, 1
      %p122 = por %p120, %p121
      %p123 = scmp.ne.s32.totalorder %s114, %s115
      %p124 = scmp.eq.s32.totalorder %s20, 0
      %p125 = por %p123, %p124
      %p126 = scmp.ne.s32.totalorder %s114, %s115
      %p127 = scmp.eq.s32.totalorder %s21, 1
      %p128 = por %p126, %p127
      %p130 = scmp.ne.s32.totalorder %s115, %s129
      %p131 = scmp.eq.s32.totalorder %s21, 0
      %p132 = por %p130, %p131
      %s134 = sadd.s32 %s133, 1
      %p137 = scmp.eq.s32.totalorder %s15, 1
      %p138 = scmp.ne.s32.totalorder %s133, %s135
      %p139 = scmp.eq.s32.totalorder %s15, 0
      %p140 = por %p138, %p139
      %p141 = scmp.ne.s32.totalorder %s133, %s135
      %p142 = scmp.eq.s32.totalorder %s20, 1
      %p143 = por %p141, %p142
      %p144 = scmp.ne.s32.totalorder %s135, %s136
      %p145 = scmp.eq.s32.totalorder %s20, 0
      %p146 = por %p144, %p145
      %p147 = scmp.ne.s32.totalorder %s135, %s136
      %p148 = scmp.eq.s32.totalorder %s21, 1
      %p149 = por %p147, %p148
      %p151 = scmp.ne.s32.totalorder %s136, %s150
      %p152 = scmp.eq.s32.totalorder %s21, 0
      %p153 = por %p151, %p152
      %s154 = ssub.s32 %s15, %s22
      %p155 = scmp.eq.s32.totalorder %s154, 0
      %s157 = sadd.s32 %s156, 1
      %s158 = scalar_select %p155, %s156, %s157
      %p161 = pneg %p155
      %p162 = scmp.eq.s32.totalorder %s15, 1
      %p163 = por %p161, %p162
      %p164 = scmp.ne.s32.totalorder %s156, %s159
      %p165 = scmp.eq.s32.totalorder %s15, 0
      %p166 = por %p164, %p165
      %p167 = scmp.ne.s32.totalorder %s156, %s159
      %p168 = scmp.eq.s32.totalorder %s20, 1
      %p169 = por %p167, %p168
      %p170 = scmp.ne.s32.totalorder %s159, %s160
      %p171 = scmp.eq.s32.totalorder %s20, 0
      %p172 = por %p170, %p171
      %p173 = scmp.ne.s32.totalorder %s159, %s160
      %p174 = scmp.eq.s32.totalorder %s21, 1
      %p175 = por %p173, %p174
      %p177 = scmp.ne.s32.totalorder %s160, %s176
      %p178 = scmp.eq.s32.totalorder %s21, 0
      %p179 = por %p177, %p178
      %p180 = scmp.le.s32.totalorder 1, %s15
      %p181 = scmp.lt.s32.totalorder %s15, 3
      %p182 = pnand %p180, %p181
      %p183 = pneg %p182
      // Predicated region
      $region9: #{tpu_custom_call.1} parent=5 // pred_check
        _
      $region10: #{tpu_custom_call.1} parent=5 // pred_check_branch
        %185 = sbr.rel (%p182) target = $region12
      $region11: #{tpu_custom_call.1} parent=5 // pred_region
        %s186 = ssub.s32 %s15, 1
        // Predicated region
        $region13: #{tpu_custom_call.1} parent=11 // pred_check
          %p187 = pneg %p62
        $region14: #{tpu_custom_call.1} parent=11 // pred_check_branch
          %189 = sbr.rel (%p187) target = $region16
        $region15: #{tpu_custom_call.1} parent=11 // pred_region
          _
        $region16: #{tpu_custom_call.1} parent=11 // pred_fallthru
          _
        // Predicated region
        $region17: #{tpu_custom_call.1} parent=11 // pred_check
          %p190 = pneg %p83
        $region18: #{tpu_custom_call.1} parent=11 // pred_check_branch
          %192 = sbr.rel (%p190) target = $region20
        $region19: #{tpu_custom_call.1} parent=11 // pred_region
          _
        $region20: #{tpu_custom_call.1} parent=11 // pred_fallthru
          _
        // Predicated region
        $region21: #{tpu_custom_call.1} parent=11 // pred_check
          %p193 = pneg %p104
        $region22: #{tpu_custom_call.1} parent=11 // pred_check_branch
          %195 = sbr.rel (%p193) target = $region24
        $region23: #{tpu_custom_call.1} parent=11 // pred_region
          _
        $region24: #{tpu_custom_call.1} parent=11 // pred_fallthru
          _
        // Predicated region
        $region25: #{tpu_custom_call.1} parent=11 // pred_check
          %p196 = pneg %p125
        $region26: #{tpu_custom_call.1} parent=11 // pred_check_branch
          %198 = sbr.rel (%p196) target = $region28
        $region27: #{tpu_custom_call.1} parent=11 // pred_region
          _
        $region28: #{tpu_custom_call.1} parent=11 // pred_fallthru
          _
        // Predicated region
        $region29: #{tpu_custom_call.1} parent=11 // pred_check
          %p199 = pneg %p146
        $region30: #{tpu_custom_call.1} parent=11 // pred_check_branch
          %201 = sbr.rel (%p199) target = $region32
        $region31: #{tpu_custom_call.1} parent=11 // pred_region
          _
        $region32: #{tpu_custom_call.1} parent=11 // pred_fallthru
          _
      $region12: #{tpu_custom_call.1} parent=5 // pred_fallthru
        _
      %p202 = scmp.lt.s32.totalorder %s15, 2
      // Predicated region
      $region33: #{tpu_custom_call.1} parent=5 // pred_check
        %p203 = pneg %p202
      $region34: #{tpu_custom_call.1} parent=5 // pred_check_branch
        %205 = sbr.rel (%p203) target = $region36
      $region35: #{tpu_custom_call.1} parent=5 // pred_region
        // Predicated region
        $region37: #{tpu_custom_call.1} parent=35 // pred_check
          %p206 = pneg %p35
        $region38: #{tpu_custom_call.1} parent=35 // pred_check_branch
          %208 = sbr.rel (%p206) target = $region40
        $region39: #{tpu_custom_call.1} parent=35 // pred_region
          %p209 = scmp.lt.s32.totalorder %s15, 1
          %s210 = scalar_select %p209, %s15, 1
          %s211 = smul.addr %s210, 75
          %s212 = smul.addr %s211, 8
          %s213 = scalar_lea.vmem %s0, %s212
        $region40: #{tpu_custom_call.1} parent=35 // pred_fallthru
          _
      $region36: #{tpu_custom_call.1} parent=5 // pred_fallthru
        _
      %p214 = scmp.le.s32.totalorder 1, %s15
      %p215 = scmp.lt.s32.totalorder %s15, 3
      %p216 = pnand %p214, %p215
      %p217 = pneg %p216
      // Predicated region
      $region41: #{tpu_custom_call.1} parent=5 // pred_check
        _
      $region42: #{tpu_custom_call.1} parent=5 // pred_check_branch
        %219 = sbr.rel (%p216) target = $region44
      $region43: #{tpu_custom_call.1} parent=5 // pred_region
        %s220 = ssub.s32 %s15, 1
        %p221 = scmp.lt.s32.totalorder %s20, 1
        %s222 = scalar_select %p221, %s20, 1
        %s223 = smul.addr %s222, 75
        %s224 = smul.addr %s223, 8
        %s225 = scalar_lea.vmem %s0, %s224
        %p226 = pneg %p41
        %p227 = pneg %p38
        %p228 = pneg %p62
        %p229 = pneg %p59
        %p230 = pneg %p83
        %p231 = pneg %p80
        %p232 = pneg %p104
        %p233 = pneg %p101
        %p234 = pneg %p125
        %p235 = pneg %p122
        %p236 = pneg %p146
        %p237 = pneg %p143
        %p238 = pneg %p172
        %p239 = pneg %p169
        %s240 = sand.u32 %s159, 1
        %s241 = scalar_lea.sflag [#allocation3], %s240
        %s242 = sand.u32 %s159, 1
        %s243 = smul.addr %s242, 4
        %s244 = scalar_lea.vmem [#allocation2], %s243
        %p245 = scmp.lt.s32.totalorder %s20, 1
        %s246 = scalar_select %p245, %s20, 1
        %s247 = smul.addr %s246, 75
        %s248 = smul.addr %s247, 8
        %s249 = scalar_lea.vmem %s0, %s248
        %v250 = vld [vmem:[%s249] sm:$0xff]
        %v251 = vld [vmem:[%s249 + $0x8] sm:$0xff]
        %v252 = vld [vmem:[%s249 + $0x10] sm:$0xff]
        %v253 = vld [vmem:[%s249 + $0x18] sm:$0xff]
        %v254 = vld [vmem:[%s249 + $0x20] sm:$0xff]
        %v255 = vld [vmem:[%s249 + $0x28] sm:$0xff]
        %v256 = vld [vmem:[%s249 + $0x30] sm:$0xff]
        %v257 = vld [vmem:[%s249 + $0x38] sm:$0xff]
        %v258 = vld [vmem:[%s249 + $0x40] sm:$0xff]
        %v259 = vld [vmem:[%s249 + $0x48] sm:$0xff]
        %v260 = vld [vmem:[%s249 + $0x50] sm:$0xff]
        %v261 = vld [vmem:[%s249 + $0x58] sm:$0xff]
        %v262 = vld [vmem:[%s249 + $0x60] sm:$0xff]
        %v263 = vld [vmem:[%s249 + $0x68] sm:$0xff]
        %v264 = vld [vmem:[%s249 + $0x70] sm:$0xff]
        %v265 = vld [vmem:[%s249 + $0x78] sm:$0xff]
        %v266 = vld [vmem:[%s249 + $0x80] sm:$0xff]
        %v267 = vld [vmem:[%s249 + $0x88] sm:$0xff]
        %v268 = vld [vmem:[%s249 + $0x90] sm:$0xff]
        %v269 = vld [vmem:[%s249 + $0x98] sm:$0xff]
        %v270 = vld [vmem:[%s249 + $0xa0] sm:$0xff]
        %v271 = vld [vmem:[%s249 + $0xa8] sm:$0xff]
        %v272 = vld [vmem:[%s249 + $0xb0] sm:$0xff]
        %v273 = vld [vmem:[%s249 + $0xb8] sm:$0xff]
        %v274 = vld [vmem:[%s249 + $0xc0] sm:$0xff]
        %v275 = vld [vmem:[%s249 + $0xc8] sm:$0xff]
        %v276 = vld [vmem:[%s249 + $0xd0] sm:$0xff]
        %v277 = vld [vmem:[%s249 + $0xd8] sm:$0xff]
        %v278 = vld [vmem:[%s249 + $0xe0] sm:$0xff]
        %v279 = vld [vmem:[%s249 + $0xe8] sm:$0xff]
        %v280 = vld [vmem:[%s249 + $0xf0] sm:$0xff]
        %v281 = vld [vmem:[%s249 + $0xf8] sm:$0xff]
        %v282 = vld [vmem:[%s249 + $0x100] sm:$0xff]
        %v283 = vld [vmem:[%s249 + $0x108] sm:$0xff]
        %v284 = vld [vmem:[%s249 + $0x110] sm:$0xff]
        %v285 = vld [vmem:[%s249 + $0x118] sm:$0xff]
        %v286 = vld [vmem:[%s249 + $0x120] sm:$0xff]
        %v287 = vld [vmem:[%s249 + $0x128] sm:$0xff]
        %v288 = vld [vmem:[%s249 + $0x130] sm:$0xff]
        %v289 = vld [vmem:[%s249 + $0x138] sm:$0xff]
        %v290 = vld [vmem:[%s249 + $0x140] sm:$0xff]
        %v291 = vld [vmem:[%s249 + $0x148] sm:$0xff]
        %v292 = vld [vmem:[%s249 + $0x150] sm:$0xff]
        %v293 = vld [vmem:[%s249 + $0x158] sm:$0xff]
        %v294 = vld [vmem:[%s249 + $0x160] sm:$0xff]
        %v295 = vld [vmem:[%s249 + $0x168] sm:$0xff]
        %v296 = vld [vmem:[%s249 + $0x170] sm:$0xff]
        %v297 = vld [vmem:[%s249 + $0x178] sm:$0xff]
        %v298 = vld [vmem:[%s249 + $0x180] sm:$0xff]
        %v299 = vld [vmem:[%s249 + $0x188] sm:$0xff]
        %v300 = vld [vmem:[%s249 + $0x190] sm:$0xff]
        %v301 = vld [vmem:[%s249 + $0x198] sm:$0xff]
        %v302 = vld [vmem:[%s249 + $0x1a0] sm:$0xff]
        %v303 = vld [vmem:[%s249 + $0x1a8] sm:$0xff]
        %v304 = vld [vmem:[%s249 + $0x1b0] sm:$0xff]
        %v305 = vld [vmem:[%s249 + $0x1b8] sm:$0xff]
        %v306 = vld [vmem:[%s249 + $0x1c0] sm:$0xff]
        %v307 = vld [vmem:[%s249 + $0x1c8] sm:$0xff]
        %v308 = vld [vmem:[%s249 + $0x1d0] sm:$0xff]
        %v309 = vld [vmem:[%s249 + $0x1d8] sm:$0xff]
        %v310 = vld [vmem:[%s249 + $0x1e0] sm:$0xff]
        %v311 = vld [vmem:[%s249 + $0x1e8] sm:$0xff]
        %v312 = vld [vmem:[%s249 + $0x1f0] sm:$0xff]
        %v313 = vld [vmem:[%s249 + $0x1f8] sm:$0xff]
        %v314 = vld [vmem:[%s249 + $0x200] sm:$0xff]
        %v315 = vld [vmem:[%s249 + $0x208] sm:$0xff]
        %v316 = vld [vmem:[%s249 + $0x210] sm:$0xff]
        %v317 = vld [vmem:[%s249 + $0x218] sm:$0xff]
        %v318 = vld [vmem:[%s249 + $0x220] sm:$0xff]
        %v319 = vld [vmem:[%s249 + $0x228] sm:$0xff]
        %v320 = vld [vmem:[%s249 + $0x230] sm:$0xff]
        %v321 = vld [vmem:[%s249 + $0x238] sm:$0xff]
        %v322 = vld [vmem:[%s249 + $0x240] sm:$0xff]
        %v323 = vld [vmem:[%s249 + $0x248] sm:$0xff]
        %v324 = vld [vmem:[%s249 + $0x250] sm:$0xff]
        %v325 = vld [vmem:[%s1] sm:$0xff]
        %v326 = vld [vmem:[%s1 + $0x8] sm:$0xff]
        %v327 = vld [vmem:[%s1 + $0x10] sm:$0xff]
        %v328 = vld [vmem:[%s1 + $0x18] sm:$0xff]
        %v329 = vld [vmem:[%s1 + $0x20] sm:$0xff]
        %v330 = vld [vmem:[%s1 + $0x28] sm:$0xff]
        %v331 = vld [vmem:[%s1 + $0x30] sm:$0xff]
        %v332 = vld [vmem:[%s1 + $0x38] sm:$0xff]
        %v333 = vld [vmem:[%s1 + $0x40] sm:$0xff]
        %v334 = vld [vmem:[%s1 + $0x48] sm:$0xff]
        %v335 = vld [vmem:[%s1 + $0x50] sm:$0xff]
        %v336 = vld [vmem:[%s1 + $0x58] sm:$0xff]
        %v337 = vld [vmem:[%s1 + $0x60] sm:$0xff]
        %v338 = vld [vmem:[%s1 + $0x68] sm:$0xff]
        %v339 = vld [vmem:[%s1 + $0x70] sm:$0xff]
        %v340 = vld [vmem:[%s1 + $0x78] sm:$0xff]
        %v341 = vld [vmem:[%s1 + $0x80] sm:$0xff]
        %v342 = vld [vmem:[%s1 + $0x88] sm:$0xff]
        %v343 = vld [vmem:[%s1 + $0x90] sm:$0xff]
        %v344 = vld [vmem:[%s1 + $0x98] sm:$0xff]
        %v345 = vld [vmem:[%s1 + $0xa0] sm:$0xff]
        %v346 = vld [vmem:[%s1 + $0xa8] sm:$0xff]
        %v347 = vld [vmem:[%s1 + $0xb0] sm:$0xff]
        %v348 = vld [vmem:[%s1 + $0xb8] sm:$0xff]
        %v349 = vld [vmem:[%s1 + $0xc0] sm:$0xff]
        %v350 = vld [vmem:[%s1 + $0xc8] sm:$0xff]
        %v351 = vld [vmem:[%s1 + $0xd0] sm:$0xff]
        %v352 = vld [vmem:[%s1 + $0xd8] sm:$0xff]
        %v353 = vld [vmem:[%s1 + $0xe0] sm:$0xff]
        %v354 = vld [vmem:[%s1 + $0xe8] sm:$0xff]
        %v355 = vld [vmem:[%s1 + $0xf0] sm:$0xff]
        %v356 = vld [vmem:[%s1 + $0xf8] sm:$0xff]
        %v357 = vld [vmem:[%s1 + $0x100] sm:$0xff]
        %v358 = vld [vmem:[%s1 + $0x108] sm:$0xff]
        %v359 = vld [vmem:[%s1 + $0x110] sm:$0xff]
        %v360 = vld [vmem:[%s1 + $0x118] sm:$0xff]
        %v361 = vld [vmem:[%s1 + $0x120] sm:$0xff]
        %v362 = vld [vmem:[%s1 + $0x128] sm:$0xff]
        %v363 = vld [vmem:[%s1 + $0x130] sm:$0xff]
        %v364 = vld [vmem:[%s1 + $0x138] sm:$0xff]
        %v365 = vld [vmem:[%s1 + $0x140] sm:$0xff]
        %v366 = vld [vmem:[%s1 + $0x148] sm:$0xff]
        %v367 = vld [vmem:[%s1 + $0x150] sm:$0xff]
        %v368 = vld [vmem:[%s1 + $0x158] sm:$0xff]
        %v369 = vld [vmem:[%s1 + $0x160] sm:$0xff]
        %v370 = vld [vmem:[%s1 + $0x168] sm:$0xff]
        %v371 = vld [vmem:[%s1 + $0x170] sm:$0xff]
        %v372 = vld [vmem:[%s1 + $0x178] sm:$0xff]
        %v373 = vld [vmem:[%s1 + $0x180] sm:$0xff]
        %v374 = vld [vmem:[%s1 + $0x188] sm:$0xff]
        %v375 = vld [vmem:[%s1 + $0x190] sm:$0xff]
        %v376 = vld [vmem:[%s1 + $0x198] sm:$0xff]
        %v377 = vld [vmem:[%s1 + $0x1a0] sm:$0xff]
        %v378 = vld [vmem:[%s1 + $0x1a8] sm:$0xff]
        %v379 = vld [vmem:[%s1 + $0x1b0] sm:$0xff]
        %v380 = vld [vmem:[%s1 + $0x1b8] sm:$0xff]
        %v381 = vld [vmem:[%s1 + $0x1c0] sm:$0xff]
        %v382 = vld [vmem:[%s1 + $0x1c8] sm:$0xff]
        %v383 = vld [vmem:[%s1 + $0x1d0] sm:$0xff]
        %v384 = vld [vmem:[%s1 + $0x1d8] sm:$0xff]
        %v385 = vld [vmem:[%s1 + $0x1e0] sm:$0xff]
        %v386 = vld [vmem:[%s1 + $0x1e8] sm:$0xff]
        %v387 = vld [vmem:[%s1 + $0x1f0] sm:$0xff]
        %v388 = vld [vmem:[%s1 + $0x1f8] sm:$0xff]
        %v389 = vld [vmem:[%s1 + $0x200] sm:$0xff]
        %v390 = vld [vmem:[%s1 + $0x208] sm:$0xff]
        %v391 = vld [vmem:[%s1 + $0x210] sm:$0xff]
        %v392 = vld [vmem:[%s1 + $0x218] sm:$0xff]
        %v393 = vld [vmem:[%s1 + $0x220] sm:$0x3f]
        %v394 = vld [vmem:[%s2] sm:$0x1]
        %v396 = vlaneseq
        %v397 = vshrl.u32 %v396, 7
        %v398 = vsub.s32 0, %v397
        %v399 = vrot.slane %v394, %v398
        %vm401 = vcmask 310272
        %v403 = vsel %vm401, %v254, 0
        %v406 = vsel %vm401, %v259, 0
        %v409 = vsel %vm401, %v264, 0
        %v412 = vsel %vm401, %v269, 0
        %v415 = vsel %vm401, %v274, 0
        %v418 = vsel %vm401, %v279, 0
        %v421 = vsel %vm401, %v284, 0
        %v424 = vsel %vm401, %v289, 0
        %v427 = vsel %vm401, %v294, 0
        %v430 = vsel %vm401, %v299, 0
        %v433 = vsel %vm401, %v304, 0
        %v436 = vsel %vm401, %v309, 0
        %v439 = vsel %vm401, %v314, 0
        %v442 = vsel %vm401, %v319, 0
        %v445 = vsel %vm401, %v324, 0
        %vm447 = vcmask 1045504
        %v449 = vsel %vm447, %v393, 0
        %451 = vmatprep.subr.mxu0 0.0
        %v452 = vand.u32 %v325, 4294901760
        %453 = vmatpush1.msra.mxu0 %v452
        %454 = vmatprep.subr.mxu0 0.0
        %v455 = vand.u32 %v326, 4294901760
        %456 = vmatpush1.msra.mxu0 %v455
        %457 = vmatprep.subr.mxu0 0.0
        %v458 = vand.u32 %v327, 4294901760
        %459 = vmatpush1.msra.mxu0 %v458
        %460 = vmatprep.subr.mxu0 0.0
        %v461 = vand.u32 %v328, 4294901760
        %462 = vmatpush1.msra.mxu0 %v461
        %463 = vmatprep.subr.mxu0 0.0
        %v464 = vand.u32 %v329, 4294901760
        %465 = vmatpush1.msra.mxu0 %v464
        %466 = vmatprep.subr.mxu0 0.0
        %v467 = vand.u32 %v330, 4294901760
        %468 = vmatpush1.msra.mxu0 %v467
        %469 = vmatprep.subr.mxu0 0.0
        %v470 = vand.u32 %v331, 4294901760
        %471 = vmatpush1.msra.mxu0 %v470
        %472 = vmatprep.subr.mxu0 0.0
        %v473 = vand.u32 %v332, 4294901760
        %474 = vmatpush1.msra.mxu0 %v473
        %475 = vmatprep.subr.mxu0 0.0
        %v476 = vand.u32 %v333, 4294901760
        %477 = vmatpush1.msra.mxu0 %v476
        %478 = vmatprep.subr.mxu0 0.0
        %v479 = vand.u32 %v334, 4294901760
        %480 = vmatpush1.msra.mxu0 %v479
        %481 = vmatprep.subr.mxu0 0.0
        %v482 = vand.u32 %v335, 4294901760
        %483 = vmatpush1.msra.mxu0 %v482
        %484 = vmatprep.subr.mxu0 0.0
        %v485 = vand.u32 %v336, 4294901760
        %486 = vmatpush1.msra.mxu0 %v485
        %487 = vmatprep.subr.mxu0 0.0
        %v488 = vand.u32 %v337, 4294901760
        %489 = vmatpush1.msra.mxu0 %v488
        %490 = vmatprep.subr.mxu0 0.0
        %v491 = vand.u32 %v338, 4294901760
        %492 = vmatpush1.msra.mxu0 %v491
        %493 = vmatprep.subr.mxu0 0.0
        %v494 = vand.u32 %v339, 4294901760
        %495 = vmatpush1.msra.mxu0 %v494
        %496 = vmatprep.subr.mxu0 0.0
        %v497 = vand.u32 %v340, 4294901760
        %498 = vmatpush1.msra.mxu0 %v497
        %499 = vmatprep.subr.mxu0 0.0
        %v500 = vand.u32 %v341, 4294901760
        %501 = vmatpush1.msra.mxu0 %v500
        %502 = vmatprep.subr.mxu0 0.0
        %v503 = vand.u32 %v342, 4294901760
        %504 = vmatpush1.msra.mxu0 %v503
        %505 = vmatprep.subr.mxu0 0.0
        %v506 = vand.u32 %v343, 4294901760
        %507 = vmatpush1.msra.mxu0 %v506
        %508 = vmatprep.subr.mxu0 0.0
        %v509 = vand.u32 %v344, 4294901760
        %510 = vmatpush1.msra.mxu0 %v509
        %511 = vmatprep.subr.mxu0 0.0
        %v512 = vand.u32 %v345, 4294901760
        %513 = vmatpush1.msra.mxu0 %v512
        %514 = vmatprep.subr.mxu0 0.0
        %v515 = vand.u32 %v346, 4294901760
        %516 = vmatpush1.msra.mxu0 %v515
        %517 = vmatprep.subr.mxu0 0.0
        %v518 = vand.u32 %v347, 4294901760
        %519 = vmatpush1.msra.mxu0 %v518
        %520 = vmatprep.subr.mxu0 0.0
        %v521 = vand.u32 %v348, 4294901760
        %522 = vmatpush1.msra.mxu0 %v521
        %523 = vmatprep.subr.mxu0 0.0
        %v524 = vand.u32 %v349, 4294901760
        %525 = vmatpush1.msra.mxu0 %v524
        %526 = vmatprep.subr.mxu0 0.0
        %v527 = vand.u32 %v350, 4294901760
        %528 = vmatpush1.msra.mxu0 %v527
        %529 = vmatprep.subr.mxu0 0.0
        %v530 = vand.u32 %v351, 4294901760
        %531 = vmatpush1.msra.mxu0 %v530
        %532 = vmatprep.subr.mxu0 0.0
        %v533 = vand.u32 %v352, 4294901760
        %534 = vmatpush1.msra.mxu0 %v533
        %535 = vmatprep.subr.mxu0 0.0
        %v536 = vand.u32 %v353, 4294901760
        %537 = vmatpush1.msra.mxu0 %v536
        %538 = vmatprep.subr.mxu0 0.0
        %v539 = vand.u32 %v354, 4294901760
        %540 = vmatpush1.msra.mxu0 %v539
        %541 = vmatprep.subr.mxu0 0.0
        %v542 = vand.u32 %v355, 4294901760
        %543 = vmatpush1.msra.mxu0 %v542
        %544 = vmatprep.subr.mxu0 0.0
        %v545 = vand.u32 %v356, 4294901760
        %546 = vmatpush1.msra.mxu0 %v545
        %v547 = vand.u32 %v251, 4294901760
        %v548 = vsub.f32 %v251, %v547
        %v549 = vand.u32 %v548, 4294901760
        %v550 = vsub.f32 %v548, %v549
        %v551 = vand.u32 %v550, 4294901760
        %552 = vmatprep.mubr.f32.mxu0 %v551
        %v553 = vand.u32 %v250, 4294901760
        %v554 = vsub.f32 %v250, %v553
        %v555 = vand.u32 %v554, 4294901760
        %v556 = vsub.f32 %v554, %v555
        %v557 = vand.u32 %v556, 4294901760
        %558 = vmatmul.mubr.f32.gmra.mrb[0].mxu0 %v557
        %v559 = vpop.f32.mrb[0].mxu0
        %v560 = vadd.f32 %v399, %v559
        %v561 = vpop.f32.mrb[0].mxu0
        %v562 = vand.u32 %v256, 4294901760
        %v563 = vsub.f32 %v256, %v562
        %v564 = vand.u32 %v563, 4294901760
        %v565 = vsub.f32 %v563, %v564
        %v566 = vand.u32 %v565, 4294901760
        %567 = vmatprep.mubr.f32.mxu0 %v566
        %v568 = vand.u32 %v255, 4294901760
        %v569 = vsub.f32 %v255, %v568
        %v570 = vand.u32 %v569, 4294901760
        %v571 = vsub.f32 %v569, %v570
        %v572 = vand.u32 %v571, 4294901760
        %573 = vmatmul.mubr.f32.gmra.mrb[0].mxu0 %v572
        %v574 = vpop.f32.mrb[0].mxu0
        %v575 = vadd.f32 %v399, %v574
        %v576 = vpop.f32.mrb[0].mxu0
        %v577 = vand.u32 %v261, 4294901760
        %v578 = vsub.f32 %v261, %v577
        %v579 = vand.u32 %v578, 4294901760
        %v580 = vsub.f32 %v578, %v579
        %v581 = vand.u32 %v580, 4294901760
        %582 = vmatprep.mubr.f32.mxu0 %v581
        %v583 = vand.u32 %v260, 4294901760
        %v584 = vsub.f32 %v260, %v583
        %v585 = vand.u32 %v584, 4294901760
        %v586 = vsub.f32 %v584, %v585
        %v587 = vand.u32 %v586, 4294901760
        %588 = vmatmul.mubr.f32.gmra.mrb[0].mxu0 %v587
        %v589 = vpop.f32.mrb[0].mxu0
        %v590 = vadd.f32 %v399, %v589
        %v591 = vpop.f32.mrb[0].mxu0
        %v592 = vand.u32 %v266, 4294901760
        %v593 = vsub.f32 %v266, %v592
        %v594 = vand.u32 %v593, 4294901760
        %v595 = vsub.f32 %v593, %v594
        %v596 = vand.u32 %v595, 4294901760
        %597 = vmatprep.mubr.f32.mxu0 %v596
        %v598 = vand.u32 %v265, 4294901760
        %v599 = vsub.f32 %v265, %v598
        %v600 = vand.u32 %v599, 4294901760
        %v601 = vsub.f32 %v599, %v600
        %v602 = vand.u32 %v601, 4294901760
        %603 = vmatmul.mubr.f32.gmra.mrb[0].mxu0 %v602
        %v604 = vpop.f32.mrb[0].mxu0
        %v605 = vadd.f32 %v399, %v604
        %v606 = vpop.f32.mrb[0].mxu0
        %v607 = vand.u32 %v271, 4294901760
        %v608 = vsub.f32 %v271, %v607
        %v609 = vand.u32 %v608, 4294901760
        %v610 = vsub.f32 %v608, %v609
        %v611 = vand.u32 %v610, 4294901760
        %612 = vmatprep.mubr.f32.mxu0 %v611
        %v613 = vand.u32 %v270, 4294901760
        %v614 = vsub.f32 %v270, %v613
        %v615 = vand.u32 %v614, 4294901760
        %v616 = vsub.f32 %v614, %v615
        %v617 = vand.u32 %v616, 4294901760
        %618 = vmatmul.mubr.f32.gmra.mrb[0].mxu0 %v617
        %v619 = vpop.f32.mrb[0].mxu0
        %v620 = vadd.f32 %v399, %v619
        %v621 = vpop.f32.mrb[0].mxu0
        %v622 = vand.u32 %v276, 4294901760
        %v623 = vsub.f32 %v276, %v622
        %v624 = vand.u32 %v623, 4294901760
        %v625 = vsub.f32 %v623, %v624
        %v626 = vand.u32 %v625, 4294901760
        %627 = vmatprep.mubr.f32.mxu0 %v626
        %v628 = vand.u32 %v275, 4294901760
        %v629 = vsub.f32 %v275, %v628
        %v630 = vand.u32 %v629, 4294901760
        %v631 = vsub.f32 %v629, %v630
        %v632 = vand.u32 %v631, 4294901760
        %633 = vmatmul.mubr.f32.gmra.mrb[0].mxu0 %v632
        %v634 = vpop.f32.mrb[0].mxu0
        %v635 = vadd.f32 %v399, %v634
        %v636 = vpop.f32.mrb[0].mxu0
        %v637 = vand.u32 %v281, 4294901760
        %v638 = vsub.f32 %v281, %v637
        %v639 = vand.u32 %v638, 4294901760
        %v640 = vsub.f32 %v638, %v639
        %v641 = vand.u32 %v640, 4294901760
        %642 = vmatprep.mubr.f32.mxu0 %v641
        %v643 = vand.u32 %v280, 4294901760
        %v644 = vsub.f32 %v280, %v643
        %v645 = vand.u32 %v644, 4294901760
        %v646 = vsub.f32 %v644, %v645
        %v647 = vand.u32 %v646, 4294901760
        %648 = vmatmul.mubr.f32.gmra.mrb[0].mxu0 %v647
        %v649 = vpop.f32.mrb[0].mxu0
        %v650 = vadd.f32 %v399, %v649
        %v651 = vpop.f32.mrb[0].mxu0
        %v652 = vand.u32 %v286, 4294901760
        %v653 = vsub.f32 %v286, %v652
        %v654 = vand.u32 %v653, 4294901760
        %v655 = vsub.f32 %v653, %v654
        %v656 = vand.u32 %v655, 4294901760
        %657 = vmatprep.mubr.f32.mxu0 %v656
        %v658 = vand.u32 %v285, 4294901760
        %v659 = vsub.f32 %v285, %v658
        %v660 = vand.u32 %v659, 4294901760
        %v661 = vsub.f32 %v659, %v660
        %v662 = vand.u32 %v661, 4294901760
        %663 = vmatmul.mubr.f32.gmra.mrb[0].mxu0 %v662
        %v664 = vpop.f32.mrb[0].mxu0
        %v665 = vadd.f32 %v399, %v664
        %v666 = vpop.f32.mrb[0].mxu0
        %v667 = vand.u32 %v291, 4294901760
        %v668 = vsub.f32 %v291, %v667
        %v669 = vand.u32 %v668, 4294901760
        %v670 = vsub.f32 %v668, %v669
        %v671 = vand.u32 %v670, 4294901760
        %672 = vmatprep.mubr.f32.mxu0 %v671
        %v673 = vand.u32 %v290, 4294901760
        %v674 = vsub.f32 %v290, %v673
        %v675 = vand.u32 %v674, 4294901760
        %v676 = vsub.f32 %v674, %v675
        %v677 = vand.u32 %v676, 4294901760
        %678 = vmatmul.mubr.f32.gmra.mrb[0].mxu0 %v677
        %v679 = vpop.f32.mrb[0].mxu0
        %v680 = vadd.f32 %v399, %v679
        %v681 = vpop.f32.mrb[0].mxu0
        %v682 = vand.u32 %v296, 4294901760
        %v683 = vsub.f32 %v296, %v682
        %v684 = vand.u32 %v683, 4294901760
        %v685 = vsub.f32 %v683, %v684
        %v686 = vand.u32 %v685, 4294901760
        %687 = vmatprep.mubr.f32.mxu0 %v686
        %v688 = vand.u32 %v295, 4294901760
        %v689 = vsub.f32 %v295, %v688
        %v690 = vand.u32 %v689, 4294901760
        %v691 = vsub.f32 %v689, %v690
        %v692 = vand.u32 %v691, 4294901760
        %693 = vmatmul.mubr.f32.gmra.mrb[0].mxu0 %v692
        %v694 = vpop.f32.mrb[0].mxu0
        %v695 = vadd.f32 %v399, %v694
        %v696 = vpop.f32.mrb[0].mxu0
        %v697 = vand.u32 %v301, 4294901760
        %v698 = vsub.f32 %v301, %v697
        %v699 = vand.u32 %v698, 4294901760
        %v700 = vsub.f32 %v698, %v699
        %v701 = vand.u32 %v700, 4294901760
        %702 = vmatprep.mubr.f32.mxu0 %v701
        %v703 = vand.u32 %v300, 4294901760
        %v704 = vsub.f32 %v300, %v703
        %v705 = vand.u32 %v704, 4294901760
        %v706 = vsub.f32 %v704, %v705
        %v707 = vand.u32 %v706, 4294901760
        %708 = vmatmul.mubr.f32.gmra.mrb[0].mxu0 %v707
        %v709 = vpop.f32.mrb[0].mxu0
        %v710 = vadd.f32 %v399, %v709
        %v711 = vpop.f32.mrb[0].mxu0
        %v712 = vand.u32 %v306, 4294901760
        %v713 = vsub.f32 %v306, %v712
        %v714 = vand.u32 %v713, 4294901760
        %v715 = vsub.f32 %v713, %v714
        %v716 = vand.u32 %v715, 4294901760
        %717 = vmatprep.mubr.f32.mxu0 %v716
        %v718 = vand.u32 %v305, 4294901760
        %v719 = vsub.f32 %v305, %v718
        %v720 = vand.u32 %v719, 4294901760
        %v721 = vsub.f32 %v719, %v720
        %v722 = vand.u32 %v721, 4294901760
        %723 = vmatmul.mubr.f32.gmra.mrb[0].mxu0 %v722
        %v724 = vpop.f32.mrb[0].mxu0
        %v725 = vadd.f32 %v399, %v724
        %v726 = vpop.f32.mrb[0].mxu0
        %v727 = vand.u32 %v311, 4294901760
        %v728 = vsub.f32 %v311, %v727
        %v729 = vand.u32 %v728, 4294901760
        %v730 = vsub.f32 %v728, %v729
        %v731 = vand.u32 %v730, 4294901760
        %732 = vmatprep.mubr.f32.mxu0 %v731
        %v733 = vand.u32 %v310, 4294901760
        %v734 = vsub.f32 %v310, %v733
        %v735 = vand.u32 %v734, 4294901760
        %v736 = vsub.f32 %v734, %v735
        %v737 = vand.u32 %v736, 4294901760
        %738 = vmatmul.mubr.f32.gmra.mrb[0].mxu0 %v737
        %v739 = vpop.f32.mrb[0].mxu0
        %v740 = vadd.f32 %v399, %v739
        %v741 = vpop.f32.mrb[0].mxu0
        %v742 = vand.u32 %v316, 4294901760
        %v743 = vsub.f32 %v316, %v742
        %v744 = vand.u32 %v743, 4294901760
        %v745 = vsub.f32 %v743, %v744
        %v746 = vand.u32 %v745, 4294901760
        %747 = vmatprep.mubr.f32.mxu0 %v746
        %v748 = vand.u32 %v315, 4294901760
        %v749 = vsub.f32 %v315, %v748
        %v750 = vand.u32 %v749, 4294901760
        %v751 = vsub.f32 %v749, %v750
        %v752 = vand.u32 %v751, 4294901760
        %753 = vmatmul.mubr.f32.gmra.mrb[0].mxu0 %v752
        %v754 = vpop.f32.mrb[0].mxu0
        %v755 = vadd.f32 %v399, %v754
        %v756 = vpop.f32.mrb[0].mxu0
        %v757 = vand.u32 %v321, 4294901760
        %v758 = vsub.f32 %v321, %v757
        %v759 = vand.u32 %v758, 4294901760
        %v760 = vsub.f32 %v758, %v759
        %v761 = vand.u32 %v760, 4294901760
        %762 = vmatprep.mubr.f32.mxu0 %v761
        %v763 = vand.u32 %v320, 4294901760
        %v764 = vsub.f32 %v320, %v763
        %v765 = vand.u32 %v764, 4294901760
        %v766 = vsub.f32 %v764, %v765
        %v767 = vand.u32 %v766, 4294901760
        %768 = vmatmul.mubr.f32.gmra.mrb[0].mxu0 %v767
        %v769 = vpop.f32.mrb[0].mxu0
        %v770 = vadd.f32 %v399, %v769
        %v771 = vpop.f32.mrb[0].mxu0
        %772 = vdwg.mxu0
        %773 = vmatprep.subr.mxu0 0.0
        %v774 = vand.u32 %v325, 4294901760
        %v775 = vsub.f32 %v325, %v774
        %v776 = vand.u32 %v775, 4294901760
        %v777 = vsub.f32 %v775, %v776
        %v778 = vand.u32 %v777, 4294901760
        %779 = vmatpush1.msra.mxu0 %v778
        %780 = vmatprep.subr.mxu0 0.0
        %v781 = vand.u32 %v326, 4294901760
        %v782 = vsub.f32 %v326, %v781
        %v783 = vand.u32 %v782, 4294901760
        %v784 = vsub.f32 %v782, %v783
        %v785 = vand.u32 %v784, 4294901760
        %786 = vmatpush1.msra.mxu0 %v785
        %787 = vmatprep.subr.mxu0 0.0
        %v788 = vand.u32 %v327, 4294901760
        %v789 = vsub.f32 %v327, %v788
        %v790 = vand.u32 %v789, 4294901760
        %v791 = vsub.f32 %v789, %v790
        %v792 = vand.u32 %v791, 4294901760
        %793 = vmatpush1.msra.mxu0 %v792
        %794 = vmatprep.subr.mxu0 0.0
        %v795 = vand.u32 %v328, 4294901760
        %v796 = vsub.f32 %v328, %v795
        %v797 = vand.u32 %v796, 4294901760
        %v798 = vsub.f32 %v796, %v797
        %v799 = vand.u32 %v798, 4294901760
        %800 = vmatpush1.msra.mxu0 %v799
        %801 = vmatprep.subr.mxu0 0.0
        %v802 = vand.u32 %v329, 4294901760
        %v803 = vsub.f32 %v329, %v802
        %v804 = vand.u32 %v803, 4294901760
        %v805 = vsub.f32 %v803, %v804
        %v806 = vand.u32 %v805, 4294901760
        %807 = vmatpush1.msra.mxu0 %v806
        %808 = vmatprep.subr.mxu0 0.0
        %v809 = vand.u32 %v330, 4294901760
        %v810 = vsub.f32 %v330, %v809
        %v811 = vand.u32 %v810, 4294901760
        %v812 = vsub.f32 %v810, %v811
        %v813 = vand.u32 %v812, 4294901760
        %814 = vmatpush1.msra.mxu0 %v813
        %815 = vmatprep.subr.mxu0 0.0
        %v816 = vand.u32 %v331, 4294901760
        %v817 = vsub.f32 %v331, %v816
        %v818 = vand.u32 %v817, 4294901760
        %v819 = vsub.f32 %v817, %v818
        %v820 = vand.u32 %v819, 4294901760
        %821 = vmatpush1.msra.mxu0 %v820
        %822 = vmatprep.subr.mxu0 0.0
        %v823 = vand.u32 %v332, 4294901760
        %v824 = vsub.f32 %v332, %v823
        %v825 = vand.u32 %v824, 4294901760
        %v826 = vsub.f32 %v824, %v825
        %v827 = vand.u32 %v826, 4294901760
        %828 = vmatpush1.msra.mxu0 %v827
        %829 = vmatprep.subr.mxu0 0.0
        %v830 = vand.u32 %v333, 4294901760
        %v831 = vsub.f32 %v333, %v830
        %v832 = vand.u32 %v831, 4294901760
        %v833 = vsub.f32 %v831, %v832
        %v834 = vand.u32 %v833, 4294901760
        %835 = vmatpush1.msra.mxu0 %v834
        %836 = vmatprep.subr.mxu0 0.0
        %v837 = vand.u32 %v334, 4294901760
        %v838 = vsub.f32 %v334, %v837
        %v839 = vand.u32 %v838, 4294901760
        %v840 = vsub.f32 %v838, %v839
        %v841 = vand.u32 %v840, 4294901760
        %842 = vmatpush1.msra.mxu0 %v841
        %843 = vmatprep.subr.mxu0 0.0
        %v844 = vand.u32 %v335, 4294901760
        %v845 = vsub.f32 %v335, %v844
        %v846 = vand.u32 %v845, 4294901760
        %v847 = vsub.f32 %v845, %v846
        %v848 = vand.u32 %v847, 4294901760
        %849 = vmatpush1.msra.mxu0 %v848
        %850 = vmatprep.subr.mxu0 0.0
        %v851 = vand.u32 %v336, 4294901760
        %v852 = vsub.f32 %v336, %v851
        %v853 = vand.u32 %v852, 4294901760
        %v854 = vsub.f32 %v852, %v853
        %v855 = vand.u32 %v854, 4294901760
        %856 = vmatpush1.msra.mxu0 %v855
        %857 = vmatprep.subr.mxu0 0.0
        %v858 = vand.u32 %v337, 4294901760
        %v859 = vsub.f32 %v337, %v858
        %v860 = vand.u32 %v859, 4294901760
        %v861 = vsub.f32 %v859, %v860
        %v862 = vand.u32 %v861, 4294901760
        %863 = vmatpush1.msra.mxu0 %v862
        %864 = vmatprep.subr.mxu0 0.0
        %v865 = vand.u32 %v338, 4294901760
        %v866 = vsub.f32 %v338, %v865
        %v867 = vand.u32 %v866, 4294901760
        %v868 = vsub.f32 %v866, %v867
        %v869 = vand.u32 %v868, 4294901760
        %870 = vmatpush1.msra.mxu0 %v869
        %871 = vmatprep.subr.mxu0 0.0
        %v872 = vand.u32 %v339, 4294901760
        %v873 = vsub.f32 %v339, %v872
        %v874 = vand.u32 %v873, 4294901760
        %v875 = vsub.f32 %v873, %v874
        %v876 = vand.u32 %v875, 4294901760
        %877 = vmatpush1.msra.mxu0 %v876
        %878 = vmatprep.subr.mxu0 0.0
        %v879 = vand.u32 %v340, 4294901760
        %v880 = vsub.f32 %v340, %v879
        %v881 = vand.u32 %v880, 4294901760
        %v882 = vsub.f32 %v880, %v881
        %v883 = vand.u32 %v882, 4294901760
        %884 = vmatpush1.msra.mxu0 %v883
        %885 = vmatprep.subr.mxu0 0.0
        %v886 = vand.u32 %v341, 4294901760
        %v887 = vsub.f32 %v341, %v886
        %v888 = vand.u32 %v887, 4294901760
        %v889 = vsub.f32 %v887, %v888
        %v890 = vand.u32 %v889, 4294901760
        %891 = vmatpush1.msra.mxu0 %v890
        %892 = vmatprep.subr.mxu0 0.0
        %v893 = vand.u32 %v342, 4294901760
        %v894 = vsub.f32 %v342, %v893
        %v895 = vand.u32 %v894, 4294901760
        %v896 = vsub.f32 %v894, %v895
        %v897 = vand.u32 %v896, 4294901760
        %898 = vmatpush1.msra.mxu0 %v897
        %899 = vmatprep.subr.mxu0 0.0
        %v900 = vand.u32 %v343, 4294901760
        %v901 = vsub.f32 %v343, %v900
        %v902 = vand.u32 %v901, 4294901760
        %v903 = vsub.f32 %v901, %v902
        %v904 = vand.u32 %v903, 4294901760
        %905 = vmatpush1.msra.mxu0 %v904
        %906 = vmatprep.subr.mxu0 0.0
        %v907 = vand.u32 %v344, 4294901760
        %v908 = vsub.f32 %v344, %v907
        %v909 = vand.u32 %v908, 4294901760
        %v910 = vsub.f32 %v908, %v909
        %v911 = vand.u32 %v910, 4294901760
        %912 = vmatpush1.msra.mxu0 %v911
        %913 = vmatprep.subr.mxu0 0.0
        %v914 = vand.u32 %v345, 4294901760
        %v915 = vsub.f32 %v345, %v914
        %v916 = vand.u32 %v915, 4294901760
        %v917 = vsub.f32 %v915, %v916
        %v918 = vand.u32 %v917, 4294901760
        %919 = vmatpush1.msra.mxu0 %v918
        %920 = vmatprep.subr.mxu0 0.0
        %v921 = vand.u32 %v346, 4294901760
        %v922 = vsub.f32 %v346, %v921
        %v923 = vand.u32 %v922, 4294901760
        %v924 = vsub.f32 %v922, %v923
        %v925 = vand.u32 %v924, 4294901760
        %926 = vmatpush1.msra.mxu0 %v925
        %927 = vmatprep.subr.mxu0 0.0
        %v928 = vand.u32 %v347, 4294901760
        %v929 = vsub.f32 %v347, %v928
        %v930 = vand.u32 %v929, 4294901760
        %v931 = vsub.f32 %v929, %v930
        %v932 = vand.u32 %v931, 4294901760
        %933 = vmatpush1.msra.mxu0 %v932
        %934 = vmatprep.subr.mxu0 0.0
        %v935 = vand.u32 %v348, 4294901760
        %v936 = vsub.f32 %v348, %v935
        %v937 = vand.u32 %v936, 4294901760
        %v938 = vsub.f32 %v936, %v937
        %v939 = vand.u32 %v938, 4294901760
        %940 = vmatpush1.msra.mxu0 %v939
        %941 = vmatprep.subr.mxu0 0.0
        %v942 = vand.u32 %v349, 4294901760
        %v943 = vsub.f32 %v349, %v942
        %v944 = vand.u32 %v943, 4294901760
        %v945 = vsub.f32 %v943, %v944
        %v946 = vand.u32 %v945, 4294901760
        %947 = vmatpush1.msra.mxu0 %v946
        %948 = vmatprep.subr.mxu0 0.0
        %v949 = vand.u32 %v350, 4294901760
        %v950 = vsub.f32 %v350, %v949
        %v951 = vand.u32 %v950, 4294901760
        %v952 = vsub.f32 %v950, %v951
        %v953 = vand.u32 %v952, 4294901760
        %954 = vmatpush1.msra.mxu0 %v953
        %955 = vmatprep.subr.mxu0 0.0
        %v956 = vand.u32 %v351, 4294901760
        %v957 = vsub.f32 %v351, %v956
        %v958 = vand.u32 %v957, 4294901760
        %v959 = vsub.f32 %v957, %v958
        %v960 = vand.u32 %v959, 4294901760
        %961 = vmatpush1.msra.mxu0 %v960
        %962 = vmatprep.subr.mxu0 0.0
        %v963 = vand.u32 %v352, 4294901760
        %v964 = vsub.f32 %v352, %v963
        %v965 = vand.u32 %v964, 4294901760
        %v966 = vsub.f32 %v964, %v965
        %v967 = vand.u32 %v966, 4294901760
        %968 = vmatpush1.msra.mxu0 %v967
        %969 = vmatprep.subr.mxu0 0.0
        %v970 = vand.u32 %v353, 4294901760
        %v971 = vsub.f32 %v353, %v970
        %v972 = vand.u32 %v971, 4294901760
        %v973 = vsub.f32 %v971, %v972
        %v974 = vand.u32 %v973, 4294901760
        %975 = vmatpush1.msra.mxu0 %v974
        %976 = vmatprep.subr.mxu0 0.0
        %v977 = vand.u32 %v354, 4294901760
        %v978 = vsub.f32 %v354, %v977
        %v979 = vand.u32 %v978, 4294901760
        %v980 = vsub.f32 %v978, %v979
        %v981 = vand.u32 %v980, 4294901760
        %982 = vmatpush1.msra.mxu0 %v981
        %983 = vmatprep.subr.mxu0 0.0
        %v984 = vand.u32 %v355, 4294901760
        %v985 = vsub.f32 %v355, %v984
        %v986 = vand.u32 %v985, 4294901760
        %v987 = vsub.f32 %v985, %v986
        %v988 = vand.u32 %v987, 4294901760
        %989 = vmatpush1.msra.mxu0 %v988
        %990 = vmatprep.subr.mxu0 0.0
        %v991 = vand.u32 %v356, 4294901760
        %v992 = vsub.f32 %v356, %v991
        %v993 = vand.u32 %v992, 4294901760
        %v994 = vsub.f32 %v992, %v993
        %v995 = vand.u32 %v994, 4294901760
        %996 = vmatpush1.msra.mxu0 %v995
        %v997 = vand.u32 %v251, 4294901760
        %998 = vmatprep.mubr.f32.mxu0 %v997
        %v999 = vand.u32 %v250, 4294901760
        %1000 = vmatmul.mubr.f32.gmra.mrb[0].mxu0 %v999
        %v1001 = vpop.f32.mrb[0].mxu0
        %v1002 = vadd.f32 %v560, %v1001
        %v1003 = vpop.f32.mrb[0].mxu0
        %v1004 = vand.u32 %v256, 4294901760
        %1005 = vmatprep.mubr.f32.mxu0 %v1004
        %v1006 = vand.u32 %v255, 4294901760
        %1007 = vmatmul.mubr.f32.gmra.mrb[0].mxu0 %v1006
        %v1008 = vpop.f32.mrb[0].mxu0
        %v1009 = vadd.f32 %v575, %v1008
        %v1010 = vpop.f32.mrb[0].mxu0
        %v1011 = vand.u32 %v261, 4294901760
        %1012 = vmatprep.mubr.f32.mxu0 %v1011
        %v1013 = vand.u32 %v260, 4294901760
        %1014 = vmatmul.mubr.f32.gmra.mrb[0].mxu0 %v1013
        %v1015 = vpop.f32.mrb[0].mxu0
        %v1016 = vadd.f32 %v590, %v1015
        %v1017 = vpop.f32.mrb[0].mxu0
        %v1018 = vand.u32 %v266, 4294901760
        %1019 = vmatprep.mubr.f32.mxu0 %v1018
        %v1020 = vand.u32 %v265, 4294901760
        %1021 = vmatmul.mubr.f32.gmra.mrb[0].mxu0 %v1020
        %v1022 = vpop.f32.mrb[0].mxu0
        %v1023 = vadd.f32 %v605, %v1022
        %v1024 = vpop.f32.mrb[0].mxu0
        %v1025 = vand.u32 %v271, 4294901760
        %1026 = vmatprep.mubr.f32.mxu0 %v1025
        %v1027 = vand.u32 %v270, 4294901760
        %1028 = vmatmul.mubr.f32.gmra.mrb[0].mxu0 %v1027
        %v1029 = vpop.f32.mrb[0].mxu0
        %v1030 = vadd.f32 %v620, %v1029
        %v1031 = vpop.f32.mrb[0].mxu0
        %v1032 = vand.u32 %v276, 4294901760
        %1033 = vmatprep.mubr.f32.mxu0 %v1032
        %v1034 = vand.u32 %v275, 4294901760
        %1035 = vmatmul.mubr.f32.gmra.mrb[0].mxu0 %v1034
        %v1036 = vpop.f32.mrb[0].mxu0
        %v1037 = vadd.f32 %v635, %v1036
        %v1038 = vpop.f32.mrb[0].mxu0
        %v1039 = vand.u32 %v281, 4294901760
        %1040 = vmatprep.mubr.f32.mxu0 %v1039
        %v1041 = vand.u32 %v280, 4294901760
        %1042 = vmatmul.mubr.f32.gmra.mrb[0].mxu0 %v1041
        %v1043 = vpop.f32.mrb[0].mxu0
        %v1044 = vadd.f32 %v650, %v1043
        %v1045 = vpop.f32.mrb[0].mxu0
        %v1046 = vand.u32 %v286, 4294901760
        %1047 = vmatprep.mubr.f32.mxu0 %v1046
        %v1048 = vand.u32 %v285, 4294901760
        %1049 = vmatmul.mubr.f32.gmra.mrb[0].mxu0 %v1048
        %v1050 = vpop.f32.mrb[0].mxu0
        %v1051 = vadd.f32 %v665, %v1050
        %v1052 = vpop.f32.mrb[0].mxu0
        %v1053 = vand.u32 %v291, 4294901760
        %1054 = vmatprep.mubr.f32.mxu0 %v1053
        %v1055 = vand.u32 %v290, 4294901760
        %1056 = vmatmul.mubr.f32.gmra.mrb[0].mxu0 %v1055
        %v1057 = vpop.f32.mrb[0].mxu0
        %v1058 = vadd.f32 %v680, %v1057
        %v1059 = vpop.f32.mrb[0].mxu0
        %v1060 = vand.u32 %v296, 4294901760
        %1061 = vmatprep.mubr.f32.mxu0 %v1060
        %v1062 = vand.u32 %v295, 4294901760
        %1063 = vmatmul.mubr.f32.gmra.mrb[0].mxu0 %v1062
        %v1064 = vpop.f32.mrb[0].mxu0
        %v1065 = vadd.f32 %v695, %v1064
        %v1066 = vpop.f32.mrb[0].mxu0
        %v1067 = vand.u32 %v301, 4294901760
        %1068 = vmatprep.mubr.f32.mxu0 %v1067
        %v1069 = vand.u32 %v300, 4294901760
        %1070 = vmatmul.mubr.f32.gmra.mrb[0].mxu0 %v1069
        %v1071 = vpop.f32.mrb[0].mxu0
        %v1072 = vadd.f32 %v710, %v1071
        %v1073 = vpop.f32.mrb[0].mxu0
        %v1074 = vand.u32 %v306, 4294901760
        %1075 = vmatprep.mubr.f32.mxu0 %v1074
        %v1076 = vand.u32 %v305, 4294901760
        %1077 = vmatmul.mubr.f32.gmra.mrb[0].mxu0 %v1076
        %v1078 = vpop.f32.mrb[0].mxu0
        %v1079 = vadd.f32 %v725, %v1078
        %v1080 = vpop.f32.mrb[0].mxu0
        %v1081 = vand.u32 %v311, 4294901760
        %1082 = vmatprep.mubr.f32.mxu0 %v1081
        %v1083 = vand.u32 %v310, 4294901760
        %1084 = vmatmul.mubr.f32.gmra.mrb[0].mxu0 %v1083
        %v1085 = vpop.f32.mrb[0].mxu0
        %v1086 = vadd.f32 %v740, %v1085
        %v1087 = vpop.f32.mrb[0].mxu0
        %v1088 = vand.u32 %v316, 4294901760
        %1089 = vmatprep.mubr.f32.mxu0 %v1088
        %v1090 = vand.u32 %v315, 4294901760
        %1091 = vmatmul.mubr.f32.gmra.mrb[0].mxu0 %v1090
        %v1092 = vpop.f32.mrb[0].mxu0
        %v1093 = vadd.f32 %v755, %v1092
        %v1094 = vpop.f32.mrb[0].mxu0
        %v1095 = vand.u32 %v321, 4294901760
        %1096 = vmatprep.mubr.f32.mxu0 %v1095
        %v1097 = vand.u32 %v320, 4294901760
        %1098 = vmatmul.mubr.f32.gmra.mrb[0].mxu0 %v1097
        %v1099 = vpop.f32.mrb[0].mxu0
        %v1100 = vadd.f32 %v770, %v1099
        %v1101 = vpop.f32.mrb[0].mxu0
        %1102 = vdwg.mxu0
        %1103 = vmatprep.subr.mxu0 0.0
        %v1104 = vand.u32 %v325, 4294901760
        %v1105 = vsub.f32 %v325, %v1104
        %1106 = vmatpush1.msra.mxu0 %v1105
        %1107 = vmatprep.subr.mxu0 0.0
        %v1108 = vand.u32 %v326, 4294901760
        %v1109 = vsub.f32 %v326, %v1108
        %1110 = vmatpush1.msra.mxu0 %v1109
        %1111 = vmatprep.subr.mxu0 0.0
        %v1112 = vand.u32 %v327, 4294901760
        %v1113 = vsub.f32 %v327, %v1112
        %1114 = vmatpush1.msra.mxu0 %v1113
        %1115 = vmatprep.subr.mxu0 0.0
        %v1116 = vand.u32 %v328, 4294901760
        %v1117 = vsub.f32 %v328, %v1116
        %1118 = vmatpush1.msra.mxu0 %v1117
        %1119 = vmatprep.subr.mxu0 0.0
        %v1120 = vand.u32 %v329, 4294901760
        %v1121 = vsub.f32 %v329, %v1120
        %1122 = vmatpush1.msra.mxu0 %v1121
        %1123 = vmatprep.subr.mxu0 0.0
        %v1124 = vand.u32 %v330, 4294901760
        %v1125 = vsub.f32 %v330, %v1124
        %1126 = vmatpush1.msra.mxu0 %v1125
        %1127 = vmatprep.subr.mxu0 0.0
        %v1128 = vand.u32 %v331, 4294901760
        %v1129 = vsub.f32 %v331, %v1128
        %1130 = vmatpush1.msra.mxu0 %v1129
        %1131 = vmatprep.subr.mxu0 0.0
        %v1132 = vand.u32 %v332, 4294901760
        %v1133 = vsub.f32 %v332, %v1132
        %1134 = vmatpush1.msra.mxu0 %v1133
        %1135 = vmatprep.subr.mxu0 0.0
        %v1136 = vand.u32 %v333, 4294901760
        %v1137 = vsub.f32 %v333, %v1136
        %1138 = vmatpush1.msra.mxu0 %v1137
        %1139 = vmatprep.subr.mxu0 0.0
        %v1140 = vand.u32 %v334, 4294901760
        %v1141 = vsub.f32 %v334, %v1140
        %1142 = vmatpush1.msra.mxu0 %v1141
        %1143 = vmatprep.subr.mxu0 0.0
        %v1144 = vand.u32 %v335, 4294901760
        %v1145 = vsub.f32 %v335, %v1144
        %1146 = vmatpush1.msra.mxu0 %v1145
        %1147 = vmatprep.subr.mxu0 0.0
        %v1148 = vand.u32 %v336, 4294901760
        %v1149 = vsub.f32 %v336, %v1148
        %1150 = vmatpush1.msra.mxu0 %v1149
        %1151 = vmatprep.subr.mxu0 0.0
        %v1152 = vand.u32 %v337, 4294901760
        %v1153 = vsub.f32 %v337, %v1152
        %1154 = vmatpush1.msra.mxu0 %v1153
        %1155 = vmatprep.subr.mxu0 0.0
        %v1156 = vand.u32 %v338, 4294901760
        %v1157 = vsub.f32 %v338, %v1156
        %1158 = vmatpush1.msra.mxu0 %v1157
        %1159 = vmatprep.subr.mxu0 0.0
        %v1160 = vand.u32 %v339, 4294901760
        %v1161 = vsub.f32 %v339, %v1160
        %1162 = vmatpush1.msra.mxu0 %v1161
        %1163 = vmatprep.subr.mxu0 0.0
        %v1164 = vand.u32 %v340, 4294901760
        %v1165 = vsub.f32 %v340, %v1164
        %1166 = vmatpush1.msra.mxu0 %v1165
        %1167 = vmatprep.subr.mxu0 0.0
        %v1168 = vand.u32 %v341, 4294901760
        %v1169 = vsub.f32 %v341, %v1168
        %1170 = vmatpush1.msra.mxu0 %v1169
        %1171 = vmatprep.subr.mxu0 0.0
        %v1172 = vand.u32 %v342, 4294901760
        %v1173 = vsub.f32 %v342, %v1172
        %1174 = vmatpush1.msra.mxu0 %v1173
        %1175 = vmatprep.subr.mxu0 0.0
        %v1176 = vand.u32 %v343, 4294901760
        %v1177 = vsub.f32 %v343, %v1176
        %1178 = vmatpush1.msra.mxu0 %v1177
        %1179 = vmatprep.subr.mxu0 0.0
        %v1180 = vand.u32 %v344, 4294901760
        %v1181 = vsub.f32 %v344, %v1180
        %1182 = vmatpush1.msra.mxu0 %v1181
        %1183 = vmatprep.subr.mxu0 0.0
        %v1184 = vand.u32 %v345, 4294901760
        %v1185 = vsub.f32 %v345, %v1184
        %1186 = vmatpush1.msra.mxu0 %v1185
        %1187 = vmatprep.subr.mxu0 0.0
        %v1188 = vand.u32 %v346, 4294901760
        %v1189 = vsub.f32 %v346, %v1188
        %1190 = vmatpush1.msra.mxu0 %v1189
        %1191 = vmatprep.subr.mxu0 0.0
        %v1192 = vand.u32 %v347, 4294901760
        %v1193 = vsub.f32 %v347, %v1192
        %1194 = vmatpush1.msra.mxu0 %v1193
        %1195 = vmatprep.subr.mxu0 0.0
        %v1196 = vand.u32 %v348, 4294901760
        %v1197 = vsub.f32 %v348, %v1196
        %1198 = vmatpush1.msra.mxu0 %v1197
        %1199 = vmatprep.subr.mxu0 0.0
        %v1200 = vand.u32 %v349, 4294901760
        %v1201 = vsub.f32 %v349, %v1200
        %1202 = vmatpush1.msra.mxu0 %v1201
        %1203 = vmatprep.subr.mxu0 0.0
        %v1204 = vand.u32 %v350, 4294901760
        %v1205 = vsub.f32 %v350, %v1204
        %1206 = vmatpush1.msra.mxu0 %v1205
        %1207 = vmatprep.subr.mxu0 0.0
        %v1208 = vand.u32 %v351, 4294901760
        %v1209 = vsub.f32 %v351, %v1208
        %1210 = vmatpush1.msra.mxu0 %v1209
        %1211 = vmatprep.subr.mxu0 0.0
        %v1212 = vand.u32 %v352, 4294901760
        %v1213 = vsub.f32 %v352, %v1212
        %1214 = vmatpush1.msra.mxu0 %v1213
        %1215 = vmatprep.subr.mxu0 0.0
        %v1216 = vand.u32 %v353, 4294901760
        %v1217 = vsub.f32 %v353, %v1216
        %1218 = vmatpush1.msra.mxu0 %v1217
        %1219 = vmatprep.subr.mxu0 0.0
        %v1220 = vand.u32 %v354, 4294901760
        %v1221 = vsub.f32 %v354, %v1220
        %1222 = vmatpush1.msra.mxu0 %v1221
        %1223 = vmatprep.subr.mxu0 0.0
        %v1224 = vand.u32 %v355, 4294901760
        %v1225 = vsub.f32 %v355, %v1224
        %1226 = vmatpush1.msra.mxu0 %v1225
        %1227 = vmatprep.subr.mxu0 0.0
        %v1228 = vand.u32 %v356, 4294901760
        %v1229 = vsub.f32 %v356, %v1228
        %1230 = vmatpush1.msra.mxu0 %v1229
        %v1231 = vand.u32 %v251, 4294901760
        %v1232 = vsub.f32 %v251, %v1231
        %1233 = vmatprep.mubr.f32.mxu0 %v1232
        %v1234 = vand.u32 %v250, 4294901760
        %v1235 = vsub.f32 %v250, %v1234
        %1236 = vmatmul.mubr.f32.gmra.mrb[0].mxu0 %v1235
        %v1237 = vpop.f32.mrb[0].mxu0
        %v1238 = vadd.f32 %v1002, %v1237
        %v1239 = vpop.f32.mrb[0].mxu0
        %v1240 = vand.u32 %v256, 4294901760
        %v1241 = vsub.f32 %v256, %v1240
        %1242 = vmatprep.mubr.f32.mxu0 %v1241
        %v1243 = vand.u32 %v255, 4294901760
        %v1244 = vsub.f32 %v255, %v1243
        %1245 = vmatmul.mubr.f32.gmra.mrb[0].mxu0 %v1244
        %v1246 = vpop.f32.mrb[0].mxu0
        %v1247 = vadd.f32 %v1009, %v1246
        %v1248 = vpop.f32.mrb[0].mxu0
        %v1249 = vand.u32 %v261, 4294901760
        %v1250 = vsub.f32 %v261, %v1249
        %1251 = vmatprep.mubr.f32.mxu0 %v1250
        %v1252 = vand.u32 %v260, 4294901760
        %v1253 = vsub.f32 %v260, %v1252
        %1254 = vmatmul.mubr.f32.gmra.mrb[0].mxu0 %v1253
        %v1255 = vpop.f32.mrb[0].mxu0
        %v1256 = vadd.f32 %v1016, %v1255
        %v1257 = vpop.f32.mrb[0].mxu0
        %v1258 = vand.u32 %v266, 4294901760
        %v1259 = vsub.f32 %v266, %v1258
        %1260 = vmatprep.mubr.f32.mxu0 %v1259
        %v1261 = vand.u32 %v265, 4294901760
        %v1262 = vsub.f32 %v265, %v1261
        %1263 = vmatmul.mubr.f32.gmra.mrb[0].mxu0 %v1262
        %v1264 = vpop.f32.mrb[0].mxu0
        %v1265 = vadd.f32 %v1023, %v1264
        %v1266 = vpop.f32.mrb[0].mxu0
        %v1267 = vand.u32 %v271, 4294901760
        %v1268 = vsub.f32 %v271, %v1267
        %1269 = vmatprep.mubr.f32.mxu0 %v1268
        %v1270 = vand.u32 %v270, 4294901760
        %v1271 = vsub.f32 %v270, %v1270
        %1272 = vmatmul.mubr.f32.gmra.mrb[0].mxu0 %v1271
        %v1273 = vpop.f32.mrb[0].mxu0
        %v1274 = vadd.f32 %v1030, %v1273
        %v1275 = vpop.f32.mrb[0].mxu0
        %v1276 = vand.u32 %v276, 4294901760
        %v1277 = vsub.f32 %v276, %v1276
        %1278 = vmatprep.mubr.f32.mxu0 %v1277
        %v1279 = vand.u32 %v275, 4294901760
        %v1280 = vsub.f32 %v275, %v1279
        %1281 = vmatmul.mubr.f32.gmra.mrb[0].mxu0 %v1280
        %v1282 = vpop.f32.mrb[0].mxu0
        %v1283 = vadd.f32 %v1037, %v1282
        %v1284 = vpop.f32.mrb[0].mxu0
        %v1285 = vand.u32 %v281, 4294901760
        %v1286 = vsub.f32 %v281, %v1285
        %1287 = vmatprep.mubr.f32.mxu0 %v1286
        %v1288 = vand.u32 %v280, 4294901760
        %v1289 = vsub.f32 %v280, %v1288
        %1290 = vmatmul.mubr.f32.gmra.mrb[0].mxu0 %v1289
        %v1291 = vpop.f32.mrb[0].mxu0
        %v1292 = vadd.f32 %v1044, %v1291
        %v1293 = vpop.f32.mrb[0].mxu0
        %v1294 = vand.u32 %v286, 4294901760
        %v1295 = vsub.f32 %v286, %v1294
        %1296 = vmatprep.mubr.f32.mxu0 %v1295
        %v1297 = vand.u32 %v285, 4294901760
        %v1298 = vsub.f32 %v285, %v1297
        %1299 = vmatmul.mubr.f32.gmra.mrb[0].mxu0 %v1298
        %v1300 = vpop.f32.mrb[0].mxu0
        %v1301 = vadd.f32 %v1051, %v1300
        %v1302 = vpop.f32.mrb[0].mxu0
        %v1303 = vand.u32 %v291, 4294901760
        %v1304 = vsub.f32 %v291, %v1303
        %1305 = vmatprep.mubr.f32.mxu0 %v1304
        %v1306 = vand.u32 %v290, 4294901760
        %v1307 = vsub.f32 %v290, %v1306
        %1308 = vmatmul.mubr.f32.gmra.mrb[0].mxu0 %v1307
        %v1309 = vpop.f32.mrb[0].mxu0
        %v1310 = vadd.f32 %v1058, %v1309
        %v1311 = vpop.f32.mrb[0].mxu0
        %v1312 = vand.u32 %v296, 4294901760
        %v1313 = vsub.f32 %v296, %v1312
        %1314 = vmatprep.mubr.f32.mxu0 %v1313
        %v1315 = vand.u32 %v295, 4294901760
        %v1316 = vsub.f32 %v295, %v1315
        %1317 = vmatmul.mubr.f32.gmra.mrb[0].mxu0 %v1316
        %v1318 = vpop.f32.mrb[0].mxu0
        %v1319 = vadd.f32 %v1065, %v1318
        %v1320 = vpop.f32.mrb[0].mxu0
        %v1321 = vand.u32 %v301, 4294901760
        %v1322 = vsub.f32 %v301, %v1321
        %1323 = vmatprep.mubr.f32.mxu0 %v1322
        %v1324 = vand.u32 %v300, 4294901760
        %v1325 = vsub.f32 %v300, %v1324
        %1326 = vmatmul.mubr.f32.gmra.mrb[0].mxu0 %v1325
        %v1327 = vpop.f32.mrb[0].mxu0
        %v1328 = vadd.f32 %v1072, %v1327
        %v1329 = vpop.f32.mrb[0].mxu0
        %v1330 = vand.u32 %v306, 4294901760
        %v1331 = vsub.f32 %v306, %v1330
        %1332 = vmatprep.mubr.f32.mxu0 %v1331
        %v1333 = vand.u32 %v305, 4294901760
        %v1334 = vsub.f32 %v305, %v1333
        %1335 = vmatmul.mubr.f32.gmra.mrb[0].mxu0 %v1334
        %v1336 = vpop.f32.mrb[0].mxu0
        %v1337 = vadd.f32 %v1079, %v1336
        %v1338 = vpop.f32.mrb[0].mxu0
        %v1339 = vand.u32 %v311, 4294901760
        %v1340 = vsub.f32 %v311, %v1339
        %1341 = vmatprep.mubr.f32.mxu0 %v1340
        %v1342 = vand.u32 %v310, 4294901760
        %v1343 = vsub.f32 %v310, %v1342
        %1344 = vmatmul.mubr.f32.gmra.mrb[0].mxu0 %v1343
        %v1345 = vpop.f32.mrb[0].mxu0
        %v1346 = vadd.f32 %v1086, %v1345
        %v1347 = vpop.f32.mrb[0].mxu0
        %v1348 = vand.u32 %v316, 4294901760
        %v1349 = vsub.f32 %v316, %v1348
        %1350 = vmatprep.mubr.f32.mxu0 %v1349
        %v1351 = vand.u32 %v315, 4294901760
        %v1352 = vsub.f32 %v315, %v1351
        %1353 = vmatmul.mubr.f32.gmra.mrb[0].mxu0 %v1352
        %v1354 = vpop.f32.mrb[0].mxu0
        %v1355 = vadd.f32 %v1093, %v1354
        %v1356 = vpop.f32.mrb[0].mxu0
        %v1357 = vand.u32 %v321, 4294901760
        %v1358 = vsub.f32 %v321, %v1357
        %1359 = vmatprep.mubr.f32.mxu0 %v1358
        %v1360 = vand.u32 %v320, 4294901760
        %v1361 = vsub.f32 %v320, %v1360
        %1362 = vmatmul.mubr.f32.gmra.mrb[0].mxu0 %v1361
        %v1363 = vpop.f32.mrb[0].mxu0
        %v1364 = vadd.f32 %v1100, %v1363
        %v1365 = vpop.f32.mrb[0].mxu0
        %1366 = vdwg.mxu0
        %1367 = vmatprep.subr.mxu0 0.0
        %v1368 = vand.u32 %v325, 4294901760
        %1369 = vmatpush1.msra.mxu0 %v1368
        %1370 = vmatprep.subr.mxu0 0.0
        %v1371 = vand.u32 %v326, 4294901760
        %1372 = vmatpush1.msra.mxu0 %v1371
        %1373 = vmatprep.subr.mxu0 0.0
        %v1374 = vand.u32 %v327, 4294901760
        %1375 = vmatpush1.msra.mxu0 %v1374
        %1376 = vmatprep.subr.mxu0 0.0
        %v1377 = vand.u32 %v328, 4294901760
        %1378 = vmatpush1.msra.mxu0 %v1377
        %1379 = vmatprep.subr.mxu0 0.0
        %v1380 = vand.u32 %v329, 4294901760
        %1381 = vmatpush1.msra.mxu0 %v1380
        %1382 = vmatprep.subr.mxu0 0.0
        %v1383 = vand.u32 %v330, 4294901760
        %1384 = vmatpush1.msra.mxu0 %v1383
        %1385 = vmatprep.subr.mxu0 0.0
        %v1386 = vand.u32 %v331, 4294901760
        %1387 = vmatpush1.msra.mxu0 %v1386
        %1388 = vmatprep.subr.mxu0 0.0
        %v1389 = vand.u32 %v332, 4294901760
        %1390 = vmatpush1.msra.mxu0 %v1389
        %1391 = vmatprep.subr.mxu0 0.0
        %v1392 = vand.u32 %v333, 4294901760
        %1393 = vmatpush1.msra.mxu0 %v1392
        %1394 = vmatprep.subr.mxu0 0.0
        %v1395 = vand.u32 %v334, 4294901760
        %1396 = vmatpush1.msra.mxu0 %v1395
        %1397 = vmatprep.subr.mxu0 0.0
        %v1398 = vand.u32 %v335, 4294901760
        %1399 = vmatpush1.msra.mxu0 %v1398
        %1400 = vmatprep.subr.mxu0 0.0
        %v1401 = vand.u32 %v336, 4294901760
        %1402 = vmatpush1.msra.mxu0 %v1401
        %1403 = vmatprep.subr.mxu0 0.0
        %v1404 = vand.u32 %v337, 4294901760
        %1405 = vmatpush1.msra.mxu0 %v1404
        %1406 = vmatprep.subr.mxu0 0.0
        %v1407 = vand.u32 %v338, 4294901760
        %1408 = vmatpush1.msra.mxu0 %v1407
        %1409 = vmatprep.subr.mxu0 0.0
        %v1410 = vand.u32 %v339, 4294901760
        %1411 = vmatpush1.msra.mxu0 %v1410
        %1412 = vmatprep.subr.mxu0 0.0
        %v1413 = vand.u32 %v340, 4294901760
        %1414 = vmatpush1.msra.mxu0 %v1413
        %1415 = vmatprep.subr.mxu0 0.0
        %v1416 = vand.u32 %v341, 4294901760
        %1417 = vmatpush1.msra.mxu0 %v1416
        %1418 = vmatprep.subr.mxu0 0.0
        %v1419 = vand.u32 %v342, 4294901760
        %1420 = vmatpush1.msra.mxu0 %v1419
        %1421 = vmatprep.subr.mxu0 0.0
        %v1422 = vand.u32 %v343, 4294901760
        %1423 = vmatpush1.msra.mxu0 %v1422
        %1424 = vmatprep.subr.mxu0 0.0
        %v1425 = vand.u32 %v344, 4294901760
        %1426 = vmatpush1.msra.mxu0 %v1425
        %1427 = vmatprep.subr.mxu0 0.0
        %v1428 = vand.u32 %v345, 4294901760
        %1429 = vmatpush1.msra.mxu0 %v1428
        %1430 = vmatprep.subr.mxu0 0.0
        %v1431 = vand.u32 %v346, 4294901760
        %1432 = vmatpush1.msra.mxu0 %v1431
        %1433 = vmatprep.subr.mxu0 0.0
        %v1434 = vand.u32 %v347, 4294901760
        %1435 = vmatpush1.msra.mxu0 %v1434
        %1436 = vmatprep.subr.mxu0 0.0
        %v1437 = vand.u32 %v348, 4294901760
        %1438 = vmatpush1.msra.mxu0 %v1437
        %1439 = vmatprep.subr.mxu0 0.0
        %v1440 = vand.u32 %v349, 4294901760
        %1441 = vmatpush1.msra.mxu0 %v1440
        %1442 = vmatprep.subr.mxu0 0.0
        %v1443 = vand.u32 %v350, 4294901760
        %1444 = vmatpush1.msra.mxu0 %v1443
        %1445 = vmatprep.subr.mxu0 0.0
        %v1446 = vand.u32 %v351, 4294901760
        %1447 = vmatpush1.msra.mxu0 %v1446
        %1448 = vmatprep.subr.mxu0 0.0
        %v1449 = vand.u32 %v352, 4294901760
        %1450 = vmatpush1.msra.mxu0 %v1449
        %1451 = vmatprep.subr.mxu0 0.0
        %v1452 = vand.u32 %v353, 4294901760
        %1453 = vmatpush1.msra.mxu0 %v1452
        %1454 = vmatprep.subr.mxu0 0.0
        %v1455 = vand.u32 %v354, 4294901760
        %1456 = vmatpush1.msra.mxu0 %v1455
        %1457 = vmatprep.subr.mxu0 0.0
        %v1458 = vand.u32 %v355, 4294901760
        %1459 = vmatpush1.msra.mxu0 %v1458
        %1460 = vmatprep.subr.mxu0 0.0
        %v1461 = vand.u32 %v356, 4294901760
        %1462 = vmatpush1.msra.mxu0 %v1461
        %v1463 = vand.u32 %v251, 4294901760
        %v1464 = vsub.f32 %v251, %v1463
        %v1465 = vand.u32 %v1464, 4294901760
        %1466 = vmatprep.mubr.f32.mxu0 %v1465
        %v1467 = vand.u32 %v250, 4294901760
        %v1468 = vsub.f32 %v250, %v1467
        %v1469 = vand.u32 %v1468, 4294901760
        %1470 = vmatmul.mubr.f32.gmra.mrb[0].mxu0 %v1469
        %v1471 = vpop.f32.mrb[0].mxu0
        %v1472 = vadd.f32 %v1238, %v1471
        %v1473 = vpop.f32.mrb[0].mxu0
        %v1474 = vand.u32 %v256, 4294901760
        %v1475 = vsub.f32 %v256, %v1474
        %v1476 = vand.u32 %v1475, 4294901760
        %1477 = vmatprep.mubr.f32.mxu0 %v1476
        %v1478 = vand.u32 %v255, 4294901760
        %v1479 = vsub.f32 %v255, %v1478
        %v1480 = vand.u32 %v1479, 4294901760
        %1481 = vmatmul.mubr.f32.gmra.mrb[0].mxu0 %v1480
        %v1482 = vpop.f32.mrb[0].mxu0
        %v1483 = vadd.f32 %v1247, %v1482
        %v1484 = vpop.f32.mrb[0].mxu0
        %v1485 = vand.u32 %v261, 4294901760
        %v1486 = vsub.f32 %v261, %v1485
        %v1487 = vand.u32 %v1486, 4294901760
        %1488 = vmatprep.mubr.f32.mxu0 %v1487
        %v1489 = vand.u32 %v260, 4294901760
        %v1490 = vsub.f32 %v260, %v1489
        %v1491 = vand.u32 %v1490, 4294901760
        %1492 = vmatmul.mubr.f32.gmra.mrb[0].mxu0 %v1491
        %v1493 = vpop.f32.mrb[0].mxu0
        %v1494 = vadd.f32 %v1256, %v1493
        %v1495 = vpop.f32.mrb[0].mxu0
        %v1496 = vand.u32 %v266, 4294901760
        %v1497 = vsub.f32 %v266, %v1496
        %v1498 = vand.u32 %v1497, 4294901760
        %1499 = vmatprep.mubr.f32.mxu0 %v1498
        %v1500 = vand.u32 %v265, 4294901760
        %v1501 = vsub.f32 %v265, %v1500
        %v1502 = vand.u32 %v1501, 4294901760
        %1503 = vmatmul.mubr.f32.gmra.mrb[0].mxu0 %v1502
        %v1504 = vpop.f32.mrb[0].mxu0
        %v1505 = vadd.f32 %v1265, %v1504
        %v1506 = vpop.f32.mrb[0].mxu0
        %v1507 = vand.u32 %v271, 4294901760
        %v1508 = vsub.f32 %v271, %v1507
        %v1509 = vand.u32 %v1508, 4294901760
        %1510 = vmatprep.mubr.f32.mxu0 %v1509
        %v1511 = vand.u32 %v270, 4294901760
        %v1512 = vsub.f32 %v270, %v1511
        %v1513 = vand.u32 %v1512, 4294901760
        %1514 = vmatmul.mubr.f32.gmra.mrb[0].mxu0 %v1513
        %v1515 = vpop.f32.mrb[0].mxu0
        %v1516 = vadd.f32 %v1274, %v1515
        %v1517 = vpop.f32.mrb[0].mxu0
        %v1518 = vand.u32 %v276, 4294901760
        %v1519 = vsub.f32 %v276, %v1518
        %v1520 = vand.u32 %v1519, 4294901760
        %1521 = vmatprep.mubr.f32.mxu0 %v1520
        %v1522 = vand.u32 %v275, 4294901760
        %v1523 = vsub.f32 %v275, %v1522
        %v1524 = vand.u32 %v1523, 4294901760
        %1525 = vmatmul.mubr.f32.gmra.mrb[0].mxu0 %v1524
        %v1526 = vpop.f32.mrb[0].mxu0
        %v1527 = vadd.f32 %v1283, %v1526
        %v1528 = vpop.f32.mrb[0].mxu0
        %v1529 = vand.u32 %v281, 4294901760
        %v1530 = vsub.f32 %v281, %v1529
        %v1531 = vand.u32 %v1530, 4294901760
        %1532 = vmatprep.mubr.f32.mxu0 %v1531
        %v1533 = vand.u32 %v280, 4294901760
        %v1534 = vsub.f32 %v280, %v1533
        %v1535 = vand.u32 %v1534, 4294901760
        %1536 = vmatmul.mubr.f32.gmra.mrb[0].mxu0 %v1535
        %v1537 = vpop.f32.mrb[0].mxu0
        %v1538 = vadd.f32 %v1292, %v1537
        %v1539 = vpop.f32.mrb[0].mxu0
        %v1540 = vand.u32 %v286, 4294901760
        %v1541 = vsub.f32 %v286, %v1540
        %v1542 = vand.u32 %v1541, 4294901760
        %1543 = vmatprep.mubr.f32.mxu0 %v1542
        %v1544 = vand.u32 %v285, 4294901760
        %v1545 = vsub.f32 %v285, %v1544
        %v1546 = vand.u32 %v1545, 4294901760
        %1547 = vmatmul.mubr.f32.gmra.mrb[0].mxu0 %v1546
        %v1548 = vpop.f32.mrb[0].mxu0
        %v1549 = vadd.f32 %v1301, %v1548
        %v1550 = vpop.f32.mrb[0].mxu0
        %v1551 = vand.u32 %v291, 4294901760
        %v1552 = vsub.f32 %v291, %v1551
        %v1553 = vand.u32 %v1552, 4294901760
        %1554 = vmatprep.mubr.f32.mxu0 %v1553
        %v1555 = vand.u32 %v290, 4294901760
        %v1556 = vsub.f32 %v290, %v1555
        %v1557 = vand.u32 %v1556, 4294901760
        %1558 = vmatmul.mubr.f32.gmra.mrb[0].mxu0 %v1557
        %v1559 = vpop.f32.mrb[0].mxu0
        %v1560 = vadd.f32 %v1310, %v1559
        %v1561 = vpop.f32.mrb[0].mxu0
        %v1562 = vand.u32 %v296, 4294901760
        %v1563 = vsub.f32 %v296, %v1562
        %v1564 = vand.u32 %v1563, 4294901760
        %1565 = vmatprep.mubr.f32.mxu0 %v1564
        %v1566 = vand.u32 %v295, 4294901760
        %v1567 = vsub.f32 %v295, %v1566
        %v1568 = vand.u32 %v1567, 4294901760
        %1569 = vmatmul.mubr.f32.gmra.mrb[0].mxu0 %v1568
        %v1570 = vpop.f32.mrb[0].mxu0
        %v1571 = vadd.f32 %v1319, %v1570
        %v1572 = vpop.f32.mrb[0].mxu0
        %v1573 = vand.u32 %v301, 4294901760
        %v1574 = vsub.f32 %v301, %v1573
        %v1575 = vand.u32 %v1574, 4294901760
        %1576 = vmatprep.mubr.f32.mxu0 %v1575
        %v1577 = vand.u32 %v300, 4294901760
        %v1578 = vsub.f32 %v300, %v1577
        %v1579 = vand.u32 %v1578, 4294901760
        %1580 = vmatmul.mubr.f32.gmra.mrb[0].mxu0 %v1579
        %v1581 = vpop.f32.mrb[0].mxu0
        %v1582 = vadd.f32 %v1328, %v1581
        %v1583 = vpop.f32.mrb[0].mxu0
        %v1584 = vand.u32 %v306, 4294901760
        %v1585 = vsub.f32 %v306, %v1584
        %v1586 = vand.u32 %v1585, 4294901760
        %1587 = vmatprep.mubr.f32.mxu0 %v1586
        %v1588 = vand.u32 %v305, 4294901760
        %v1589 = vsub.f32 %v305, %v1588
        %v1590 = vand.u32 %v1589, 4294901760
        %1591 = vmatmul.mubr.f32.gmra.mrb[0].mxu0 %v1590
        %v1592 = vpop.f32.mrb[0].mxu0
        %v1593 = vadd.f32 %v1337, %v1592
        %v1594 = vpop.f32.mrb[0].mxu0
        %v1595 = vand.u32 %v311, 4294901760
        %v1596 = vsub.f32 %v311, %v1595
        %v1597 = vand.u32 %v1596, 4294901760
        %1598 = vmatprep.mubr.f32.mxu0 %v1597
        %v1599 = vand.u32 %v310, 4294901760
        %v1600 = vsub.f32 %v310, %v1599
        %v1601 = vand.u32 %v1600, 4294901760
        %1602 = vmatmul.mubr.f32.gmra.mrb[0].mxu0 %v1601
        %v1603 = vpop.f32.mrb[0].mxu0
        %v1604 = vadd.f32 %v1346, %v1603
        %v1605 = vpop.f32.mrb[0].mxu0
        %v1606 = vand.u32 %v316, 4294901760
        %v1607 = vsub.f32 %v316, %v1606
        %v1608 = vand.u32 %v1607, 4294901760
        %1609 = vmatprep.mubr.f32.mxu0 %v1608
        %v1610 = vand.u32 %v315, 4294901760
        %v1611 = vsub.f32 %v315, %v1610
        %v1612 = vand.u32 %v1611, 4294901760
        %1613 = vmatmul.mubr.f32.gmra.mrb[0].mxu0 %v1612
        %v1614 = vpop.f32.mrb[0].mxu0
        %v1615 = vadd.f32 %v1355, %v1614
        %v1616 = vpop.f32.mrb[0].mxu0
        %v1617 = vand.u32 %v321, 4294901760
        %v1618 = vsub.f32 %v321, %v1617
        %v1619 = vand.u32 %v1618, 4294901760
        %1620 = vmatprep.mubr.f32.mxu0 %v1619
        %v1621 = vand.u32 %v320, 4294901760
        %v1622 = vsub.f32 %v320, %v1621
        %v1623 = vand.u32 %v1622, 4294901760
        %1624 = vmatmul.mubr.f32.gmra.mrb[0].mxu0 %v1623
        %v1625 = vpop.f32.mrb[0].mxu0
        %v1626 = vadd.f32 %v1364, %v1625
        %v1627 = vpop.f32.mrb[0].mxu0
        %1628 = vdwg.mxu0
        %1629 = vmatprep.subr.mxu0 0.0
        %v1630 = vand.u32 %v325, 4294901760
        %v1631 = vsub.f32 %v325, %v1630
        %v1632 = vand.u32 %v1631, 4294901760
        %1633 = vmatpush1.msra.mxu0 %v1632
        %1634 = vmatprep.subr.mxu0 0.0
        %v1635 = vand.u32 %v326, 4294901760
        %v1636 = vsub.f32 %v326, %v1635
        %v1637 = vand.u32 %v1636, 4294901760
        %1638 = vmatpush1.msra.mxu0 %v1637
        %1639 = vmatprep.subr.mxu0 0.0
        %v1640 = vand.u32 %v327, 4294901760
        %v1641 = vsub.f32 %v327, %v1640
        %v1642 = vand.u32 %v1641, 4294901760
        %1643 = vmatpush1.msra.mxu0 %v1642
        %1644 = vmatprep.subr.mxu0 0.0
        %v1645 = vand.u32 %v328, 4294901760
        %v1646 = vsub.f32 %v328, %v1645
        %v1647 = vand.u32 %v1646, 4294901760
        %1648 = vmatpush1.msra.mxu0 %v1647
        %1649 = vmatprep.subr.mxu0 0.0
        %v1650 = vand.u32 %v329, 4294901760
        %v1651 = vsub.f32 %v329, %v1650
        %v1652 = vand.u32 %v1651, 4294901760
        %1653 = vmatpush1.msra.mxu0 %v1652
        %1654 = vmatprep.subr.mxu0 0.0
        %v1655 = vand.u32 %v330, 4294901760
        %v1656 = vsub.f32 %v330, %v1655
        %v1657 = vand.u32 %v1656, 4294901760
        %1658 = vmatpush1.msra.mxu0 %v1657
        %1659 = vmatprep.subr.mxu0 0.0
        %v1660 = vand.u32 %v331, 4294901760
        %v1661 = vsub.f32 %v331, %v1660
        %v1662 = vand.u32 %v1661, 4294901760
        %1663 = vmatpush1.msra.mxu0 %v1662
        %1664 = vmatprep.subr.mxu0 0.0
        %v1665 = vand.u32 %v332, 4294901760
        %v1666 = vsub.f32 %v332, %v1665
        %v1667 = vand.u32 %v1666, 4294901760
        %1668 = vmatpush1.msra.mxu0 %v1667
        %1669 = vmatprep.subr.mxu0 0.0
        %v1670 = vand.u32 %v333, 4294901760
        %v1671 = vsub.f32 %v333, %v1670
        %v1672 = vand.u32 %v1671, 4294901760
        %1673 = vmatpush1.msra.mxu0 %v1672
        %1674 = vmatprep.subr.mxu0 0.0
        %v1675 = vand.u32 %v334, 4294901760
        %v1676 = vsub.f32 %v334, %v1675
        %v1677 = vand.u32 %v1676, 4294901760
        %1678 = vmatpush1.msra.mxu0 %v1677
        %1679 = vmatprep.subr.mxu0 0.0
        %v1680 = vand.u32 %v335, 4294901760
        %v1681 = vsub.f32 %v335, %v1680
        %v1682 = vand.u32 %v1681, 4294901760
        %1683 = vmatpush1.msra.mxu0 %v1682
        %1684 = vmatprep.subr.mxu0 0.0
        %v1685 = vand.u32 %v336, 4294901760
        %v1686 = vsub.f32 %v336, %v1685
        %v1687 = vand.u32 %v1686, 4294901760
        %1688 = vmatpush1.msra.mxu0 %v1687
        %1689 = vmatprep.subr.mxu0 0.0
        %v1690 = vand.u32 %v337, 4294901760
        %v1691 = vsub.f32 %v337, %v1690
        %v1692 = vand.u32 %v1691, 4294901760
        %1693 = vmatpush1.msra.mxu0 %v1692
        %1694 = vmatprep.subr.mxu0 0.0
        %v1695 = vand.u32 %v338, 4294901760
        %v1696 = vsub.f32 %v338, %v1695
        %v1697 = vand.u32 %v1696, 4294901760
        %1698 = vmatpush1.msra.mxu0 %v1697
        %1699 = vmatprep.subr.mxu0 0.0
        %v1700 = vand.u32 %v339, 4294901760
        %v1701 = vsub.f32 %v339, %v1700
        %v1702 = vand.u32 %v1701, 4294901760
        %1703 = vmatpush1.msra.mxu0 %v1702
        %1704 = vmatprep.subr.mxu0 0.0
        %v1705 = vand.u32 %v340, 4294901760
        %v1706 = vsub.f32 %v340, %v1705
        %v1707 = vand.u32 %v1706, 4294901760
        %1708 = vmatpush1.msra.mxu0 %v1707
        %1709 = vmatprep.subr.mxu0 0.0
        %v1710 = vand.u32 %v341, 4294901760
        %v1711 = vsub.f32 %v341, %v1710
        %v1712 = vand.u32 %v1711, 4294901760
        %1713 = vmatpush1.msra.mxu0 %v1712
        %1714 = vmatprep.subr.mxu0 0.0
        %v1715 = vand.u32 %v342, 4294901760
        %v1716 = vsub.f32 %v342, %v1715
        %v1717 = vand.u32 %v1716, 4294901760
        %1718 = vmatpush1.msra.mxu0 %v1717
        %1719 = vmatprep.subr.mxu0 0.0
        %v1720 = vand.u32 %v343, 4294901760
        %v1721 = vsub.f32 %v343, %v1720
        %v1722 = vand.u32 %v1721, 4294901760
        %1723 = vmatpush1.msra.mxu0 %v1722
        %1724 = vmatprep.subr.mxu0 0.0
        %v1725 = vand.u32 %v344, 4294901760
        %v1726 = vsub.f32 %v344, %v1725
        %v1727 = vand.u32 %v1726, 4294901760
        %1728 = vmatpush1.msra.mxu0 %v1727
        %1729 = vmatprep.subr.mxu0 0.0
        %v1730 = vand.u32 %v345, 4294901760
        %v1731 = vsub.f32 %v345, %v1730
        %v1732 = vand.u32 %v1731, 4294901760
        %1733 = vmatpush1.msra.mxu0 %v1732
        %1734 = vmatprep.subr.mxu0 0.0
        %v1735 = vand.u32 %v346, 4294901760
        %v1736 = vsub.f32 %v346, %v1735
        %v1737 = vand.u32 %v1736, 4294901760
        %1738 = vmatpush1.msra.mxu0 %v1737
        %1739 = vmatprep.subr.mxu0 0.0
        %v1740 = vand.u32 %v347, 4294901760
        %v1741 = vsub.f32 %v347, %v1740
        %v1742 = vand.u32 %v1741, 4294901760
        %1743 = vmatpush1.msra.mxu0 %v1742
        %1744 = vmatprep.subr.mxu0 0.0
        %v1745 = vand.u32 %v348, 4294901760
        %v1746 = vsub.f32 %v348, %v1745
        %v1747 = vand.u32 %v1746, 4294901760
        %1748 = vmatpush1.msra.mxu0 %v1747
        %1749 = vmatprep.subr.mxu0 0.0
        %v1750 = vand.u32 %v349, 4294901760
        %v1751 = vsub.f32 %v349, %v1750
        %v1752 = vand.u32 %v1751, 4294901760
        %1753 = vmatpush1.msra.mxu0 %v1752
        %1754 = vmatprep.subr.mxu0 0.0
        %v1755 = vand.u32 %v350, 4294901760
        %v1756 = vsub.f32 %v350, %v1755
        %v1757 = vand.u32 %v1756, 4294901760
        %1758 = vmatpush1.msra.mxu0 %v1757
        %1759 = vmatprep.subr.mxu0 0.0
        %v1760 = vand.u32 %v351, 4294901760
        %v1761 = vsub.f32 %v351, %v1760
        %v1762 = vand.u32 %v1761, 4294901760
        %1763 = vmatpush1.msra.mxu0 %v1762
        %1764 = vmatprep.subr.mxu0 0.0
        %v1765 = vand.u32 %v352, 4294901760
        %v1766 = vsub.f32 %v352, %v1765
        %v1767 = vand.u32 %v1766, 4294901760
        %1768 = vmatpush1.msra.mxu0 %v1767
        %1769 = vmatprep.subr.mxu0 0.0
        %v1770 = vand.u32 %v353, 4294901760
        %v1771 = vsub.f32 %v353, %v1770
        %v1772 = vand.u32 %v1771, 4294901760
        %1773 = vmatpush1.msra.mxu0 %v1772
        %1774 = vmatprep.subr.mxu0 0.0
        %v1775 = vand.u32 %v354, 4294901760
        %v1776 = vsub.f32 %v354, %v1775
        %v1777 = vand.u32 %v1776, 4294901760
        %1778 = vmatpush1.msra.mxu0 %v1777
        %1779 = vmatprep.subr.mxu0 0.0
        %v1780 = vand.u32 %v355, 4294901760
        %v1781 = vsub.f32 %v355, %v1780
        %v1782 = vand.u32 %v1781, 4294901760
        %1783 = vmatpush1.msra.mxu0 %v1782
        %1784 = vmatprep.subr.mxu0 0.0
        %v1785 = vand.u32 %v356, 4294901760
        %v1786 = vsub.f32 %v356, %v1785
        %v1787 = vand.u32 %v1786, 4294901760
        %1788 = vmatpush1.msra.mxu0 %v1787
        %v1789 = vand.u32 %v251, 4294901760
        %1790 = vmatprep.mubr.f32.mxu0 %v1789
        %v1791 = vand.u32 %v250, 4294901760
        %1792 = vmatmul.mubr.f32.gmra.mrb[0].mxu0 %v1791
        %v1793 = vpop.f32.mrb[0].mxu0
        %v1794 = vadd.f32 %v1472, %v1793
        %v1795 = vpop.f32.mrb[0].mxu0
        %v1796 = vand.u32 %v256, 4294901760
        %1797 = vmatprep.mubr.f32.mxu0 %v1796
        %v1798 = vand.u32 %v255, 4294901760
        %1799 = vmatmul.mubr.f32.gmra.mrb[0].mxu0 %v1798
        %v1800 = vpop.f32.mrb[0].mxu0
        %v1801 = vadd.f32 %v1483, %v1800
        %v1802 = vpop.f32.mrb[0].mxu0
        %v1803 = vand.u32 %v261, 4294901760
        %1804 = vmatprep.mubr.f32.mxu0 %v1803
        %v1805 = vand.u32 %v260, 4294901760
        %1806 = vmatmul.mubr.f32.gmra.mrb[0].mxu0 %v1805
        %v1807 = vpop.f32.mrb[0].mxu0
        %v1808 = vadd.f32 %v1494, %v1807
        %v1809 = vpop.f32.mrb[0].mxu0
        %v1810 = vand.u32 %v266, 4294901760
        %1811 = vmatprep.mubr.f32.mxu0 %v1810
        %v1812 = vand.u32 %v265, 4294901760
        %1813 = vmatmul.mubr.f32.gmra.mrb[0].mxu0 %v1812
        %v1814 = vpop.f32.mrb[0].mxu0
        %v1815 = vadd.f32 %v1505, %v1814
        %v1816 = vpop.f32.mrb[0].mxu0
        %v1817 = vand.u32 %v271, 4294901760
        %1818 = vmatprep.mubr.f32.mxu0 %v1817
        %v1819 = vand.u32 %v270, 4294901760
        %1820 = vmatmul.mubr.f32.gmra.mrb[0].mxu0 %v1819
        %v1821 = vpop.f32.mrb[0].mxu0
        %v1822 = vadd.f32 %v1516, %v1821
        %v1823 = vpop.f32.mrb[0].mxu0
        %v1824 = vand.u32 %v276, 4294901760
        %1825 = vmatprep.mubr.f32.mxu0 %v1824
        %v1826 = vand.u32 %v275, 4294901760
        %1827 = vmatmul.mubr.f32.gmra.mrb[0].mxu0 %v1826
        %v1828 = vpop.f32.mrb[0].mxu0
        %v1829 = vadd.f32 %v1527, %v1828
        %v1830 = vpop.f32.mrb[0].mxu0
        %v1831 = vand.u32 %v281, 4294901760
        %1832 = vmatprep.mubr.f32.mxu0 %v1831
        %v1833 = vand.u32 %v280, 4294901760
        %1834 = vmatmul.mubr.f32.gmra.mrb[0].mxu0 %v1833
        %v1835 = vpop.f32.mrb[0].mxu0
        %v1836 = vadd.f32 %v1538, %v1835
        %v1837 = vpop.f32.mrb[0].mxu0
        %v1838 = vand.u32 %v286, 4294901760
        %1839 = vmatprep.mubr.f32.mxu0 %v1838
        %v1840 = vand.u32 %v285, 4294901760
        %1841 = vmatmul.mubr.f32.gmra.mrb[0].mxu0 %v1840
        %v1842 = vpop.f32.mrb[0].mxu0
        %v1843 = vadd.f32 %v1549, %v1842
        %v1844 = vpop.f32.mrb[0].mxu0
        %v1845 = vand.u32 %v291, 4294901760
        %1846 = vmatprep.mubr.f32.mxu0 %v1845
        %v1847 = vand.u32 %v290, 4294901760
        %1848 = vmatmul.mubr.f32.gmra.mrb[0].mxu0 %v1847
        %v1849 = vpop.f32.mrb[0].mxu0
        %v1850 = vadd.f32 %v1560, %v1849
        %v1851 = vpop.f32.mrb[0].mxu0
        %v1852 = vand.u32 %v296, 4294901760
        %1853 = vmatprep.mubr.f32.mxu0 %v1852
        %v1854 = vand.u32 %v295, 4294901760
        %1855 = vmatmul.mubr.f32.gmra.mrb[0].mxu0 %v1854
        %v1856 = vpop.f32.mrb[0].mxu0
        %v1857 = vadd.f32 %v1571, %v1856
        %v1858 = vpop.f32.mrb[0].mxu0
        %v1859 = vand.u32 %v301, 4294901760
        %1860 = vmatprep.mubr.f32.mxu0 %v1859
        %v1861 = vand.u32 %v300, 4294901760
        %1862 = vmatmul.mubr.f32.gmra.mrb[0].mxu0 %v1861
        %v1863 = vpop.f32.mrb[0].mxu0
        %v1864 = vadd.f32 %v1582, %v1863
        %v1865 = vpop.f32.mrb[0].mxu0
        %v1866 = vand.u32 %v306, 4294901760
        %1867 = vmatprep.mubr.f32.mxu0 %v1866
        %v1868 = vand.u32 %v305, 4294901760
        %1869 = vmatmul.mubr.f32.gmra.mrb[0].mxu0 %v1868
        %v1870 = vpop.f32.mrb[0].mxu0
        %v1871 = vadd.f32 %v1593, %v1870
        %v1872 = vpop.f32.mrb[0].mxu0
        %v1873 = vand.u32 %v311, 4294901760
        %1874 = vmatprep.mubr.f32.mxu0 %v1873
        %v1875 = vand.u32 %v310, 4294901760
        %1876 = vmatmul.mubr.f32.gmra.mrb[0].mxu0 %v1875
        %v1877 = vpop.f32.mrb[0].mxu0
        %v1878 = vadd.f32 %v1604, %v1877
        %v1879 = vpop.f32.mrb[0].mxu0
        %v1880 = vand.u32 %v316, 4294901760
        %1881 = vmatprep.mubr.f32.mxu0 %v1880
        %v1882 = vand.u32 %v315, 4294901760
        %1883 = vmatmul.mubr.f32.gmra.mrb[0].mxu0 %v1882
        %v1884 = vpop.f32.mrb[0].mxu0
        %v1885 = vadd.f32 %v1615, %v1884
        %v1886 = vpop.f32.mrb[0].mxu0
        %v1887 = vand.u32 %v321, 4294901760
        %1888 = vmatprep.mubr.f32.mxu0 %v1887
        %v1889 = vand.u32 %v320, 4294901760
        %1890 = vmatmul.mubr.f32.gmra.mrb[0].mxu0 %v1889
        %v1891 = vpop.f32.mrb[0].mxu0
        %v1892 = vadd.f32 %v1626, %v1891
        %v1893 = vpop.f32.mrb[0].mxu0
        %1894 = vdwg.mxu0
        %1895 = vmatprep.subr.mxu0 0.0
        %v1896 = vand.u32 %v325, 4294901760
        %1897 = vmatpush1.msra.mxu0 %v1896
        %1898 = vmatprep.subr.mxu0 0.0
        %v1899 = vand.u32 %v326, 4294901760
        %1900 = vmatpush1.msra.mxu0 %v1899
        %1901 = vmatprep.subr.mxu0 0.0
        %v1902 = vand.u32 %v327, 4294901760
        %1903 = vmatpush1.msra.mxu0 %v1902
        %1904 = vmatprep.subr.mxu0 0.0
        %v1905 = vand.u32 %v328, 4294901760
        %1906 = vmatpush1.msra.mxu0 %v1905
        %1907 = vmatprep.subr.mxu0 0.0
        %v1908 = vand.u32 %v329, 4294901760
        %1909 = vmatpush1.msra.mxu0 %v1908
        %1910 = vmatprep.subr.mxu0 0.0
        %v1911 = vand.u32 %v330, 4294901760
        %1912 = vmatpush1.msra.mxu0 %v1911
        %1913 = vmatprep.subr.mxu0 0.0
        %v1914 = vand.u32 %v331, 4294901760
        %1915 = vmatpush1.msra.mxu0 %v1914
        %1916 = vmatprep.subr.mxu0 0.0
        %v1917 = vand.u32 %v332, 4294901760
        %1918 = vmatpush1.msra.mxu0 %v1917
        %1919 = vmatprep.subr.mxu0 0.0
        %v1920 = vand.u32 %v333, 4294901760
        %1921 = vmatpush1.msra.mxu0 %v1920
        %1922 = vmatprep.subr.mxu0 0.0
        %v1923 = vand.u32 %v334, 4294901760
        %1924 = vmatpush1.msra.mxu0 %v1923
        %1925 = vmatprep.subr.mxu0 0.0
        %v1926 = vand.u32 %v335, 4294901760
        %1927 = vmatpush1.msra.mxu0 %v1926
        %1928 = vmatprep.subr.mxu0 0.0
        %v1929 = vand.u32 %v336, 4294901760
        %1930 = vmatpush1.msra.mxu0 %v1929
        %1931 = vmatprep.subr.mxu0 0.0
        %v1932 = vand.u32 %v337, 4294901760
        %1933 = vmatpush1.msra.mxu0 %v1932
        %1934 = vmatprep.subr.mxu0 0.0
        %v1935 = vand.u32 %v338, 4294901760
        %1936 = vmatpush1.msra.mxu0 %v1935
        %1937 = vmatprep.subr.mxu0 0.0
        %v1938 = vand.u32 %v339, 4294901760
        %1939 = vmatpush1.msra.mxu0 %v1938
        %1940 = vmatprep.subr.mxu0 0.0
        %v1941 = vand.u32 %v340, 4294901760
        %1942 = vmatpush1.msra.mxu0 %v1941
        %1943 = vmatprep.subr.mxu0 0.0
        %v1944 = vand.u32 %v341, 4294901760
        %1945 = vmatpush1.msra.mxu0 %v1944
        %1946 = vmatprep.subr.mxu0 0.0
        %v1947 = vand.u32 %v342, 4294901760
        %1948 = vmatpush1.msra.mxu0 %v1947
        %1949 = vmatprep.subr.mxu0 0.0
        %v1950 = vand.u32 %v343, 4294901760
        %1951 = vmatpush1.msra.mxu0 %v1950
        %1952 = vmatprep.subr.mxu0 0.0
        %v1953 = vand.u32 %v344, 4294901760
        %1954 = vmatpush1.msra.mxu0 %v1953
        %1955 = vmatprep.subr.mxu0 0.0
        %v1956 = vand.u32 %v345, 4294901760
        %1957 = vmatpush1.msra.mxu0 %v1956
        %1958 = vmatprep.subr.mxu0 0.0
        %v1959 = vand.u32 %v346, 4294901760
        %1960 = vmatpush1.msra.mxu0 %v1959
        %1961 = vmatprep.subr.mxu0 0.0
        %v1962 = vand.u32 %v347, 4294901760
        %1963 = vmatpush1.msra.mxu0 %v1962
        %1964 = vmatprep.subr.mxu0 0.0
        %v1965 = vand.u32 %v348, 4294901760
        %1966 = vmatpush1.msra.mxu0 %v1965
        %1967 = vmatprep.subr.mxu0 0.0
        %v1968 = vand.u32 %v349, 4294901760
        %1969 = vmatpush1.msra.mxu0 %v1968
        %1970 = vmatprep.subr.mxu0 0.0
        %v1971 = vand.u32 %v350, 4294901760
        %1972 = vmatpush1.msra.mxu0 %v1971
        %1973 = vmatprep.subr.mxu0 0.0
        %v1974 = vand.u32 %v351, 4294901760
        %1975 = vmatpush1.msra.mxu0 %v1974
        %1976 = vmatprep.subr.mxu0 0.0
        %v1977 = vand.u32 %v352, 4294901760
        %1978 = vmatpush1.msra.mxu0 %v1977
        %1979 = vmatprep.subr.mxu0 0.0
        %v1980 = vand.u32 %v353, 4294901760
        %1981 = vmatpush1.msra.mxu0 %v1980
        %1982 = vmatprep.subr.mxu0 0.0
        %v1983 = vand.u32 %v354, 4294901760
        %1984 = vmatpush1.msra.mxu0 %v1983
        %1985 = vmatprep.subr.mxu0 0.0
        %v1986 = vand.u32 %v355, 4294901760
        %1987 = vmatpush1.msra.mxu0 %v1986
        %1988 = vmatprep.subr.mxu0 0.0
        %v1989 = vand.u32 %v356, 4294901760
        %1990 = vmatpush1.msra.mxu0 %v1989
        %v1991 = vand.u32 %v251, 4294901760
        %1992 = vmatprep.mubr.f32.mxu0 %v1991
        %v1993 = vand.u32 %v250, 4294901760
        %1994 = vmatmul.mubr.f32.gmra.mrb[0].mxu0 %v1993
        %v1995 = vpop.f32.mrb[0].mxu0
        %v1996 = vadd.f32 %v1794, %v1995
        %v1997 = vpop.f32.mrb[0].mxu0
        %v1998 = vand.u32 %v256, 4294901760
        %1999 = vmatprep.mubr.f32.mxu0 %v1998
        %v2000 = vand.u32 %v255, 4294901760
        %2001 = vmatmul.mubr.f32.gmra.mrb[0].mxu0 %v2000
        %v2002 = vpop.f32.mrb[0].mxu0
        %v2003 = vadd.f32 %v1801, %v2002
        %v2004 = vpop.f32.mrb[0].mxu0
        %v2005 = vand.u32 %v261, 4294901760
        %2006 = vmatprep.mubr.f32.mxu0 %v2005
        %v2007 = vand.u32 %v260, 4294901760
        %2008 = vmatmul.mubr.f32.gmra.mrb[0].mxu0 %v2007
        %v2009 = vpop.f32.mrb[0].mxu0
        %v2010 = vadd.f32 %v1808, %v2009
        %v2011 = vpop.f32.mrb[0].mxu0
        %v2012 = vand.u32 %v266, 4294901760
        %2013 = vmatprep.mubr.f32.mxu0 %v2012
        %v2014 = vand.u32 %v265, 4294901760
        %2015 = vmatmul.mubr.f32.gmra.mrb[0].mxu0 %v2014
        %v2016 = vpop.f32.mrb[0].mxu0
        %v2017 = vadd.f32 %v1815, %v2016
        %v2018 = vpop.f32.mrb[0].mxu0
        %v2019 = vand.u32 %v271, 4294901760
        %2020 = vmatprep.mubr.f32.mxu0 %v2019
        %v2021 = vand.u32 %v270, 4294901760
        %2022 = vmatmul.mubr.f32.gmra.mrb[0].mxu0 %v2021
        %v2023 = vpop.f32.mrb[0].mxu0
        %v2024 = vadd.f32 %v1822, %v2023
        %v2025 = vpop.f32.mrb[0].mxu0
        %v2026 = vand.u32 %v276, 4294901760
        %2027 = vmatprep.mubr.f32.mxu0 %v2026
        %v2028 = vand.u32 %v275, 4294901760
        %2029 = vmatmul.mubr.f32.gmra.mrb[0].mxu0 %v2028
        %v2030 = vpop.f32.mrb[0].mxu0
        %v2031 = vadd.f32 %v1829, %v2030
        %v2032 = vpop.f32.mrb[0].mxu0
        %v2033 = vand.u32 %v281, 4294901760
        %2034 = vmatprep.mubr.f32.mxu0 %v2033
        %v2035 = vand.u32 %v280, 4294901760
        %2036 = vmatmul.mubr.f32.gmra.mrb[0].mxu0 %v2035
        %v2037 = vpop.f32.mrb[0].mxu0
        %v2038 = vadd.f32 %v1836, %v2037
        %v2039 = vpop.f32.mrb[0].mxu0
        %v2040 = vand.u32 %v286, 4294901760
        %2041 = vmatprep.mubr.f32.mxu0 %v2040
        %v2042 = vand.u32 %v285, 4294901760
        %2043 = vmatmul.mubr.f32.gmra.mrb[0].mxu0 %v2042
        %v2044 = vpop.f32.mrb[0].mxu0
        %v2045 = vadd.f32 %v1843, %v2044
        %v2046 = vpop.f32.mrb[0].mxu0
        %v2047 = vand.u32 %v291, 4294901760
        %2048 = vmatprep.mubr.f32.mxu0 %v2047
        %v2049 = vand.u32 %v290, 4294901760
        %2050 = vmatmul.mubr.f32.gmra.mrb[0].mxu0 %v2049
        %v2051 = vpop.f32.mrb[0].mxu0
        %v2052 = vadd.f32 %v1850, %v2051
        %v2053 = vpop.f32.mrb[0].mxu0
        %v2054 = vand.u32 %v296, 4294901760
        %2055 = vmatprep.mubr.f32.mxu0 %v2054
        %v2056 = vand.u32 %v295, 4294901760
        %2057 = vmatmul.mubr.f32.gmra.mrb[0].mxu0 %v2056
        %v2058 = vpop.f32.mrb[0].mxu0
        %v2059 = vadd.f32 %v1857, %v2058
        %v2060 = vpop.f32.mrb[0].mxu0
        %v2061 = vand.u32 %v301, 4294901760
        %2062 = vmatprep.mubr.f32.mxu0 %v2061
        %v2063 = vand.u32 %v300, 4294901760
        %2064 = vmatmul.mubr.f32.gmra.mrb[0].mxu0 %v2063
        %v2065 = vpop.f32.mrb[0].mxu0
        %v2066 = vadd.f32 %v1864, %v2065
        %v2067 = vpop.f32.mrb[0].mxu0
        %v2068 = vand.u32 %v306, 4294901760
        %2069 = vmatprep.mubr.f32.mxu0 %v2068
        %v2070 = vand.u32 %v305, 4294901760
        %2071 = vmatmul.mubr.f32.gmra.mrb[0].mxu0 %v2070
        %v2072 = vpop.f32.mrb[0].mxu0
        %v2073 = vadd.f32 %v1871, %v2072
        %v2074 = vpop.f32.mrb[0].mxu0
        %v2075 = vand.u32 %v311, 4294901760
        %2076 = vmatprep.mubr.f32.mxu0 %v2075
        %v2077 = vand.u32 %v310, 4294901760
        %2078 = vmatmul.mubr.f32.gmra.mrb[0].mxu0 %v2077
        %v2079 = vpop.f32.mrb[0].mxu0
        %v2080 = vadd.f32 %v1878, %v2079
        %v2081 = vpop.f32.mrb[0].mxu0
        %v2082 = vand.u32 %v316, 4294901760
        %2083 = vmatprep.mubr.f32.mxu0 %v2082
        %v2084 = vand.u32 %v315, 4294901760
        %2085 = vmatmul.mubr.f32.gmra.mrb[0].mxu0 %v2084
        %v2086 = vpop.f32.mrb[0].mxu0
        %v2087 = vadd.f32 %v1885, %v2086
        %v2088 = vpop.f32.mrb[0].mxu0
        %v2089 = vand.u32 %v321, 4294901760
        %2090 = vmatprep.mubr.f32.mxu0 %v2089
        %v2091 = vand.u32 %v320, 4294901760
        %2092 = vmatmul.mubr.f32.gmra.mrb[0].mxu0 %v2091
        %v2093 = vpop.f32.mrb[0].mxu0
        %v2094 = vadd.f32 %v1892, %v2093
        %v2095 = vpop.f32.mrb[0].mxu0
        %2096 = vdwg.mxu0
        %2097 = vmatprep.subr.mxu0 0.0
        %v2098 = vand.u32 %v357, 4294901760
        %2099 = vmatpush1.msra.mxu0 %v2098
        %2100 = vmatprep.subr.mxu0 0.0
        %v2101 = vand.u32 %v358, 4294901760
        %2102 = vmatpush1.msra.mxu0 %v2101
        %2103 = vmatprep.subr.mxu0 0.0
        %v2104 = vand.u32 %v359, 4294901760
        %2105 = vmatpush1.msra.mxu0 %v2104
        %2106 = vmatprep.subr.mxu0 0.0
        %v2107 = vand.u32 %v360, 4294901760
        %2108 = vmatpush1.msra.mxu0 %v2107
        %2109 = vmatprep.subr.mxu0 0.0
        %v2110 = vand.u32 %v361, 4294901760
        %2111 = vmatpush1.msra.mxu0 %v2110
        %2112 = vmatprep.subr.mxu0 0.0
        %v2113 = vand.u32 %v362, 4294901760
        %2114 = vmatpush1.msra.mxu0 %v2113
        %2115 = vmatprep.subr.mxu0 0.0
        %v2116 = vand.u32 %v363, 4294901760
        %2117 = vmatpush1.msra.mxu0 %v2116
        %2118 = vmatprep.subr.mxu0 0.0
        %v2119 = vand.u32 %v364, 4294901760
        %2120 = vmatpush1.msra.mxu0 %v2119
        %2121 = vmatprep.subr.mxu0 0.0
        %v2122 = vand.u32 %v365, 4294901760
        %2123 = vmatpush1.msra.mxu0 %v2122
        %2124 = vmatprep.subr.mxu0 0.0
        %v2125 = vand.u32 %v366, 4294901760
        %2126 = vmatpush1.msra.mxu0 %v2125
        %2127 = vmatprep.subr.mxu0 0.0
        %v2128 = vand.u32 %v367, 4294901760
        %2129 = vmatpush1.msra.mxu0 %v2128
        %2130 = vmatprep.subr.mxu0 0.0
        %v2131 = vand.u32 %v368, 4294901760
        %2132 = vmatpush1.msra.mxu0 %v2131
        %2133 = vmatprep.subr.mxu0 0.0
        %v2134 = vand.u32 %v369, 4294901760
        %2135 = vmatpush1.msra.mxu0 %v2134
        %2136 = vmatprep.subr.mxu0 0.0
        %v2137 = vand.u32 %v370, 4294901760
        %2138 = vmatpush1.msra.mxu0 %v2137
        %2139 = vmatprep.subr.mxu0 0.0
        %v2140 = vand.u32 %v371, 4294901760
        %2141 = vmatpush1.msra.mxu0 %v2140
        %2142 = vmatprep.subr.mxu0 0.0
        %v2143 = vand.u32 %v372, 4294901760
        %2144 = vmatpush1.msra.mxu0 %v2143
        %2145 = vmatprep.subr.mxu0 0.0
        %v2146 = vand.u32 %v373, 4294901760
        %2147 = vmatpush1.msra.mxu0 %v2146
        %2148 = vmatprep.subr.mxu0 0.0
        %v2149 = vand.u32 %v374, 4294901760
        %2150 = vmatpush1.msra.mxu0 %v2149
        %2151 = vmatprep.subr.mxu0 0.0
        %v2152 = vand.u32 %v375, 4294901760
        %2153 = vmatpush1.msra.mxu0 %v2152
        %2154 = vmatprep.subr.mxu0 0.0
        %v2155 = vand.u32 %v376, 4294901760
        %2156 = vmatpush1.msra.mxu0 %v2155
        %2157 = vmatprep.subr.mxu0 0.0
        %v2158 = vand.u32 %v377, 4294901760
        %2159 = vmatpush1.msra.mxu0 %v2158
        %2160 = vmatprep.subr.mxu0 0.0
        %v2161 = vand.u32 %v378, 4294901760
        %2162 = vmatpush1.msra.mxu0 %v2161
        %2163 = vmatprep.subr.mxu0 0.0
        %v2164 = vand.u32 %v379, 4294901760
        %2165 = vmatpush1.msra.mxu0 %v2164
        %2166 = vmatprep.subr.mxu0 0.0
        %v2167 = vand.u32 %v380, 4294901760
        %2168 = vmatpush1.msra.mxu0 %v2167
        %2169 = vmatprep.subr.mxu0 0.0
        %v2170 = vand.u32 %v381, 4294901760
        %2171 = vmatpush1.msra.mxu0 %v2170
        %2172 = vmatprep.subr.mxu0 0.0
        %v2173 = vand.u32 %v382, 4294901760
        %2174 = vmatpush1.msra.mxu0 %v2173
        %2175 = vmatprep.subr.mxu0 0.0
        %v2176 = vand.u32 %v383, 4294901760
        %2177 = vmatpush1.msra.mxu0 %v2176
        %2178 = vmatprep.subr.mxu0 0.0
        %v2179 = vand.u32 %v384, 4294901760
        %2180 = vmatpush1.msra.mxu0 %v2179
        %2181 = vmatprep.subr.mxu0 0.0
        %v2182 = vand.u32 %v385, 4294901760
        %2183 = vmatpush1.msra.mxu0 %v2182
        %2184 = vmatprep.subr.mxu0 0.0
        %v2185 = vand.u32 %v386, 4294901760
        %2186 = vmatpush1.msra.mxu0 %v2185
        %2187 = vmatprep.subr.mxu0 0.0
        %v2188 = vand.u32 %v387, 4294901760
        %2189 = vmatpush1.msra.mxu0 %v2188
        %2190 = vmatprep.subr.mxu0 0.0
        %v2191 = vand.u32 %v388, 4294901760
        %2192 = vmatpush1.msra.mxu0 %v2191
        %v2193 = vand.u32 %v253, 4294901760
        %v2194 = vsub.f32 %v253, %v2193
        %v2195 = vand.u32 %v2194, 4294901760
        %v2196 = vsub.f32 %v2194, %v2195
        %v2197 = vand.u32 %v2196, 4294901760
        %2198 = vmatprep.mubr.f32.mxu0 %v2197
        %v2199 = vand.u32 %v252, 4294901760
        %v2200 = vsub.f32 %v252, %v2199
        %v2201 = vand.u32 %v2200, 4294901760
        %v2202 = vsub.f32 %v2200, %v2201
        %v2203 = vand.u32 %v2202, 4294901760
        %2204 = vmatmul.mubr.f32.gmra.mrb[0].mxu0 %v2203
        %v2205 = vpop.f32.mrb[0].mxu0
        %v2206 = vadd.f32 %v1996, %v2205
        %v2207 = vpop.f32.mrb[0].mxu0
        %v2208 = vand.u32 %v258, 4294901760
        %v2209 = vsub.f32 %v258, %v2208
        %v2210 = vand.u32 %v2209, 4294901760
        %v2211 = vsub.f32 %v2209, %v2210
        %v2212 = vand.u32 %v2211, 4294901760
        %2213 = vmatprep.mubr.f32.mxu0 %v2212
        %v2214 = vand.u32 %v257, 4294901760
        %v2215 = vsub.f32 %v257, %v2214
        %v2216 = vand.u32 %v2215, 4294901760
        %v2217 = vsub.f32 %v2215, %v2216
        %v2218 = vand.u32 %v2217, 4294901760
        %2219 = vmatmul.mubr.f32.gmra.mrb[0].mxu0 %v2218
        %v2220 = vpop.f32.mrb[0].mxu0
        %v2221 = vadd.f32 %v2003, %v2220
        %v2222 = vpop.f32.mrb[0].mxu0
        %v2223 = vand.u32 %v263, 4294901760
        %v2224 = vsub.f32 %v263, %v2223
        %v2225 = vand.u32 %v2224, 4294901760
        %v2226 = vsub.f32 %v2224, %v2225
        %v2227 = vand.u32 %v2226, 4294901760
        %2228 = vmatprep.mubr.f32.mxu0 %v2227
        %v2229 = vand.u32 %v262, 4294901760
        %v2230 = vsub.f32 %v262, %v2229
        %v2231 = vand.u32 %v2230, 4294901760
        %v2232 = vsub.f32 %v2230, %v2231
        %v2233 = vand.u32 %v2232, 4294901760
        %2234 = vmatmul.mubr.f32.gmra.mrb[0].mxu0 %v2233
        %v2235 = vpop.f32.mrb[0].mxu0
        %v2236 = vadd.f32 %v2010, %v2235
        %v2237 = vpop.f32.mrb[0].mxu0
        %v2238 = vand.u32 %v268, 4294901760
        %v2239 = vsub.f32 %v268, %v2238
        %v2240 = vand.u32 %v2239, 4294901760
        %v2241 = vsub.f32 %v2239, %v2240
        %v2242 = vand.u32 %v2241, 4294901760
        %2243 = vmatprep.mubr.f32.mxu0 %v2242
        %v2244 = vand.u32 %v267, 4294901760
        %v2245 = vsub.f32 %v267, %v2244
        %v2246 = vand.u32 %v2245, 4294901760
        %v2247 = vsub.f32 %v2245, %v2246
        %v2248 = vand.u32 %v2247, 4294901760
        %2249 = vmatmul.mubr.f32.gmra.mrb[0].mxu0 %v2248
        %v2250 = vpop.f32.mrb[0].mxu0
        %v2251 = vadd.f32 %v2017, %v2250
        %v2252 = vpop.f32.mrb[0].mxu0
        %v2253 = vand.u32 %v273, 4294901760
        %v2254 = vsub.f32 %v273, %v2253
        %v2255 = vand.u32 %v2254, 4294901760
        %v2256 = vsub.f32 %v2254, %v2255
        %v2257 = vand.u32 %v2256, 4294901760
        %2258 = vmatprep.mubr.f32.mxu0 %v2257
        %v2259 = vand.u32 %v272, 4294901760
        %v2260 = vsub.f32 %v272, %v2259
        %v2261 = vand.u32 %v2260, 4294901760
        %v2262 = vsub.f32 %v2260, %v2261
        %v2263 = vand.u32 %v2262, 4294901760
        %2264 = vmatmul.mubr.f32.gmra.mrb[0].mxu0 %v2263
        %v2265 = vpop.f32.mrb[0].mxu0
        %v2266 = vadd.f32 %v2024, %v2265
        %v2267 = vpop.f32.mrb[0].mxu0
        %v2268 = vand.u32 %v278, 4294901760
        %v2269 = vsub.f32 %v278, %v2268
        %v2270 = vand.u32 %v2269, 4294901760
        %v2271 = vsub.f32 %v2269, %v2270
        %v2272 = vand.u32 %v2271, 4294901760
        %2273 = vmatprep.mubr.f32.mxu0 %v2272
        %v2274 = vand.u32 %v277, 4294901760
        %v2275 = vsub.f32 %v277, %v2274
        %v2276 = vand.u32 %v2275, 4294901760
        %v2277 = vsub.f32 %v2275, %v2276
        %v2278 = vand.u32 %v2277, 4294901760
        %2279 = vmatmul.mubr.f32.gmra.mrb[0].mxu0 %v2278
        %v2280 = vpop.f32.mrb[0].mxu0
        %v2281 = vadd.f32 %v2031, %v2280
        %v2282 = vpop.f32.mrb[0].mxu0
        %v2283 = vand.u32 %v283, 4294901760
        %v2284 = vsub.f32 %v283, %v2283
        %v2285 = vand.u32 %v2284, 4294901760
        %v2286 = vsub.f32 %v2284, %v2285
        %v2287 = vand.u32 %v2286, 4294901760
        %2288 = vmatprep.mubr.f32.mxu0 %v2287
        %v2289 = vand.u32 %v282, 4294901760
        %v2290 = vsub.f32 %v282, %v2289
        %v2291 = vand.u32 %v2290, 4294901760
        %v2292 = vsub.f32 %v2290, %v2291
        %v2293 = vand.u32 %v2292, 4294901760
        %2294 = vmatmul.mubr.f32.gmra.mrb[0].mxu0 %v2293
        %v2295 = vpop.f32.mrb[0].mxu0
        %v2296 = vadd.f32 %v2038, %v2295
        %v2297 = vpop.f32.mrb[0].mxu0
        %v2298 = vand.u32 %v288, 4294901760
        %v2299 = vsub.f32 %v288, %v2298
        %v2300 = vand.u32 %v2299, 4294901760
        %v2301 = vsub.f32 %v2299, %v2300
        %v2302 = vand.u32 %v2301, 4294901760
        %2303 = vmatprep.mubr.f32.mxu0 %v2302
        %v2304 = vand.u32 %v287, 4294901760
        %v2305 = vsub.f32 %v287, %v2304
        %v2306 = vand.u32 %v2305, 4294901760
        %v2307 = vsub.f32 %v2305, %v2306
        %v2308 = vand.u32 %v2307, 4294901760
        %2309 = vmatmul.mubr.f32.gmra.mrb[0].mxu0 %v2308
        %v2310 = vpop.f32.mrb[0].mxu0
        %v2311 = vadd.f32 %v2045, %v2310
        %v2312 = vpop.f32.mrb[0].mxu0
        %v2313 = vand.u32 %v293, 4294901760
        %v2314 = vsub.f32 %v293, %v2313
        %v2315 = vand.u32 %v2314, 4294901760
        %v2316 = vsub.f32 %v2314, %v2315
        %v2317 = vand.u32 %v2316, 4294901760
        %2318 = vmatprep.mubr.f32.mxu0 %v2317
        %v2319 = vand.u32 %v292, 4294901760
        %v2320 = vsub.f32 %v292, %v2319
        %v2321 = vand.u32 %v2320, 4294901760
        %v2322 = vsub.f32 %v2320, %v2321
        %v2323 = vand.u32 %v2322, 4294901760
        %2324 = vmatmul.mubr.f32.gmra.mrb[0].mxu0 %v2323
        %v2325 = vpop.f32.mrb[0].mxu0
        %v2326 = vadd.f32 %v2052, %v2325
        %v2327 = vpop.f32.mrb[0].mxu0
        %v2328 = vand.u32 %v298, 4294901760
        %v2329 = vsub.f32 %v298, %v2328
        %v2330 = vand.u32 %v2329, 4294901760
        %v2331 = vsub.f32 %v2329, %v2330
        %v2332 = vand.u32 %v2331, 4294901760
        %2333 = vmatprep.mubr.f32.mxu0 %v2332
        %v2334 = vand.u32 %v297, 4294901760
        %v2335 = vsub.f32 %v297, %v2334
        %v2336 = vand.u32 %v2335, 4294901760
        %v2337 = vsub.f32 %v2335, %v2336
        %v2338 = vand.u32 %v2337, 4294901760
        %2339 = vmatmul.mubr.f32.gmra.mrb[0].mxu0 %v2338
        %v2340 = vpop.f32.mrb[0].mxu0
        %v2341 = vadd.f32 %v2059, %v2340
        %v2342 = vpop.f32.mrb[0].mxu0
        %v2343 = vand.u32 %v303, 4294901760
        %v2344 = vsub.f32 %v303, %v2343
        %v2345 = vand.u32 %v2344, 4294901760
        %v2346 = vsub.f32 %v2344, %v2345
        %v2347 = vand.u32 %v2346, 4294901760
        %2348 = vmatprep.mubr.f32.mxu0 %v2347
        %v2349 = vand.u32 %v302, 4294901760
        %v2350 = vsub.f32 %v302, %v2349
        %v2351 = vand.u32 %v2350, 4294901760
        %v2352 = vsub.f32 %v2350, %v2351
        %v2353 = vand.u32 %v2352, 4294901760
        %2354 = vmatmul.mubr.f32.gmra.mrb[0].mxu0 %v2353
        %v2355 = vpop.f32.mrb[0].mxu0
        %v2356 = vadd.f32 %v2066, %v2355
        %v2357 = vpop.f32.mrb[0].mxu0
        %v2358 = vand.u32 %v308, 4294901760
        %v2359 = vsub.f32 %v308, %v2358
        %v2360 = vand.u32 %v2359, 4294901760
        %v2361 = vsub.f32 %v2359, %v2360
        %v2362 = vand.u32 %v2361, 4294901760
        %2363 = vmatprep.mubr.f32.mxu0 %v2362
        %v2364 = vand.u32 %v307, 4294901760
        %v2365 = vsub.f32 %v307, %v2364
        %v2366 = vand.u32 %v2365, 4294901760
        %v2367 = vsub.f32 %v2365, %v2366
        %v2368 = vand.u32 %v2367, 4294901760
        %2369 = vmatmul.mubr.f32.gmra.mrb[0].mxu0 %v2368
        %v2370 = vpop.f32.mrb[0].mxu0
        %v2371 = vadd.f32 %v2073, %v2370
        %v2372 = vpop.f32.mrb[0].mxu0
        %v2373 = vand.u32 %v313, 4294901760
        %v2374 = vsub.f32 %v313, %v2373
        %v2375 = vand.u32 %v2374, 4294901760
        %v2376 = vsub.f32 %v2374, %v2375
        %v2377 = vand.u32 %v2376, 4294901760
        %2378 = vmatprep.mubr.f32.mxu0 %v2377
        %v2379 = vand.u32 %v312, 4294901760
        %v2380 = vsub.f32 %v312, %v2379
        %v2381 = vand.u32 %v2380, 4294901760
        %v2382 = vsub.f32 %v2380, %v2381
        %v2383 = vand.u32 %v2382, 4294901760
        %2384 = vmatmul.mubr.f32.gmra.mrb[0].mxu0 %v2383
        %v2385 = vpop.f32.mrb[0].mxu0
        %v2386 = vadd.f32 %v2080, %v2385
        %v2387 = vpop.f32.mrb[0].mxu0
        %v2388 = vand.u32 %v318, 4294901760
        %v2389 = vsub.f32 %v318, %v2388
        %v2390 = vand.u32 %v2389, 4294901760
        %v2391 = vsub.f32 %v2389, %v2390
        %v2392 = vand.u32 %v2391, 4294901760
        %2393 = vmatprep.mubr.f32.mxu0 %v2392
        %v2394 = vand.u32 %v317, 4294901760
        %v2395 = vsub.f32 %v317, %v2394
        %v2396 = vand.u32 %v2395, 4294901760
        %v2397 = vsub.f32 %v2395, %v2396
        %v2398 = vand.u32 %v2397, 4294901760
        %2399 = vmatmul.mubr.f32.gmra.mrb[0].mxu0 %v2398
        %v2400 = vpop.f32.mrb[0].mxu0
        %v2401 = vadd.f32 %v2087, %v2400
        %v2402 = vpop.f32.mrb[0].mxu0
        %v2403 = vand.u32 %v323, 4294901760
        %v2404 = vsub.f32 %v323, %v2403
        %v2405 = vand.u32 %v2404, 4294901760
        %v2406 = vsub.f32 %v2404, %v2405
        %v2407 = vand.u32 %v2406, 4294901760
        %2408 = vmatprep.mubr.f32.mxu0 %v2407
        %v2409 = vand.u32 %v322, 4294901760
        %v2410 = vsub.f32 %v322, %v2409
        %v2411 = vand.u32 %v2410, 4294901760
        %v2412 = vsub.f32 %v2410, %v2411
        %v2413 = vand.u32 %v2412, 4294901760
        %2414 = vmatmul.mubr.f32.gmra.mrb[0].mxu0 %v2413
        %v2415 = vpop.f32.mrb[0].mxu0
        %v2416 = vadd.f32 %v2094, %v2415
        %v2417 = vpop.f32.mrb[0].mxu0
        %2418 = vdwg.mxu0
        %2419 = vmatprep.subr.mxu0 0.0
        %v2420 = vand.u32 %v357, 4294901760
        %v2421 = vsub.f32 %v357, %v2420
        %v2422 = vand.u32 %v2421, 4294901760
        %v2423 = vsub.f32 %v2421, %v2422
        %v2424 = vand.u32 %v2423, 4294901760
        %2425 = vmatpush1.msra.mxu0 %v2424
        %2426 = vmatprep.subr.mxu0 0.0
        %v2427 = vand.u32 %v358, 4294901760
        %v2428 = vsub.f32 %v358, %v2427
        %v2429 = vand.u32 %v2428, 4294901760
        %v2430 = vsub.f32 %v2428, %v2429
        %v2431 = vand.u32 %v2430, 4294901760
        %2432 = vmatpush1.msra.mxu0 %v2431
        %2433 = vmatprep.subr.mxu0 0.0
        %v2434 = vand.u32 %v359, 4294901760
        %v2435 = vsub.f32 %v359, %v2434
        %v2436 = vand.u32 %v2435, 4294901760
        %v2437 = vsub.f32 %v2435, %v2436
        %v2438 = vand.u32 %v2437, 4294901760
        %2439 = vmatpush1.msra.mxu0 %v2438
        %2440 = vmatprep.subr.mxu0 0.0
        %v2441 = vand.u32 %v360, 4294901760
        %v2442 = vsub.f32 %v360, %v2441
        %v2443 = vand.u32 %v2442, 4294901760
        %v2444 = vsub.f32 %v2442, %v2443
        %v2445 = vand.u32 %v2444, 4294901760
        %2446 = vmatpush1.msra.mxu0 %v2445
        %2447 = vmatprep.subr.mxu0 0.0
        %v2448 = vand.u32 %v361, 4294901760
        %v2449 = vsub.f32 %v361, %v2448
        %v2450 = vand.u32 %v2449, 4294901760
        %v2451 = vsub.f32 %v2449, %v2450
        %v2452 = vand.u32 %v2451, 4294901760
        %2453 = vmatpush1.msra.mxu0 %v2452
        %2454 = vmatprep.subr.mxu0 0.0
        %v2455 = vand.u32 %v362, 4294901760
        %v2456 = vsub.f32 %v362, %v2455
        %v2457 = vand.u32 %v2456, 4294901760
        %v2458 = vsub.f32 %v2456, %v2457
        %v2459 = vand.u32 %v2458, 4294901760
        %2460 = vmatpush1.msra.mxu0 %v2459
        %2461 = vmatprep.subr.mxu0 0.0
        %v2462 = vand.u32 %v363, 4294901760
        %v2463 = vsub.f32 %v363, %v2462
        %v2464 = vand.u32 %v2463, 4294901760
        %v2465 = vsub.f32 %v2463, %v2464
        %v2466 = vand.u32 %v2465, 4294901760
        %2467 = vmatpush1.msra.mxu0 %v2466
        %2468 = vmatprep.subr.mxu0 0.0
        %v2469 = vand.u32 %v364, 4294901760
        %v2470 = vsub.f32 %v364, %v2469
        %v2471 = vand.u32 %v2470, 4294901760
        %v2472 = vsub.f32 %v2470, %v2471
        %v2473 = vand.u32 %v2472, 4294901760
        %2474 = vmatpush1.msra.mxu0 %v2473
        %2475 = vmatprep.subr.mxu0 0.0
        %v2476 = vand.u32 %v365, 4294901760
        %v2477 = vsub.f32 %v365, %v2476
        %v2478 = vand.u32 %v2477, 4294901760
        %v2479 = vsub.f32 %v2477, %v2478
        %v2480 = vand.u32 %v2479, 4294901760
        %2481 = vmatpush1.msra.mxu0 %v2480
        %2482 = vmatprep.subr.mxu0 0.0
        %v2483 = vand.u32 %v366, 4294901760
        %v2484 = vsub.f32 %v366, %v2483
        %v2485 = vand.u32 %v2484, 4294901760
        %v2486 = vsub.f32 %v2484, %v2485
        %v2487 = vand.u32 %v2486, 4294901760
        %2488 = vmatpush1.msra.mxu0 %v2487
        %2489 = vmatprep.subr.mxu0 0.0
        %v2490 = vand.u32 %v367, 4294901760
        %v2491 = vsub.f32 %v367, %v2490
        %v2492 = vand.u32 %v2491, 4294901760
        %v2493 = vsub.f32 %v2491, %v2492
        %v2494 = vand.u32 %v2493, 4294901760
        %2495 = vmatpush1.msra.mxu0 %v2494
        %2496 = vmatprep.subr.mxu0 0.0
        %v2497 = vand.u32 %v368, 4294901760
        %v2498 = vsub.f32 %v368, %v2497
        %v2499 = vand.u32 %v2498, 4294901760
        %v2500 = vsub.f32 %v2498, %v2499
        %v2501 = vand.u32 %v2500, 4294901760
        %2502 = vmatpush1.msra.mxu0 %v2501
        %2503 = vmatprep.subr.mxu0 0.0
        %v2504 = vand.u32 %v369, 4294901760
        %v2505 = vsub.f32 %v369, %v2504
        %v2506 = vand.u32 %v2505, 4294901760
        %v2507 = vsub.f32 %v2505, %v2506
        %v2508 = vand.u32 %v2507, 4294901760
        %2509 = vmatpush1.msra.mxu0 %v2508
        %2510 = vmatprep.subr.mxu0 0.0
        %v2511 = vand.u32 %v370, 4294901760
        %v2512 = vsub.f32 %v370, %v2511
        %v2513 = vand.u32 %v2512, 4294901760
        %v2514 = vsub.f32 %v2512, %v2513
        %v2515 = vand.u32 %v2514, 4294901760
        %2516 = vmatpush1.msra.mxu0 %v2515
        %2517 = vmatprep.subr.mxu0 0.0
        %v2518 = vand.u32 %v371, 4294901760
        %v2519 = vsub.f32 %v371, %v2518
        %v2520 = vand.u32 %v2519, 4294901760
        %v2521 = vsub.f32 %v2519, %v2520
        %v2522 = vand.u32 %v2521, 4294901760
        %2523 = vmatpush1.msra.mxu0 %v2522
        %2524 = vmatprep.subr.mxu0 0.0
        %v2525 = vand.u32 %v372, 4294901760
        %v2526 = vsub.f32 %v372, %v2525
        %v2527 = vand.u32 %v2526, 4294901760
        %v2528 = vsub.f32 %v2526, %v2527
        %v2529 = vand.u32 %v2528, 4294901760
        %2530 = vmatpush1.msra.mxu0 %v2529
        %2531 = vmatprep.subr.mxu0 0.0
        %v2532 = vand.u32 %v373, 4294901760
        %v2533 = vsub.f32 %v373, %v2532
        %v2534 = vand.u32 %v2533, 4294901760
        %v2535 = vsub.f32 %v2533, %v2534
        %v2536 = vand.u32 %v2535, 4294901760
        %2537 = vmatpush1.msra.mxu0 %v2536
        %2538 = vmatprep.subr.mxu0 0.0
        %v2539 = vand.u32 %v374, 4294901760
        %v2540 = vsub.f32 %v374, %v2539
        %v2541 = vand.u32 %v2540, 4294901760
        %v2542 = vsub.f32 %v2540, %v2541
        %v2543 = vand.u32 %v2542, 4294901760
        %2544 = vmatpush1.msra.mxu0 %v2543
        %2545 = vmatprep.subr.mxu0 0.0
        %v2546 = vand.u32 %v375, 4294901760
        %v2547 = vsub.f32 %v375, %v2546
        %v2548 = vand.u32 %v2547, 4294901760
        %v2549 = vsub.f32 %v2547, %v2548
        %v2550 = vand.u32 %v2549, 4294901760
        %2551 = vmatpush1.msra.mxu0 %v2550
        %2552 = vmatprep.subr.mxu0 0.0
        %v2553 = vand.u32 %v376, 4294901760
        %v2554 = vsub.f32 %v376, %v2553
        %v2555 = vand.u32 %v2554, 4294901760
        %v2556 = vsub.f32 %v2554, %v2555
        %v2557 = vand.u32 %v2556, 4294901760
        %2558 = vmatpush1.msra.mxu0 %v2557
        %2559 = vmatprep.subr.mxu0 0.0
        %v2560 = vand.u32 %v377, 4294901760
        %v2561 = vsub.f32 %v377, %v2560
        %v2562 = vand.u32 %v2561, 4294901760
        %v2563 = vsub.f32 %v2561, %v2562
        %v2564 = vand.u32 %v2563, 4294901760
        %2565 = vmatpush1.msra.mxu0 %v2564
        %2566 = vmatprep.subr.mxu0 0.0
        %v2567 = vand.u32 %v378, 4294901760
        %v2568 = vsub.f32 %v378, %v2567
        %v2569 = vand.u32 %v2568, 4294901760
        %v2570 = vsub.f32 %v2568, %v2569
        %v2571 = vand.u32 %v2570, 4294901760
        %2572 = vmatpush1.msra.mxu0 %v2571
        %2573 = vmatprep.subr.mxu0 0.0
        %v2574 = vand.u32 %v379, 4294901760
        %v2575 = vsub.f32 %v379, %v2574
        %v2576 = vand.u32 %v2575, 4294901760
        %v2577 = vsub.f32 %v2575, %v2576
        %v2578 = vand.u32 %v2577, 4294901760
        %2579 = vmatpush1.msra.mxu0 %v2578
        %2580 = vmatprep.subr.mxu0 0.0
        %v2581 = vand.u32 %v380, 4294901760
        %v2582 = vsub.f32 %v380, %v2581
        %v2583 = vand.u32 %v2582, 4294901760
        %v2584 = vsub.f32 %v2582, %v2583
        %v2585 = vand.u32 %v2584, 4294901760
        %2586 = vmatpush1.msra.mxu0 %v2585
        %2587 = vmatprep.subr.mxu0 0.0
        %v2588 = vand.u32 %v381, 4294901760
        %v2589 = vsub.f32 %v381, %v2588
        %v2590 = vand.u32 %v2589, 4294901760
        %v2591 = vsub.f32 %v2589, %v2590
        %v2592 = vand.u32 %v2591, 4294901760
        %2593 = vmatpush1.msra.mxu0 %v2592
        %2594 = vmatprep.subr.mxu0 0.0
        %v2595 = vand.u32 %v382, 4294901760
        %v2596 = vsub.f32 %v382, %v2595
        %v2597 = vand.u32 %v2596, 4294901760
        %v2598 = vsub.f32 %v2596, %v2597
        %v2599 = vand.u32 %v2598, 4294901760
        %2600 = vmatpush1.msra.mxu0 %v2599
        %2601 = vmatprep.subr.mxu0 0.0
        %v2602 = vand.u32 %v383, 4294901760
        %v2603 = vsub.f32 %v383, %v2602
        %v2604 = vand.u32 %v2603, 4294901760
        %v2605 = vsub.f32 %v2603, %v2604
        %v2606 = vand.u32 %v2605, 4294901760
        %2607 = vmatpush1.msra.mxu0 %v2606
        %2608 = vmatprep.subr.mxu0 0.0
        %v2609 = vand.u32 %v384, 4294901760
        %v2610 = vsub.f32 %v384, %v2609
        %v2611 = vand.u32 %v2610, 4294901760
        %v2612 = vsub.f32 %v2610, %v2611
        %v2613 = vand.u32 %v2612, 4294901760
        %2614 = vmatpush1.msra.mxu0 %v2613
        %2615 = vmatprep.subr.mxu0 0.0
        %v2616 = vand.u32 %v385, 4294901760
        %v2617 = vsub.f32 %v385, %v2616
        %v2618 = vand.u32 %v2617, 4294901760
        %v2619 = vsub.f32 %v2617, %v2618
        %v2620 = vand.u32 %v2619, 4294901760
        %2621 = vmatpush1.msra.mxu0 %v2620
        %2622 = vmatprep.subr.mxu0 0.0
        %v2623 = vand.u32 %v386, 4294901760
        %v2624 = vsub.f32 %v386, %v2623
        %v2625 = vand.u32 %v2624, 4294901760
        %v2626 = vsub.f32 %v2624, %v2625
        %v2627 = vand.u32 %v2626, 4294901760
        %2628 = vmatpush1.msra.mxu0 %v2627
        %2629 = vmatprep.subr.mxu0 0.0
        %v2630 = vand.u32 %v387, 4294901760
        %v2631 = vsub.f32 %v387, %v2630
        %v2632 = vand.u32 %v2631, 4294901760
        %v2633 = vsub.f32 %v2631, %v2632
        %v2634 = vand.u32 %v2633, 4294901760
        %2635 = vmatpush1.msra.mxu0 %v2634
        %2636 = vmatprep.subr.mxu0 0.0
        %v2637 = vand.u32 %v388, 4294901760
        %v2638 = vsub.f32 %v388, %v2637
        %v2639 = vand.u32 %v2638, 4294901760
        %v2640 = vsub.f32 %v2638, %v2639
        %v2641 = vand.u32 %v2640, 4294901760
        %2642 = vmatpush1.msra.mxu0 %v2641
        %v2643 = vand.u32 %v253, 4294901760
        %2644 = vmatprep.mubr.f32.mxu0 %v2643
        %v2645 = vand.u32 %v252, 4294901760
        %2646 = vmatmul.mubr.f32.gmra.mrb[0].mxu0 %v2645
        %v2647 = vpop.f32.mrb[0].mxu0
        %v2648 = vadd.f32 %v2206, %v2647
        %v2649 = vpop.f32.mrb[0].mxu0
        %v2650 = vand.u32 %v258, 4294901760
        %2651 = vmatprep.mubr.f32.mxu0 %v2650
        %v2652 = vand.u32 %v257, 4294901760
        %2653 = vmatmul.mubr.f32.gmra.mrb[0].mxu0 %v2652
        %v2654 = vpop.f32.mrb[0].mxu0
        %v2655 = vadd.f32 %v2221, %v2654
        %v2656 = vpop.f32.mrb[0].mxu0
        %v2657 = vand.u32 %v263, 4294901760
        %2658 = vmatprep.mubr.f32.mxu0 %v2657
        %v2659 = vand.u32 %v262, 4294901760
        %2660 = vmatmul.mubr.f32.gmra.mrb[0].mxu0 %v2659
        %v2661 = vpop.f32.mrb[0].mxu0
        %v2662 = vadd.f32 %v2236, %v2661
        %v2663 = vpop.f32.mrb[0].mxu0
        %v2664 = vand.u32 %v268, 4294901760
        %2665 = vmatprep.mubr.f32.mxu0 %v2664
        %v2666 = vand.u32 %v267, 4294901760
        %2667 = vmatmul.mubr.f32.gmra.mrb[0].mxu0 %v2666
        %v2668 = vpop.f32.mrb[0].mxu0
        %v2669 = vadd.f32 %v2251, %v2668
        %v2670 = vpop.f32.mrb[0].mxu0
        %v2671 = vand.u32 %v273, 4294901760
        %2672 = vmatprep.mubr.f32.mxu0 %v2671
        %v2673 = vand.u32 %v272, 4294901760
        %2674 = vmatmul.mubr.f32.gmra.mrb[0].mxu0 %v2673
        %v2675 = vpop.f32.mrb[0].mxu0
        %v2676 = vadd.f32 %v2266, %v2675
        %v2677 = vpop.f32.mrb[0].mxu0
        %v2678 = vand.u32 %v278, 4294901760
        %2679 = vmatprep.mubr.f32.mxu0 %v2678
        %v2680 = vand.u32 %v277, 4294901760
        %2681 = vmatmul.mubr.f32.gmra.mrb[0].mxu0 %v2680
        %v2682 = vpop.f32.mrb[0].mxu0
        %v2683 = vadd.f32 %v2281, %v2682
        %v2684 = vpop.f32.mrb[0].mxu0
        %v2685 = vand.u32 %v283, 4294901760
        %2686 = vmatprep.mubr.f32.mxu0 %v2685
        %v2687 = vand.u32 %v282, 4294901760
        %2688 = vmatmul.mubr.f32.gmra.mrb[0].mxu0 %v2687
        %v2689 = vpop.f32.mrb[0].mxu0
        %v2690 = vadd.f32 %v2296, %v2689
        %v2691 = vpop.f32.mrb[0].mxu0
        %v2692 = vand.u32 %v288, 4294901760
        %2693 = vmatprep.mubr.f32.mxu0 %v2692
        %v2694 = vand.u32 %v287, 4294901760
        %2695 = vmatmul.mubr.f32.gmra.mrb[0].mxu0 %v2694
        %v2696 = vpop.f32.mrb[0].mxu0
        %v2697 = vadd.f32 %v2311, %v2696
        %v2698 = vpop.f32.mrb[0].mxu0
        %v2699 = vand.u32 %v293, 4294901760
        %2700 = vmatprep.mubr.f32.mxu0 %v2699
        %v2701 = vand.u32 %v292, 4294901760
        %2702 = vmatmul.mubr.f32.gmra.mrb[0].mxu0 %v2701
        %v2703 = vpop.f32.mrb[0].mxu0
        %v2704 = vadd.f32 %v2326, %v2703
        %v2705 = vpop.f32.mrb[0].mxu0
        %v2706 = vand.u32 %v298, 4294901760
        %2707 = vmatprep.mubr.f32.mxu0 %v2706
        %v2708 = vand.u32 %v297, 4294901760
        %2709 = vmatmul.mubr.f32.gmra.mrb[0].mxu0 %v2708
        %v2710 = vpop.f32.mrb[0].mxu0
        %v2711 = vadd.f32 %v2341, %v2710
        %v2712 = vpop.f32.mrb[0].mxu0
        %v2713 = vand.u32 %v303, 4294901760
        %2714 = vmatprep.mubr.f32.mxu0 %v2713
        %v2715 = vand.u32 %v302, 4294901760
        %2716 = vmatmul.mubr.f32.gmra.mrb[0].mxu0 %v2715
        %v2717 = vpop.f32.mrb[0].mxu0
        %v2718 = vadd.f32 %v2356, %v2717
        %v2719 = vpop.f32.mrb[0].mxu0
        %v2720 = vand.u32 %v308, 4294901760
        %2721 = vmatprep.mubr.f32.mxu0 %v2720
        %v2722 = vand.u32 %v307, 4294901760
        %2723 = vmatmul.mubr.f32.gmra.mrb[0].mxu0 %v2722
        %v2724 = vpop.f32.mrb[0].mxu0
        %v2725 = vadd.f32 %v2371, %v2724
        %v2726 = vpop.f32.mrb[0].mxu0
        %v2727 = vand.u32 %v313, 4294901760
        %2728 = vmatprep.mubr.f32.mxu0 %v2727
        %v2729 = vand.u32 %v312, 4294901760
        %2730 = vmatmul.mubr.f32.gmra.mrb[0].mxu0 %v2729
        %v2731 = vpop.f32.mrb[0].mxu0
        %v2732 = vadd.f32 %v2386, %v2731
        %v2733 = vpop.f32.mrb[0].mxu0
        %v2734 = vand.u32 %v318, 4294901760
        %2735 = vmatprep.mubr.f32.mxu0 %v2734
        %v2736 = vand.u32 %v317, 4294901760
        %2737 = vmatmul.mubr.f32.gmra.mrb[0].mxu0 %v2736
        %v2738 = vpop.f32.mrb[0].mxu0
        %v2739 = vadd.f32 %v2401, %v2738
        %v2740 = vpop.f32.mrb[0].mxu0
        %v2741 = vand.u32 %v323, 4294901760
        %2742 = vmatprep.mubr.f32.mxu0 %v2741
        %v2743 = vand.u32 %v322, 4294901760
        %2744 = vmatmul.mubr.f32.gmra.mrb[0].mxu0 %v2743
        %v2745 = vpop.f32.mrb[0].mxu0
        %v2746 = vadd.f32 %v2416, %v2745
        %v2747 = vpop.f32.mrb[0].mxu0
        %2748 = vdwg.mxu0
        %2749 = vmatprep.subr.mxu0 0.0
        %v2750 = vand.u32 %v357, 4294901760
        %v2751 = vsub.f32 %v357, %v2750
        %2752 = vmatpush1.msra.mxu0 %v2751
        %2753 = vmatprep.subr.mxu0 0.0
        %v2754 = vand.u32 %v358, 4294901760
        %v2755 = vsub.f32 %v358, %v2754
        %2756 = vmatpush1.msra.mxu0 %v2755
        %2757 = vmatprep.subr.mxu0 0.0
        %v2758 = vand.u32 %v359, 4294901760
        %v2759 = vsub.f32 %v359, %v2758
        %2760 = vmatpush1.msra.mxu0 %v2759
        %2761 = vmatprep.subr.mxu0 0.0
        %v2762 = vand.u32 %v360, 4294901760
        %v2763 = vsub.f32 %v360, %v2762
        %2764 = vmatpush1.msra.mxu0 %v2763
        %2765 = vmatprep.subr.mxu0 0.0
        %v2766 = vand.u32 %v361, 4294901760
        %v2767 = vsub.f32 %v361, %v2766
        %2768 = vmatpush1.msra.mxu0 %v2767
        %2769 = vmatprep.subr.mxu0 0.0
        %v2770 = vand.u32 %v362, 4294901760
        %v2771 = vsub.f32 %v362, %v2770
        %2772 = vmatpush1.msra.mxu0 %v2771
        %2773 = vmatprep.subr.mxu0 0.0
        %v2774 = vand.u32 %v363, 4294901760
        %v2775 = vsub.f32 %v363, %v2774
        %2776 = vmatpush1.msra.mxu0 %v2775
        %2777 = vmatprep.subr.mxu0 0.0
        %v2778 = vand.u32 %v364, 4294901760
        %v2779 = vsub.f32 %v364, %v2778
        %2780 = vmatpush1.msra.mxu0 %v2779
        %2781 = vmatprep.subr.mxu0 0.0
        %v2782 = vand.u32 %v365, 4294901760
        %v2783 = vsub.f32 %v365, %v2782
        %2784 = vmatpush1.msra.mxu0 %v2783
        %2785 = vmatprep.subr.mxu0 0.0
        %v2786 = vand.u32 %v366, 4294901760
        %v2787 = vsub.f32 %v366, %v2786
        %2788 = vmatpush1.msra.mxu0 %v2787
        %2789 = vmatprep.subr.mxu0 0.0
        %v2790 = vand.u32 %v367, 4294901760
        %v2791 = vsub.f32 %v367, %v2790
        %2792 = vmatpush1.msra.mxu0 %v2791
        %2793 = vmatprep.subr.mxu0 0.0
        %v2794 = vand.u32 %v368, 4294901760
        %v2795 = vsub.f32 %v368, %v2794
        %2796 = vmatpush1.msra.mxu0 %v2795
        %2797 = vmatprep.subr.mxu0 0.0
        %v2798 = vand.u32 %v369, 4294901760
        %v2799 = vsub.f32 %v369, %v2798
        %2800 = vmatpush1.msra.mxu0 %v2799
        %2801 = vmatprep.subr.mxu0 0.0
        %v2802 = vand.u32 %v370, 4294901760
        %v2803 = vsub.f32 %v370, %v2802
        %2804 = vmatpush1.msra.mxu0 %v2803
        %2805 = vmatprep.subr.mxu0 0.0
        %v2806 = vand.u32 %v371, 4294901760
        %v2807 = vsub.f32 %v371, %v2806
        %2808 = vmatpush1.msra.mxu0 %v2807
        %2809 = vmatprep.subr.mxu0 0.0
        %v2810 = vand.u32 %v372, 4294901760
        %v2811 = vsub.f32 %v372, %v2810
        %2812 = vmatpush1.msra.mxu0 %v2811
        %2813 = vmatprep.subr.mxu0 0.0
        %v2814 = vand.u32 %v373, 4294901760
        %v2815 = vsub.f32 %v373, %v2814
        %2816 = vmatpush1.msra.mxu0 %v2815
        %2817 = vmatprep.subr.mxu0 0.0
        %v2818 = vand.u32 %v374, 4294901760
        %v2819 = vsub.f32 %v374, %v2818
        %2820 = vmatpush1.msra.mxu0 %v2819
        %2821 = vmatprep.subr.mxu0 0.0
        %v2822 = vand.u32 %v375, 4294901760
        %v2823 = vsub.f32 %v375, %v2822
        %2824 = vmatpush1.msra.mxu0 %v2823
        %2825 = vmatprep.subr.mxu0 0.0
        %v2826 = vand.u32 %v376, 4294901760
        %v2827 = vsub.f32 %v376, %v2826
        %2828 = vmatpush1.msra.mxu0 %v2827
        %2829 = vmatprep.subr.mxu0 0.0
        %v2830 = vand.u32 %v377, 4294901760
        %v2831 = vsub.f32 %v377, %v2830
        %2832 = vmatpush1.msra.mxu0 %v2831
        %2833 = vmatprep.subr.mxu0 0.0
        %v2834 = vand.u32 %v378, 4294901760
        %v2835 = vsub.f32 %v378, %v2834
        %2836 = vmatpush1.msra.mxu0 %v2835
        %2837 = vmatprep.subr.mxu0 0.0
        %v2838 = vand.u32 %v379, 4294901760
        %v2839 = vsub.f32 %v379, %v2838
        %2840 = vmatpush1.msra.mxu0 %v2839
        %2841 = vmatprep.subr.mxu0 0.0
        %v2842 = vand.u32 %v380, 4294901760
        %v2843 = vsub.f32 %v380, %v2842
        %2844 = vmatpush1.msra.mxu0 %v2843
        %2845 = vmatprep.subr.mxu0 0.0
        %v2846 = vand.u32 %v381, 4294901760
        %v2847 = vsub.f32 %v381, %v2846
        %2848 = vmatpush1.msra.mxu0 %v2847
        %2849 = vmatprep.subr.mxu0 0.0
        %v2850 = vand.u32 %v382, 4294901760
        %v2851 = vsub.f32 %v382, %v2850
        %2852 = vmatpush1.msra.mxu0 %v2851
        %2853 = vmatprep.subr.mxu0 0.0
        %v2854 = vand.u32 %v383, 4294901760
        %v2855 = vsub.f32 %v383, %v2854
        %2856 = vmatpush1.msra.mxu0 %v2855
        %2857 = vmatprep.subr.mxu0 0.0
        %v2858 = vand.u32 %v384, 4294901760
        %v2859 = vsub.f32 %v384, %v2858
        %2860 = vmatpush1.msra.mxu0 %v2859
        %2861 = vmatprep.subr.mxu0 0.0
        %v2862 = vand.u32 %v385, 4294901760
        %v2863 = vsub.f32 %v385, %v2862
        %2864 = vmatpush1.msra.mxu0 %v2863
        %2865 = vmatprep.subr.mxu0 0.0
        %v2866 = vand.u32 %v386, 4294901760
        %v2867 = vsub.f32 %v386, %v2866
        %2868 = vmatpush1.msra.mxu0 %v2867
        %2869 = vmatprep.subr.mxu0 0.0
        %v2870 = vand.u32 %v387, 4294901760
        %v2871 = vsub.f32 %v387, %v2870
        %2872 = vmatpush1.msra.mxu0 %v2871
        %2873 = vmatprep.subr.mxu0 0.0
        %v2874 = vand.u32 %v388, 4294901760
        %v2875 = vsub.f32 %v388, %v2874
        %2876 = vmatpush1.msra.mxu0 %v2875
        %v2877 = vand.u32 %v253, 4294901760
        %v2878 = vsub.f32 %v253, %v2877
        %2879 = vmatprep.mubr.f32.mxu0 %v2878
        %v2880 = vand.u32 %v252, 4294901760
        %v2881 = vsub.f32 %v252, %v2880
        %2882 = vmatmul.mubr.f32.gmra.mrb[0].mxu0 %v2881
        %v2883 = vpop.f32.mrb[0].mxu0
        %v2884 = vadd.f32 %v2648, %v2883
        %v2885 = vpop.f32.mrb[0].mxu0
        %v2886 = vand.u32 %v258, 4294901760
        %v2887 = vsub.f32 %v258, %v2886
        %2888 = vmatprep.mubr.f32.mxu0 %v2887
        %v2889 = vand.u32 %v257, 4294901760
        %v2890 = vsub.f32 %v257, %v2889
        %2891 = vmatmul.mubr.f32.gmra.mrb[0].mxu0 %v2890
        %v2892 = vpop.f32.mrb[0].mxu0
        %v2893 = vadd.f32 %v2655, %v2892
        %v2894 = vpop.f32.mrb[0].mxu0
        %v2895 = vand.u32 %v263, 4294901760
        %v2896 = vsub.f32 %v263, %v2895
        %2897 = vmatprep.mubr.f32.mxu0 %v2896
        %v2898 = vand.u32 %v262, 4294901760
        %v2899 = vsub.f32 %v262, %v2898
        %2900 = vmatmul.mubr.f32.gmra.mrb[0].mxu0 %v2899
        %v2901 = vpop.f32.mrb[0].mxu0
        %v2902 = vadd.f32 %v2662, %v2901
        %v2903 = vpop.f32.mrb[0].mxu0
        %v2904 = vand.u32 %v268, 4294901760
        %v2905 = vsub.f32 %v268, %v2904
        %2906 = vmatprep.mubr.f32.mxu0 %v2905
        %v2907 = vand.u32 %v267, 4294901760
        %v2908 = vsub.f32 %v267, %v2907
        %2909 = vmatmul.mubr.f32.gmra.mrb[0].mxu0 %v2908
        %v2910 = vpop.f32.mrb[0].mxu0
        %v2911 = vadd.f32 %v2669, %v2910
        %v2912 = vpop.f32.mrb[0].mxu0
        %v2913 = vand.u32 %v273, 4294901760
        %v2914 = vsub.f32 %v273, %v2913
        %2915 = vmatprep.mubr.f32.mxu0 %v2914
        %v2916 = vand.u32 %v272, 4294901760
        %v2917 = vsub.f32 %v272, %v2916
        %2918 = vmatmul.mubr.f32.gmra.mrb[0].mxu0 %v2917
        %v2919 = vpop.f32.mrb[0].mxu0
        %v2920 = vadd.f32 %v2676, %v2919
        %v2921 = vpop.f32.mrb[0].mxu0
        %v2922 = vand.u32 %v278, 4294901760
        %v2923 = vsub.f32 %v278, %v2922
        %2924 = vmatprep.mubr.f32.mxu0 %v2923
        %v2925 = vand.u32 %v277, 4294901760
        %v2926 = vsub.f32 %v277, %v2925
        %2927 = vmatmul.mubr.f32.gmra.mrb[0].mxu0 %v2926
        %v2928 = vpop.f32.mrb[0].mxu0
        %v2929 = vadd.f32 %v2683, %v2928
        %v2930 = vpop.f32.mrb[0].mxu0
        %v2931 = vand.u32 %v283, 4294901760
        %v2932 = vsub.f32 %v283, %v2931
        %2933 = vmatprep.mubr.f32.mxu0 %v2932
        %v2934 = vand.u32 %v282, 4294901760
        %v2935 = vsub.f32 %v282, %v2934
        %2936 = vmatmul.mubr.f32.gmra.mrb[0].mxu0 %v2935
        %v2937 = vpop.f32.mrb[0].mxu0
        %v2938 = vadd.f32 %v2690, %v2937
        %v2939 = vpop.f32.mrb[0].mxu0
        %v2940 = vand.u32 %v288, 4294901760
        %v2941 = vsub.f32 %v288, %v2940
        %2942 = vmatprep.mubr.f32.mxu0 %v2941
        %v2943 = vand.u32 %v287, 4294901760
        %v2944 = vsub.f32 %v287, %v2943
        %2945 = vmatmul.mubr.f32.gmra.mrb[0].mxu0 %v2944
        %v2946 = vpop.f32.mrb[0].mxu0
        %v2947 = vadd.f32 %v2697, %v2946
        %v2948 = vpop.f32.mrb[0].mxu0
        %v2949 = vand.u32 %v293, 4294901760
        %v2950 = vsub.f32 %v293, %v2949
        %2951 = vmatprep.mubr.f32.mxu0 %v2950
        %v2952 = vand.u32 %v292, 4294901760
        %v2953 = vsub.f32 %v292, %v2952
        %2954 = vmatmul.mubr.f32.gmra.mrb[0].mxu0 %v2953
        %v2955 = vpop.f32.mrb[0].mxu0
        %v2956 = vadd.f32 %v2704, %v2955
        %v2957 = vpop.f32.mrb[0].mxu0
        %v2958 = vand.u32 %v298, 4294901760
        %v2959 = vsub.f32 %v298, %v2958
        %2960 = vmatprep.mubr.f32.mxu0 %v2959
        %v2961 = vand.u32 %v297, 4294901760
        %v2962 = vsub.f32 %v297, %v2961
        %2963 = vmatmul.mubr.f32.gmra.mrb[0].mxu0 %v2962
        %v2964 = vpop.f32.mrb[0].mxu0
        %v2965 = vadd.f32 %v2711, %v2964
        %v2966 = vpop.f32.mrb[0].mxu0
        %v2967 = vand.u32 %v303, 4294901760
        %v2968 = vsub.f32 %v303, %v2967
        %2969 = vmatprep.mubr.f32.mxu0 %v2968
        %v2970 = vand.u32 %v302, 4294901760
        %v2971 = vsub.f32 %v302, %v2970
        %2972 = vmatmul.mubr.f32.gmra.mrb[0].mxu0 %v2971
        %v2973 = vpop.f32.mrb[0].mxu0
        %v2974 = vadd.f32 %v2718, %v2973
        %v2975 = vpop.f32.mrb[0].mxu0
        %v2976 = vand.u32 %v308, 4294901760
        %v2977 = vsub.f32 %v308, %v2976
        %2978 = vmatprep.mubr.f32.mxu0 %v2977
        %v2979 = vand.u32 %v307, 4294901760
        %v2980 = vsub.f32 %v307, %v2979
        %2981 = vmatmul.mubr.f32.gmra.mrb[0].mxu0 %v2980
        %v2982 = vpop.f32.mrb[0].mxu0
        %v2983 = vadd.f32 %v2725, %v2982
        %v2984 = vpop.f32.mrb[0].mxu0
        %v2985 = vand.u32 %v313, 4294901760
        %v2986 = vsub.f32 %v313, %v2985
        %2987 = vmatprep.mubr.f32.mxu0 %v2986
        %v2988 = vand.u32 %v312, 4294901760
        %v2989 = vsub.f32 %v312, %v2988
        %2990 = vmatmul.mubr.f32.gmra.mrb[0].mxu0 %v2989
        %v2991 = vpop.f32.mrb[0].mxu0
        %v2992 = vadd.f32 %v2732, %v2991
        %v2993 = vpop.f32.mrb[0].mxu0
        %v2994 = vand.u32 %v318, 4294901760
        %v2995 = vsub.f32 %v318, %v2994
        %2996 = vmatprep.mubr.f32.mxu0 %v2995
        %v2997 = vand.u32 %v317, 4294901760
        %v2998 = vsub.f32 %v317, %v2997
        %2999 = vmatmul.mubr.f32.gmra.mrb[0].mxu0 %v2998
        %v3000 = vpop.f32.mrb[0].mxu0
        %v3001 = vadd.f32 %v2739, %v3000
        %v3002 = vpop.f32.mrb[0].mxu0
        %v3003 = vand.u32 %v323, 4294901760
        %v3004 = vsub.f32 %v323, %v3003
        %3005 = vmatprep.mubr.f32.mxu0 %v3004
        %v3006 = vand.u32 %v322, 4294901760
        %v3007 = vsub.f32 %v322, %v3006
        %3008 = vmatmul.mubr.f32.gmra.mrb[0].mxu0 %v3007
        %v3009 = vpop.f32.mrb[0].mxu0
        %v3010 = vadd.f32 %v2746, %v3009
        %v3011 = vpop.f32.mrb[0].mxu0
        %3012 = vdwg.mxu0
        %3013 = vmatprep.subr.mxu0 0.0
        %v3014 = vand.u32 %v357, 4294901760
        %3015 = vmatpush1.msra.mxu0 %v3014
        %3016 = vmatprep.subr.mxu0 0.0
        %v3017 = vand.u32 %v358, 4294901760
        %3018 = vmatpush1.msra.mxu0 %v3017
        %3019 = vmatprep.subr.mxu0 0.0
        %v3020 = vand.u32 %v359, 4294901760
        %3021 = vmatpush1.msra.mxu0 %v3020
        %3022 = vmatprep.subr.mxu0 0.0
        %v3023 = vand.u32 %v360, 4294901760
        %3024 = vmatpush1.msra.mxu0 %v3023
        %3025 = vmatprep.subr.mxu0 0.0
        %v3026 = vand.u32 %v361, 4294901760
        %3027 = vmatpush1.msra.mxu0 %v3026
        %3028 = vmatprep.subr.mxu0 0.0
        %v3029 = vand.u32 %v362, 4294901760
        %3030 = vmatpush1.msra.mxu0 %v3029
        %3031 = vmatprep.subr.mxu0 0.0
        %v3032 = vand.u32 %v363, 4294901760
        %3033 = vmatpush1.msra.mxu0 %v3032
        %3034 = vmatprep.subr.mxu0 0.0
        %v3035 = vand.u32 %v364, 4294901760
        %3036 = vmatpush1.msra.mxu0 %v3035
        %3037 = vmatprep.subr.mxu0 0.0
        %v3038 = vand.u32 %v365, 4294901760
        %3039 = vmatpush1.msra.mxu0 %v3038
        %3040 = vmatprep.subr.mxu0 0.0
        %v3041 = vand.u32 %v366, 4294901760
        %3042 = vmatpush1.msra.mxu0 %v3041
        %3043 = vmatprep.subr.mxu0 0.0
        %v3044 = vand.u32 %v367, 4294901760
        %3045 = vmatpush1.msra.mxu0 %v3044
        %3046 = vmatprep.subr.mxu0 0.0
        %v3047 = vand.u32 %v368, 4294901760
        %3048 = vmatpush1.msra.mxu0 %v3047
        %3049 = vmatprep.subr.mxu0 0.0
        %v3050 = vand.u32 %v369, 4294901760
        %3051 = vmatpush1.msra.mxu0 %v3050
        %3052 = vmatprep.subr.mxu0 0.0
        %v3053 = vand.u32 %v370, 4294901760
        %3054 = vmatpush1.msra.mxu0 %v3053
        %3055 = vmatprep.subr.mxu0 0.0
        %v3056 = vand.u32 %v371, 4294901760
        %3057 = vmatpush1.msra.mxu0 %v3056
        %3058 = vmatprep.subr.mxu0 0.0
        %v3059 = vand.u32 %v372, 4294901760
        %3060 = vmatpush1.msra.mxu0 %v3059
        %3061 = vmatprep.subr.mxu0 0.0
        %v3062 = vand.u32 %v373, 4294901760
        %3063 = vmatpush1.msra.mxu0 %v3062
        %3064 = vmatprep.subr.mxu0 0.0
        %v3065 = vand.u32 %v374, 4294901760
        %3066 = vmatpush1.msra.mxu0 %v3065
        %3067 = vmatprep.subr.mxu0 0.0
        %v3068 = vand.u32 %v375, 4294901760
        %3069 = vmatpush1.msra.mxu0 %v3068
        %3070 = vmatprep.subr.mxu0 0.0
        %v3071 = vand.u32 %v376, 4294901760
        %3072 = vmatpush1.msra.mxu0 %v3071
        %3073 = vmatprep.subr.mxu0 0.0
        %v3074 = vand.u32 %v377, 4294901760
        %3075 = vmatpush1.msra.mxu0 %v3074
        %3076 = vmatprep.subr.mxu0 0.0
        %v3077 = vand.u32 %v378, 4294901760
        %3078 = vmatpush1.msra.mxu0 %v3077
        %3079 = vmatprep.subr.mxu0 0.0
        %v3080 = vand.u32 %v379, 4294901760
        %3081 = vmatpush1.msra.mxu0 %v3080
        %3082 = vmatprep.subr.mxu0 0.0
        %v3083 = vand.u32 %v380, 4294901760
        %3084 = vmatpush1.msra.mxu0 %v3083
        %3085 = vmatprep.subr.mxu0 0.0
        %v3086 = vand.u32 %v381, 4294901760
        %3087 = vmatpush1.msra.mxu0 %v3086
        %3088 = vmatprep.subr.mxu0 0.0
        %v3089 = vand.u32 %v382, 4294901760
        %3090 = vmatpush1.msra.mxu0 %v3089
        %3091 = vmatprep.subr.mxu0 0.0
        %v3092 = vand.u32 %v383, 4294901760
        %3093 = vmatpush1.msra.mxu0 %v3092
        %3094 = vmatprep.subr.mxu0 0.0
        %v3095 = vand.u32 %v384, 4294901760
        %3096 = vmatpush1.msra.mxu0 %v3095
        %3097 = vmatprep.subr.mxu0 0.0
        %v3098 = vand.u32 %v385, 4294901760
        %3099 = vmatpush1.msra.mxu0 %v3098
        %3100 = vmatprep.subr.mxu0 0.0
        %v3101 = vand.u32 %v386, 4294901760
        %3102 = vmatpush1.msra.mxu0 %v3101
        %3103 = vmatprep.subr.mxu0 0.0
        %v3104 = vand.u32 %v387, 4294901760
        %3105 = vmatpush1.msra.mxu0 %v3104
        %3106 = vmatprep.subr.mxu0 0.0
        %v3107 = vand.u32 %v388, 4294901760
        %3108 = vmatpush1.msra.mxu0 %v3107
        %v3109 = vand.u32 %v253, 4294901760
        %v3110 = vsub.f32 %v253, %v3109
        %v3111 = vand.u32 %v3110, 4294901760
        %3112 = vmatprep.mubr.f32.mxu0 %v3111
        %v3113 = vand.u32 %v252, 4294901760
        %v3114 = vsub.f32 %v252, %v3113
        %v3115 = vand.u32 %v3114, 4294901760
        %3116 = vmatmul.mubr.f32.gmra.mrb[0].mxu0 %v3115
        %v3117 = vpop.f32.mrb[0].mxu0
        %v3118 = vadd.f32 %v2884, %v3117
        %v3119 = vpop.f32.mrb[0].mxu0
        %v3120 = vand.u32 %v258, 4294901760
        %v3121 = vsub.f32 %v258, %v3120
        %v3122 = vand.u32 %v3121, 4294901760
        %3123 = vmatprep.mubr.f32.mxu0 %v3122
        %v3124 = vand.u32 %v257, 4294901760
        %v3125 = vsub.f32 %v257, %v3124
        %v3126 = vand.u32 %v3125, 4294901760
        %3127 = vmatmul.mubr.f32.gmra.mrb[0].mxu0 %v3126
        %v3128 = vpop.f32.mrb[0].mxu0
        %v3129 = vadd.f32 %v2893, %v3128
        %v3130 = vpop.f32.mrb[0].mxu0
        %v3131 = vand.u32 %v263, 4294901760
        %v3132 = vsub.f32 %v263, %v3131
        %v3133 = vand.u32 %v3132, 4294901760
        %3134 = vmatprep.mubr.f32.mxu0 %v3133
        %v3135 = vand.u32 %v262, 4294901760
        %v3136 = vsub.f32 %v262, %v3135
        %v3137 = vand.u32 %v3136, 4294901760
        %3138 = vmatmul.mubr.f32.gmra.mrb[0].mxu0 %v3137
        %v3139 = vpop.f32.mrb[0].mxu0
        %v3140 = vadd.f32 %v2902, %v3139
        %v3141 = vpop.f32.mrb[0].mxu0
        %v3142 = vand.u32 %v268, 4294901760
        %v3143 = vsub.f32 %v268, %v3142
        %v3144 = vand.u32 %v3143, 4294901760
        %3145 = vmatprep.mubr.f32.mxu0 %v3144
        %v3146 = vand.u32 %v267, 4294901760
        %v3147 = vsub.f32 %v267, %v3146
        %v3148 = vand.u32 %v3147, 4294901760
        %3149 = vmatmul.mubr.f32.gmra.mrb[0].mxu0 %v3148
        %v3150 = vpop.f32.mrb[0].mxu0
        %v3151 = vadd.f32 %v2911, %v3150
        %v3152 = vpop.f32.mrb[0].mxu0
        %v3153 = vand.u32 %v273, 4294901760
        %v3154 = vsub.f32 %v273, %v3153
        %v3155 = vand.u32 %v3154, 4294901760
        %3156 = vmatprep.mubr.f32.mxu0 %v3155
        %v3157 = vand.u32 %v272, 4294901760
        %v3158 = vsub.f32 %v272, %v3157
        %v3159 = vand.u32 %v3158, 4294901760
        %3160 = vmatmul.mubr.f32.gmra.mrb[0].mxu0 %v3159
        %v3161 = vpop.f32.mrb[0].mxu0
        %v3162 = vadd.f32 %v2920, %v3161
        %v3163 = vpop.f32.mrb[0].mxu0
        %v3164 = vand.u32 %v278, 4294901760
        %v3165 = vsub.f32 %v278, %v3164
        %v3166 = vand.u32 %v3165, 4294901760
        %3167 = vmatprep.mubr.f32.mxu0 %v3166
        %v3168 = vand.u32 %v277, 4294901760
        %v3169 = vsub.f32 %v277, %v3168
        %v3170 = vand.u32 %v3169, 4294901760
        %3171 = vmatmul.mubr.f32.gmra.mrb[0].mxu0 %v3170
        %v3172 = vpop.f32.mrb[0].mxu0
        %v3173 = vadd.f32 %v2929, %v3172
        %v3174 = vpop.f32.mrb[0].mxu0
        %v3175 = vand.u32 %v283, 4294901760
        %v3176 = vsub.f32 %v283, %v3175
        %v3177 = vand.u32 %v3176, 4294901760
        %3178 = vmatprep.mubr.f32.mxu0 %v3177
        %v3179 = vand.u32 %v282, 4294901760
        %v3180 = vsub.f32 %v282, %v3179
        %v3181 = vand.u32 %v3180, 4294901760
        %3182 = vmatmul.mubr.f32.gmra.mrb[0].mxu0 %v3181
        %v3183 = vpop.f32.mrb[0].mxu0
        %v3184 = vadd.f32 %v2938, %v3183
        %v3185 = vpop.f32.mrb[0].mxu0
        %v3186 = vand.u32 %v288, 4294901760
        %v3187 = vsub.f32 %v288, %v3186
        %v3188 = vand.u32 %v3187, 4294901760
        %3189 = vmatprep.mubr.f32.mxu0 %v3188
        %v3190 = vand.u32 %v287, 4294901760
        %v3191 = vsub.f32 %v287, %v3190
        %v3192 = vand.u32 %v3191, 4294901760
        %3193 = vmatmul.mubr.f32.gmra.mrb[0].mxu0 %v3192
        %v3194 = vpop.f32.mrb[0].mxu0
        %v3195 = vadd.f32 %v2947, %v3194
        %v3196 = vpop.f32.mrb[0].mxu0
        %v3197 = vand.u32 %v293, 4294901760
        %v3198 = vsub.f32 %v293, %v3197
        %v3199 = vand.u32 %v3198, 4294901760
        %3200 = vmatprep.mubr.f32.mxu0 %v3199
        %v3201 = vand.u32 %v292, 4294901760
        %v3202 = vsub.f32 %v292, %v3201
        %v3203 = vand.u32 %v3202, 4294901760
        %3204 = vmatmul.mubr.f32.gmra.mrb[0].mxu0 %v3203
        %v3205 = vpop.f32.mrb[0].mxu0
        %v3206 = vadd.f32 %v2956, %v3205
        %v3207 = vpop.f32.mrb[0].mxu0
        %v3208 = vand.u32 %v298, 4294901760
        %v3209 = vsub.f32 %v298, %v3208
        %v3210 = vand.u32 %v3209, 4294901760
        %3211 = vmatprep.mubr.f32.mxu0 %v3210
        %v3212 = vand.u32 %v297, 4294901760
        %v3213 = vsub.f32 %v297, %v3212
        %v3214 = vand.u32 %v3213, 4294901760
        %3215 = vmatmul.mubr.f32.gmra.mrb[0].mxu0 %v3214
        %v3216 = vpop.f32.mrb[0].mxu0
        %v3217 = vadd.f32 %v2965, %v3216
        %v3218 = vpop.f32.mrb[0].mxu0
        %v3219 = vand.u32 %v303, 4294901760
        %v3220 = vsub.f32 %v303, %v3219
        %v3221 = vand.u32 %v3220, 4294901760
        %3222 = vmatprep.mubr.f32.mxu0 %v3221
        %v3223 = vand.u32 %v302, 4294901760
        %v3224 = vsub.f32 %v302, %v3223
        %v3225 = vand.u32 %v3224, 4294901760
        %3226 = vmatmul.mubr.f32.gmra.mrb[0].mxu0 %v3225
        %v3227 = vpop.f32.mrb[0].mxu0
        %v3228 = vadd.f32 %v2974, %v3227
        %v3229 = vpop.f32.mrb[0].mxu0
        %v3230 = vand.u32 %v308, 4294901760
        %v3231 = vsub.f32 %v308, %v3230
        %v3232 = vand.u32 %v3231, 4294901760
        %3233 = vmatprep.mubr.f32.mxu0 %v3232
        %v3234 = vand.u32 %v307, 4294901760
        %v3235 = vsub.f32 %v307, %v3234
        %v3236 = vand.u32 %v3235, 4294901760
        %3237 = vmatmul.mubr.f32.gmra.mrb[0].mxu0 %v3236
        %v3238 = vpop.f32.mrb[0].mxu0
        %v3239 = vadd.f32 %v2983, %v3238
        %v3240 = vpop.f32.mrb[0].mxu0
        %v3241 = vand.u32 %v313, 4294901760
        %v3242 = vsub.f32 %v313, %v3241
        %v3243 = vand.u32 %v3242, 4294901760
        %3244 = vmatprep.mubr.f32.mxu0 %v3243
        %v3245 = vand.u32 %v312, 4294901760
        %v3246 = vsub.f32 %v312, %v3245
        %v3247 = vand.u32 %v3246, 4294901760
        %3248 = vmatmul.mubr.f32.gmra.mrb[0].mxu0 %v3247
        %v3249 = vpop.f32.mrb[0].mxu0
        %v3250 = vadd.f32 %v2992, %v3249
        %v3251 = vpop.f32.mrb[0].mxu0
        %v3252 = vand.u32 %v318, 4294901760
        %v3253 = vsub.f32 %v318, %v3252
        %v3254 = vand.u32 %v3253, 4294901760
        %3255 = vmatprep.mubr.f32.mxu0 %v3254
        %v3256 = vand.u32 %v317, 4294901760
        %v3257 = vsub.f32 %v317, %v3256
        %v3258 = vand.u32 %v3257, 4294901760
        %3259 = vmatmul.mubr.f32.gmra.mrb[0].mxu0 %v3258
        %v3260 = vpop.f32.mrb[0].mxu0
        %v3261 = vadd.f32 %v3001, %v3260
        %v3262 = vpop.f32.mrb[0].mxu0
        %v3263 = vand.u32 %v323, 4294901760
        %v3264 = vsub.f32 %v323, %v3263
        %v3265 = vand.u32 %v3264, 4294901760
        %3266 = vmatprep.mubr.f32.mxu0 %v3265
        %v3267 = vand.u32 %v322, 4294901760
        %v3268 = vsub.f32 %v322, %v3267
        %v3269 = vand.u32 %v3268, 4294901760
        %3270 = vmatmul.mubr.f32.gmra.mrb[0].mxu0 %v3269
        %v3271 = vpop.f32.mrb[0].mxu0
        %v3272 = vadd.f32 %v3010, %v3271
        %v3273 = vpop.f32.mrb[0].mxu0
        %3274 = vdwg.mxu0
        %3275 = vmatprep.subr.mxu0 0.0
        %v3276 = vand.u32 %v357, 4294901760
        %v3277 = vsub.f32 %v357, %v3276
        %v3278 = vand.u32 %v3277, 4294901760
        %3279 = vmatpush1.msra.mxu0 %v3278
        %3280 = vmatprep.subr.mxu0 0.0
        %v3281 = vand.u32 %v358, 4294901760
        %v3282 = vsub.f32 %v358, %v3281
        %v3283 = vand.u32 %v3282, 4294901760
        %3284 = vmatpush1.msra.mxu0 %v3283
        %3285 = vmatprep.subr.mxu0 0.0
        %v3286 = vand.u32 %v359, 4294901760
        %v3287 = vsub.f32 %v359, %v3286
        %v3288 = vand.u32 %v3287, 4294901760
        %3289 = vmatpush1.msra.mxu0 %v3288
        %3290 = vmatprep.subr.mxu0 0.0
        %v3291 = vand.u32 %v360, 4294901760
        %v3292 = vsub.f32 %v360, %v3291
        %v3293 = vand.u32 %v3292, 4294901760
        %3294 = vmatpush1.msra.mxu0 %v3293
        %3295 = vmatprep.subr.mxu0 0.0
        %v3296 = vand.u32 %v361, 4294901760
        %v3297 = vsub.f32 %v361, %v3296
        %v3298 = vand.u32 %v3297, 4294901760
        %3299 = vmatpush1.msra.mxu0 %v3298
        %3300 = vmatprep.subr.mxu0 0.0
        %v3301 = vand.u32 %v362, 4294901760
        %v3302 = vsub.f32 %v362, %v3301
        %v3303 = vand.u32 %v3302, 4294901760
        %3304 = vmatpush1.msra.mxu0 %v3303
        %3305 = vmatprep.subr.mxu0 0.0
        %v3306 = vand.u32 %v363, 4294901760
        %v3307 = vsub.f32 %v363, %v3306
        %v3308 = vand.u32 %v3307, 4294901760
        %3309 = vmatpush1.msra.mxu0 %v3308
        %3310 = vmatprep.subr.mxu0 0.0
        %v3311 = vand.u32 %v364, 4294901760
        %v3312 = vsub.f32 %v364, %v3311
        %v3313 = vand.u32 %v3312, 4294901760
        %3314 = vmatpush1.msra.mxu0 %v3313
        %3315 = vmatprep.subr.mxu0 0.0
        %v3316 = vand.u32 %v365, 4294901760
        %v3317 = vsub.f32 %v365, %v3316
        %v3318 = vand.u32 %v3317, 4294901760
        %3319 = vmatpush1.msra.mxu0 %v3318
        %3320 = vmatprep.subr.mxu0 0.0
        %v3321 = vand.u32 %v366, 4294901760
        %v3322 = vsub.f32 %v366, %v3321
        %v3323 = vand.u32 %v3322, 4294901760
        %3324 = vmatpush1.msra.mxu0 %v3323
        %3325 = vmatprep.subr.mxu0 0.0
        %v3326 = vand.u32 %v367, 4294901760
        %v3327 = vsub.f32 %v367, %v3326
        %v3328 = vand.u32 %v3327, 4294901760
        %3329 = vmatpush1.msra.mxu0 %v3328
        %3330 = vmatprep.subr.mxu0 0.0
        %v3331 = vand.u32 %v368, 4294901760
        %v3332 = vsub.f32 %v368, %v3331
        %v3333 = vand.u32 %v3332, 4294901760
        %3334 = vmatpush1.msra.mxu0 %v3333
        %3335 = vmatprep.subr.mxu0 0.0
        %v3336 = vand.u32 %v369, 4294901760
        %v3337 = vsub.f32 %v369, %v3336
        %v3338 = vand.u32 %v3337, 4294901760
        %3339 = vmatpush1.msra.mxu0 %v3338
        %3340 = vmatprep.subr.mxu0 0.0
        %v3341 = vand.u32 %v370, 4294901760
        %v3342 = vsub.f32 %v370, %v3341
        %v3343 = vand.u32 %v3342, 4294901760
        %3344 = vmatpush1.msra.mxu0 %v3343
        %3345 = vmatprep.subr.mxu0 0.0
        %v3346 = vand.u32 %v371, 4294901760
        %v3347 = vsub.f32 %v371, %v3346
        %v3348 = vand.u32 %v3347, 4294901760
        %3349 = vmatpush1.msra.mxu0 %v3348
        %3350 = vmatprep.subr.mxu0 0.0
        %v3351 = vand.u32 %v372, 4294901760
        %v3352 = vsub.f32 %v372, %v3351
        %v3353 = vand.u32 %v3352, 4294901760
        %3354 = vmatpush1.msra.mxu0 %v3353
        %3355 = vmatprep.subr.mxu0 0.0
        %v3356 = vand.u32 %v373, 4294901760
        %v3357 = vsub.f32 %v373, %v3356
        %v3358 = vand.u32 %v3357, 4294901760
        %3359 = vmatpush1.msra.mxu0 %v3358
        %3360 = vmatprep.subr.mxu0 0.0
        %v3361 = vand.u32 %v374, 4294901760
        %v3362 = vsub.f32 %v374, %v3361
        %v3363 = vand.u32 %v3362, 4294901760
        %3364 = vmatpush1.msra.mxu0 %v3363
        %3365 = vmatprep.subr.mxu0 0.0
        %v3366 = vand.u32 %v375, 4294901760
        %v3367 = vsub.f32 %v375, %v3366
        %v3368 = vand.u32 %v3367, 4294901760
        %3369 = vmatpush1.msra.mxu0 %v3368
        %3370 = vmatprep.subr.mxu0 0.0
        %v3371 = vand.u32 %v376, 4294901760
        %v3372 = vsub.f32 %v376, %v3371
        %v3373 = vand.u32 %v3372, 4294901760
        %3374 = vmatpush1.msra.mxu0 %v3373
        %3375 = vmatprep.subr.mxu0 0.0
        %v3376 = vand.u32 %v377, 4294901760
        %v3377 = vsub.f32 %v377, %v3376
        %v3378 = vand.u32 %v3377, 4294901760
        %3379 = vmatpush1.msra.mxu0 %v3378
        %3380 = vmatprep.subr.mxu0 0.0
        %v3381 = vand.u32 %v378, 4294901760
        %v3382 = vsub.f32 %v378, %v3381
        %v3383 = vand.u32 %v3382, 4294901760
        %3384 = vmatpush1.msra.mxu0 %v3383
        %3385 = vmatprep.subr.mxu0 0.0
        %v3386 = vand.u32 %v379, 4294901760
        %v3387 = vsub.f32 %v379, %v3386
        %v3388 = vand.u32 %v3387, 4294901760
        %3389 = vmatpush1.msra.mxu0 %v3388
        %3390 = vmatprep.subr.mxu0 0.0
        %v3391 = vand.u32 %v380, 4294901760
        %v3392 = vsub.f32 %v380, %v3391
        %v3393 = vand.u32 %v3392, 4294901760
        %3394 = vmatpush1.msra.mxu0 %v3393
        %3395 = vmatprep.subr.mxu0 0.0
        %v3396 = vand.u32 %v381, 4294901760
        %v3397 = vsub.f32 %v381, %v3396
        %v3398 = vand.u32 %v3397, 4294901760
        %3399 = vmatpush1.msra.mxu0 %v3398
        %3400 = vmatprep.subr.mxu0 0.0
        %v3401 = vand.u32 %v382, 4294901760
        %v3402 = vsub.f32 %v382, %v3401
        %v3403 = vand.u32 %v3402, 4294901760
        %3404 = vmatpush1.msra.mxu0 %v3403
        %3405 = vmatprep.subr.mxu0 0.0
        %v3406 = vand.u32 %v383, 4294901760
        %v3407 = vsub.f32 %v383, %v3406
        %v3408 = vand.u32 %v3407, 4294901760
        %3409 = vmatpush1.msra.mxu0 %v3408
        %3410 = vmatprep.subr.mxu0 0.0
        %v3411 = vand.u32 %v384, 4294901760
        %v3412 = vsub.f32 %v384, %v3411
        %v3413 = vand.u32 %v3412, 4294901760
        %3414 = vmatpush1.msra.mxu0 %v3413
        %3415 = vmatprep.subr.mxu0 0.0
        %v3416 = vand.u32 %v385, 4294901760
        %v3417 = vsub.f32 %v385, %v3416
        %v3418 = vand.u32 %v3417, 4294901760
        %3419 = vmatpush1.msra.mxu0 %v3418
        %3420 = vmatprep.subr.mxu0 0.0
        %v3421 = vand.u32 %v386, 4294901760
        %v3422 = vsub.f32 %v386, %v3421
        %v3423 = vand.u32 %v3422, 4294901760
        %3424 = vmatpush1.msra.mxu0 %v3423
        %3425 = vmatprep.subr.mxu0 0.0
        %v3426 = vand.u32 %v387, 4294901760
        %v3427 = vsub.f32 %v387, %v3426
        %v3428 = vand.u32 %v3427, 4294901760
        %3429 = vmatpush1.msra.mxu0 %v3428
        %3430 = vmatprep.subr.mxu0 0.0
        %v3431 = vand.u32 %v388, 4294901760
        %v3432 = vsub.f32 %v388, %v3431
        %v3433 = vand.u32 %v3432, 4294901760
        %3434 = vmatpush1.msra.mxu0 %v3433
        %v3435 = vand.u32 %v253, 4294901760
        %3436 = vmatprep.mubr.f32.mxu0 %v3435
        %v3437 = vand.u32 %v252, 4294901760
        %3438 = vmatmul.mubr.f32.gmra.mrb[0].mxu0 %v3437
        %v3439 = vpop.f32.mrb[0].mxu0
        %v3440 = vadd.f32 %v3118, %v3439
        %v3441 = vpop.f32.mrb[0].mxu0
        %v3442 = vand.u32 %v258, 4294901760
        %3443 = vmatprep.mubr.f32.mxu0 %v3442
        %v3444 = vand.u32 %v257, 4294901760
        %3445 = vmatmul.mubr.f32.gmra.mrb[0].mxu0 %v3444
        %v3446 = vpop.f32.mrb[0].mxu0
        %v3447 = vadd.f32 %v3129, %v3446
        %v3448 = vpop.f32.mrb[0].mxu0
        %v3449 = vand.u32 %v263, 4294901760
        %3450 = vmatprep.mubr.f32.mxu0 %v3449
        %v3451 = vand.u32 %v262, 4294901760
        %3452 = vmatmul.mubr.f32.gmra.mrb[0].mxu0 %v3451
        %v3453 = vpop.f32.mrb[0].mxu0
        %v3454 = vadd.f32 %v3140, %v3453
        %v3455 = vpop.f32.mrb[0].mxu0
        %v3456 = vand.u32 %v268, 4294901760
        %3457 = vmatprep.mubr.f32.mxu0 %v3456
        %v3458 = vand.u32 %v267, 4294901760
        %3459 = vmatmul.mubr.f32.gmra.mrb[0].mxu0 %v3458
        %v3460 = vpop.f32.mrb[0].mxu0
        %v3461 = vadd.f32 %v3151, %v3460
        %v3462 = vpop.f32.mrb[0].mxu0
        %v3463 = vand.u32 %v273, 4294901760
        %3464 = vmatprep.mubr.f32.mxu0 %v3463
        %v3465 = vand.u32 %v272, 4294901760
        %3466 = vmatmul.mubr.f32.gmra.mrb[0].mxu0 %v3465
        %v3467 = vpop.f32.mrb[0].mxu0
        %v3468 = vadd.f32 %v3162, %v3467
        %v3469 = vpop.f32.mrb[0].mxu0
        %v3470 = vand.u32 %v278, 4294901760
        %3471 = vmatprep.mubr.f32.mxu0 %v3470
        %v3472 = vand.u32 %v277, 4294901760
        %3473 = vmatmul.mubr.f32.gmra.mrb[0].mxu0 %v3472
        %v3474 = vpop.f32.mrb[0].mxu0
        %v3475 = vadd.f32 %v3173, %v3474
        %v3476 = vpop.f32.mrb[0].mxu0
        %v3477 = vand.u32 %v283, 4294901760
        %3478 = vmatprep.mubr.f32.mxu0 %v3477
        %v3479 = vand.u32 %v282, 4294901760
        %3480 = vmatmul.mubr.f32.gmra.mrb[0].mxu0 %v3479
        %v3481 = vpop.f32.mrb[0].mxu0
        %v3482 = vadd.f32 %v3184, %v3481
        %v3483 = vpop.f32.mrb[0].mxu0
        %v3484 = vand.u32 %v288, 4294901760
        %3485 = vmatprep.mubr.f32.mxu0 %v3484
        %v3486 = vand.u32 %v287, 4294901760
        %3487 = vmatmul.mubr.f32.gmra.mrb[0].mxu0 %v3486
        %v3488 = vpop.f32.mrb[0].mxu0
        %v3489 = vadd.f32 %v3195, %v3488
        %v3490 = vpop.f32.mrb[0].mxu0
        %v3491 = vand.u32 %v293, 4294901760
        %3492 = vmatprep.mubr.f32.mxu0 %v3491
        %v3493 = vand.u32 %v292, 4294901760
        %3494 = vmatmul.mubr.f32.gmra.mrb[0].mxu0 %v3493
        %v3495 = vpop.f32.mrb[0].mxu0
        %v3496 = vadd.f32 %v3206, %v3495
        %v3497 = vpop.f32.mrb[0].mxu0
        %v3498 = vand.u32 %v298, 4294901760
        %3499 = vmatprep.mubr.f32.mxu0 %v3498
        %v3500 = vand.u32 %v297, 4294901760
        %3501 = vmatmul.mubr.f32.gmra.mrb[0].mxu0 %v3500
        %v3502 = vpop.f32.mrb[0].mxu0
        %v3503 = vadd.f32 %v3217, %v3502
        %v3504 = vpop.f32.mrb[0].mxu0
        %v3505 = vand.u32 %v303, 4294901760
        %3506 = vmatprep.mubr.f32.mxu0 %v3505
        %v3507 = vand.u32 %v302, 4294901760
        %3508 = vmatmul.mubr.f32.gmra.mrb[0].mxu0 %v3507
        %v3509 = vpop.f32.mrb[0].mxu0
        %v3510 = vadd.f32 %v3228, %v3509
        %v3511 = vpop.f32.mrb[0].mxu0
        %v3512 = vand.u32 %v308, 4294901760
        %3513 = vmatprep.mubr.f32.mxu0 %v3512
        %v3514 = vand.u32 %v307, 4294901760
        %3515 = vmatmul.mubr.f32.gmra.mrb[0].mxu0 %v3514
        %v3516 = vpop.f32.mrb[0].mxu0
        %v3517 = vadd.f32 %v3239, %v3516
        %v3518 = vpop.f32.mrb[0].mxu0
        %v3519 = vand.u32 %v313, 4294901760
        %3520 = vmatprep.mubr.f32.mxu0 %v3519
        %v3521 = vand.u32 %v312, 4294901760
        %3522 = vmatmul.mubr.f32.gmra.mrb[0].mxu0 %v3521
        %v3523 = vpop.f32.mrb[0].mxu0
        %v3524 = vadd.f32 %v3250, %v3523
        %v3525 = vpop.f32.mrb[0].mxu0
        %v3526 = vand.u32 %v318, 4294901760
        %3527 = vmatprep.mubr.f32.mxu0 %v3526
        %v3528 = vand.u32 %v317, 4294901760
        %3529 = vmatmul.mubr.f32.gmra.mrb[0].mxu0 %v3528
        %v3530 = vpop.f32.mrb[0].mxu0
        %v3531 = vadd.f32 %v3261, %v3530
        %v3532 = vpop.f32.mrb[0].mxu0
        %v3533 = vand.u32 %v323, 4294901760
        %3534 = vmatprep.mubr.f32.mxu0 %v3533
        %v3535 = vand.u32 %v322, 4294901760
        %3536 = vmatmul.mubr.f32.gmra.mrb[0].mxu0 %v3535
        %v3537 = vpop.f32.mrb[0].mxu0
        %v3538 = vadd.f32 %v3272, %v3537
        %v3539 = vpop.f32.mrb[0].mxu0
        %3540 = vdwg.mxu0
        %3541 = vmatprep.subr.mxu0 0.0
        %v3542 = vand.u32 %v357, 4294901760
        %3543 = vmatpush1.msra.mxu0 %v3542
        %3544 = vmatprep.subr.mxu0 0.0
        %v3545 = vand.u32 %v358, 4294901760
        %3546 = vmatpush1.msra.mxu0 %v3545
        %3547 = vmatprep.subr.mxu0 0.0
        %v3548 = vand.u32 %v359, 4294901760
        %3549 = vmatpush1.msra.mxu0 %v3548
        %3550 = vmatprep.subr.mxu0 0.0
        %v3551 = vand.u32 %v360, 4294901760
        %3552 = vmatpush1.msra.mxu0 %v3551
        %3553 = vmatprep.subr.mxu0 0.0
        %v3554 = vand.u32 %v361, 4294901760
        %3555 = vmatpush1.msra.mxu0 %v3554
        %3556 = vmatprep.subr.mxu0 0.0
        %v3557 = vand.u32 %v362, 4294901760
        %3558 = vmatpush1.msra.mxu0 %v3557
        %3559 = vmatprep.subr.mxu0 0.0
        %v3560 = vand.u32 %v363, 4294901760
        %3561 = vmatpush1.msra.mxu0 %v3560
        %3562 = vmatprep.subr.mxu0 0.0
        %v3563 = vand.u32 %v364, 4294901760
        %3564 = vmatpush1.msra.mxu0 %v3563
        %3565 = vmatprep.subr.mxu0 0.0
        %v3566 = vand.u32 %v365, 4294901760
        %3567 = vmatpush1.msra.mxu0 %v3566
        %3568 = vmatprep.subr.mxu0 0.0
        %v3569 = vand.u32 %v366, 4294901760
        %3570 = vmatpush1.msra.mxu0 %v3569
        %3571 = vmatprep.subr.mxu0 0.0
        %v3572 = vand.u32 %v367, 4294901760
        %3573 = vmatpush1.msra.mxu0 %v3572
        %3574 = vmatprep.subr.mxu0 0.0
        %v3575 = vand.u32 %v368, 4294901760
        %3576 = vmatpush1.msra.mxu0 %v3575
        %3577 = vmatprep.subr.mxu0 0.0
        %v3578 = vand.u32 %v369, 4294901760
        %3579 = vmatpush1.msra.mxu0 %v3578
        %3580 = vmatprep.subr.mxu0 0.0
        %v3581 = vand.u32 %v370, 4294901760
        %3582 = vmatpush1.msra.mxu0 %v3581
        %3583 = vmatprep.subr.mxu0 0.0
        %v3584 = vand.u32 %v371, 4294901760
        %3585 = vmatpush1.msra.mxu0 %v3584
        %3586 = vmatprep.subr.mxu0 0.0
        %v3587 = vand.u32 %v372, 4294901760
        %3588 = vmatpush1.msra.mxu0 %v3587
        %3589 = vmatprep.subr.mxu0 0.0
        %v3590 = vand.u32 %v373, 4294901760
        %3591 = vmatpush1.msra.mxu0 %v3590
        %3592 = vmatprep.subr.mxu0 0.0
        %v3593 = vand.u32 %v374, 4294901760
        %3594 = vmatpush1.msra.mxu0 %v3593
        %3595 = vmatprep.subr.mxu0 0.0
        %v3596 = vand.u32 %v375, 4294901760
        %3597 = vmatpush1.msra.mxu0 %v3596
        %3598 = vmatprep.subr.mxu0 0.0
        %v3599 = vand.u32 %v376, 4294901760
        %3600 = vmatpush1.msra.mxu0 %v3599
        %3601 = vmatprep.subr.mxu0 0.0
        %v3602 = vand.u32 %v377, 4294901760
        %3603 = vmatpush1.msra.mxu0 %v3602
        %3604 = vmatprep.subr.mxu0 0.0
        %v3605 = vand.u32 %v378, 4294901760
        %3606 = vmatpush1.msra.mxu0 %v3605
        %3607 = vmatprep.subr.mxu0 0.0
        %v3608 = vand.u32 %v379, 4294901760
        %3609 = vmatpush1.msra.mxu0 %v3608
        %3610 = vmatprep.subr.mxu0 0.0
        %v3611 = vand.u32 %v380, 4294901760
        %3612 = vmatpush1.msra.mxu0 %v3611
        %3613 = vmatprep.subr.mxu0 0.0
        %v3614 = vand.u32 %v381, 4294901760
        %3615 = vmatpush1.msra.mxu0 %v3614
        %3616 = vmatprep.subr.mxu0 0.0
        %v3617 = vand.u32 %v382, 4294901760
        %3618 = vmatpush1.msra.mxu0 %v3617
        %3619 = vmatprep.subr.mxu0 0.0
        %v3620 = vand.u32 %v383, 4294901760
        %3621 = vmatpush1.msra.mxu0 %v3620
        %3622 = vmatprep.subr.mxu0 0.0
        %v3623 = vand.u32 %v384, 4294901760
        %3624 = vmatpush1.msra.mxu0 %v3623
        %3625 = vmatprep.subr.mxu0 0.0
        %v3626 = vand.u32 %v385, 4294901760
        %3627 = vmatpush1.msra.mxu0 %v3626
        %3628 = vmatprep.subr.mxu0 0.0
        %v3629 = vand.u32 %v386, 4294901760
        %3630 = vmatpush1.msra.mxu0 %v3629
        %3631 = vmatprep.subr.mxu0 0.0
        %v3632 = vand.u32 %v387, 4294901760
        %3633 = vmatpush1.msra.mxu0 %v3632
        %3634 = vmatprep.subr.mxu0 0.0
        %v3635 = vand.u32 %v388, 4294901760
        %3636 = vmatpush1.msra.mxu0 %v3635
        %v3637 = vand.u32 %v253, 4294901760
        %3638 = vmatprep.mubr.f32.mxu0 %v3637
        %v3639 = vand.u32 %v252, 4294901760
        %3640 = vmatmul.mubr.f32.gmra.mrb[0].mxu0 %v3639
        %v3641 = vpop.f32.mrb[0].mxu0
        %v3642 = vadd.f32 %v3440, %v3641
        %v3643 = vpop.f32.mrb[0].mxu0
        %v3644 = vand.u32 %v258, 4294901760
        %3645 = vmatprep.mubr.f32.mxu0 %v3644
        %v3646 = vand.u32 %v257, 4294901760
        %3647 = vmatmul.mubr.f32.gmra.mrb[0].mxu0 %v3646
        %v3648 = vpop.f32.mrb[0].mxu0
        %v3649 = vadd.f32 %v3447, %v3648
        %v3650 = vpop.f32.mrb[0].mxu0
        %v3651 = vand.u32 %v263, 4294901760
        %3652 = vmatprep.mubr.f32.mxu0 %v3651
        %v3653 = vand.u32 %v262, 4294901760
        %3654 = vmatmul.mubr.f32.gmra.mrb[0].mxu0 %v3653
        %v3655 = vpop.f32.mrb[0].mxu0
        %v3656 = vadd.f32 %v3454, %v3655
        %v3657 = vpop.f32.mrb[0].mxu0
        %v3658 = vand.u32 %v268, 4294901760
        %3659 = vmatprep.mubr.f32.mxu0 %v3658
        %v3660 = vand.u32 %v267, 4294901760
        %3661 = vmatmul.mubr.f32.gmra.mrb[0].mxu0 %v3660
        %v3662 = vpop.f32.mrb[0].mxu0
        %v3663 = vadd.f32 %v3461, %v3662
        %v3664 = vpop.f32.mrb[0].mxu0
        %v3665 = vand.u32 %v273, 4294901760
        %3666 = vmatprep.mubr.f32.mxu0 %v3665
        %v3667 = vand.u32 %v272, 4294901760
        %3668 = vmatmul.mubr.f32.gmra.mrb[0].mxu0 %v3667
        %v3669 = vpop.f32.mrb[0].mxu0
        %v3670 = vadd.f32 %v3468, %v3669
        %v3671 = vpop.f32.mrb[0].mxu0
        %v3672 = vand.u32 %v278, 4294901760
        %3673 = vmatprep.mubr.f32.mxu0 %v3672
        %v3674 = vand.u32 %v277, 4294901760
        %3675 = vmatmul.mubr.f32.gmra.mrb[0].mxu0 %v3674
        %v3676 = vpop.f32.mrb[0].mxu0
        %v3677 = vadd.f32 %v3475, %v3676
        %v3678 = vpop.f32.mrb[0].mxu0
        %v3679 = vand.u32 %v283, 4294901760
        %3680 = vmatprep.mubr.f32.mxu0 %v3679
        %v3681 = vand.u32 %v282, 4294901760
        %3682 = vmatmul.mubr.f32.gmra.mrb[0].mxu0 %v3681
        %v3683 = vpop.f32.mrb[0].mxu0
        %v3684 = vadd.f32 %v3482, %v3683
        %v3685 = vpop.f32.mrb[0].mxu0
        %v3686 = vand.u32 %v288, 4294901760
        %3687 = vmatprep.mubr.f32.mxu0 %v3686
        %v3688 = vand.u32 %v287, 4294901760
        %3689 = vmatmul.mubr.f32.gmra.mrb[0].mxu0 %v3688
        %v3690 = vpop.f32.mrb[0].mxu0
        %v3691 = vadd.f32 %v3489, %v3690
        %v3692 = vpop.f32.mrb[0].mxu0
        %v3693 = vand.u32 %v293, 4294901760
        %3694 = vmatprep.mubr.f32.mxu0 %v3693
        %v3695 = vand.u32 %v292, 4294901760
        %3696 = vmatmul.mubr.f32.gmra.mrb[0].mxu0 %v3695
        %v3697 = vpop.f32.mrb[0].mxu0
        %v3698 = vadd.f32 %v3496, %v3697
        %v3699 = vpop.f32.mrb[0].mxu0
        %v3700 = vand.u32 %v298, 4294901760
        %3701 = vmatprep.mubr.f32.mxu0 %v3700
        %v3702 = vand.u32 %v297, 4294901760
        %3703 = vmatmul.mubr.f32.gmra.mrb[0].mxu0 %v3702
        %v3704 = vpop.f32.mrb[0].mxu0
        %v3705 = vadd.f32 %v3503, %v3704
        %v3706 = vpop.f32.mrb[0].mxu0
        %v3707 = vand.u32 %v303, 4294901760
        %3708 = vmatprep.mubr.f32.mxu0 %v3707
        %v3709 = vand.u32 %v302, 4294901760
        %3710 = vmatmul.mubr.f32.gmra.mrb[0].mxu0 %v3709
        %v3711 = vpop.f32.mrb[0].mxu0
        %v3712 = vadd.f32 %v3510, %v3711
        %v3713 = vpop.f32.mrb[0].mxu0
        %v3714 = vand.u32 %v308, 4294901760
        %3715 = vmatprep.mubr.f32.mxu0 %v3714
        %v3716 = vand.u32 %v307, 4294901760
        %3717 = vmatmul.mubr.f32.gmra.mrb[0].mxu0 %v3716
        %v3718 = vpop.f32.mrb[0].mxu0
        %v3719 = vadd.f32 %v3517, %v3718
        %v3720 = vpop.f32.mrb[0].mxu0
        %v3721 = vand.u32 %v313, 4294901760
        %3722 = vmatprep.mubr.f32.mxu0 %v3721
        %v3723 = vand.u32 %v312, 4294901760
        %3724 = vmatmul.mubr.f32.gmra.mrb[0].mxu0 %v3723
        %v3725 = vpop.f32.mrb[0].mxu0
        %v3726 = vadd.f32 %v3524, %v3725
        %v3727 = vpop.f32.mrb[0].mxu0
        %v3728 = vand.u32 %v318, 4294901760
        %3729 = vmatprep.mubr.f32.mxu0 %v3728
        %v3730 = vand.u32 %v317, 4294901760
        %3731 = vmatmul.mubr.f32.gmra.mrb[0].mxu0 %v3730
        %v3732 = vpop.f32.mrb[0].mxu0
        %v3733 = vadd.f32 %v3531, %v3732
        %v3734 = vpop.f32.mrb[0].mxu0
        %v3735 = vand.u32 %v323, 4294901760
        %3736 = vmatprep.mubr.f32.mxu0 %v3735
        %v3737 = vand.u32 %v322, 4294901760
        %3738 = vmatmul.mubr.f32.gmra.mrb[0].mxu0 %v3737
        %v3739 = vpop.f32.mrb[0].mxu0
        %v3740 = vadd.f32 %v3538, %v3739
        %v3741 = vpop.f32.mrb[0].mxu0
        %3742 = vdwg.mxu0
        %3743 = vmatprep.subr.mxu0 0.0
        %v3744 = vand.u32 %v389, 4294901760
        %3745 = vmatpush1.msra.mxu0 %v3744
        %3746 = vmatprep.subr.mxu0 0.0
        %v3747 = vand.u32 %v390, 4294901760
        %3748 = vmatpush1.msra.mxu0 %v3747
        %3749 = vmatprep.subr.mxu0 0.0
        %v3750 = vand.u32 %v391, 4294901760
        %3751 = vmatpush1.msra.mxu0 %v3750
        %3752 = vmatprep.subr.mxu0 0.0
        %v3753 = vand.u32 %v392, 4294901760
        %3754 = vmatpush1.msra.mxu0 %v3753
        %3755 = vmatprep.subr.mxu0 0.0
        %v3756 = vand.u32 %v449, 4294901760
        %3757 = vmatpush1.msra.mxu0 %v3756
        %3758 = vmatprep.subr.mxu0 0.0
        %3759 = vmatpush1.msra.mxu0 0.0
        %3760 = vmatprep.subr.mxu0 0.0
        %3761 = vmatpush1.msra.mxu0 0.0
        %3762 = vmatprep.subr.mxu0 0.0
        %3763 = vmatpush1.msra.mxu0 0.0
        %3764 = vmatprep.subr.mxu0 0.0
        %3765 = vmatpush1.msra.mxu0 0.0
        %3766 = vmatprep.subr.mxu0 0.0
        %3767 = vmatpush1.msra.mxu0 0.0
        %3768 = vmatprep.subr.mxu0 0.0
        %3769 = vmatpush1.msra.mxu0 0.0
        %3770 = vmatprep.subr.mxu0 0.0
        %3771 = vmatpush1.msra.mxu0 0.0
        %3772 = vmatprep.subr.mxu0 0.0
        %3773 = vmatpush1.msra.mxu0 0.0
        %3774 = vmatprep.subr.mxu0 0.0
        %3775 = vmatpush1.msra.mxu0 0.0
        %3776 = vmatprep.subr.mxu0 0.0
        %3777 = vmatpush1.msra.mxu0 0.0
        %3778 = vmatprep.subr.mxu0 0.0
        %3779 = vmatpush1.msra.mxu0 0.0
        %3780 = vmatprep.subr.mxu0 0.0
        %3781 = vmatpush1.msra.mxu0 0.0
        %3782 = vmatprep.subr.mxu0 0.0
        %3783 = vmatpush1.msra.mxu0 0.0
        %3784 = vmatprep.subr.mxu0 0.0
        %3785 = vmatpush1.msra.mxu0 0.0
        %3786 = vmatprep.subr.mxu0 0.0
        %3787 = vmatpush1.msra.mxu0 0.0
        %3788 = vmatprep.subr.mxu0 0.0
        %3789 = vmatpush1.msra.mxu0 0.0
        %3790 = vmatprep.subr.mxu0 0.0
        %3791 = vmatpush1.msra.mxu0 0.0
        %3792 = vmatprep.subr.mxu0 0.0
        %3793 = vmatpush1.msra.mxu0 0.0
        %3794 = vmatprep.subr.mxu0 0.0
        %3795 = vmatpush1.msra.mxu0 0.0
        %3796 = vmatprep.subr.mxu0 0.0
        %3797 = vmatpush1.msra.mxu0 0.0
        %3798 = vmatprep.subr.mxu0 0.0
        %3799 = vmatpush1.msra.mxu0 0.0
        %3800 = vmatprep.subr.mxu0 0.0
        %3801 = vmatpush1.msra.mxu0 0.0
        %3802 = vmatprep.subr.mxu0 0.0
        %3803 = vmatpush1.msra.mxu0 0.0
        %3804 = vmatprep.subr.mxu0 0.0
        %3805 = vmatpush1.msra.mxu0 0.0
        %3806 = vmatprep.subr.mxu0 0.0
        %3807 = vmatpush1.msra.mxu0 0.0
        %3808 = vmatprep.subr.mxu0 0.0
        %3809 = vmatpush1.msra.mxu0 0.0
        %3810 = vmatprep.subr.mxu0 0.0
        %3811 = vmatpush1.msra.mxu0 0.0
        %3812 = vmatprep.mubr.f32.mxu0 0.0
        %v3813 = vand.u32 %v403, 4294901760
        %v3814 = vsub.f32 %v403, %v3813
        %v3815 = vand.u32 %v3814, 4294901760
        %v3816 = vsub.f32 %v3814, %v3815
        %v3817 = vand.u32 %v3816, 4294901760
        %3818 = vmatmul.mubr.f32.gmra.mrb[0].mxu0 %v3817
        %v3819 = vpop.f32.mrb[0].mxu0
        %v3820 = vadd.f32 %v3642, %v3819
        %v3821 = vpop.f32.mrb[0].mxu0
        %3822 = vmatprep.mubr.f32.mxu0 0.0
        %v3823 = vand.u32 %v406, 4294901760
        %v3824 = vsub.f32 %v406, %v3823
        %v3825 = vand.u32 %v3824, 4294901760
        %v3826 = vsub.f32 %v3824, %v3825
        %v3827 = vand.u32 %v3826, 4294901760
        %3828 = vmatmul.mubr.f32.gmra.mrb[0].mxu0 %v3827
        %v3829 = vpop.f32.mrb[0].mxu0
        %v3830 = vadd.f32 %v3649, %v3829
        %v3831 = vpop.f32.mrb[0].mxu0
        %3832 = vmatprep.mubr.f32.mxu0 0.0
        %v3833 = vand.u32 %v409, 4294901760
        %v3834 = vsub.f32 %v409, %v3833
        %v3835 = vand.u32 %v3834, 4294901760
        %v3836 = vsub.f32 %v3834, %v3835
        %v3837 = vand.u32 %v3836, 4294901760
        %3838 = vmatmul.mubr.f32.gmra.mrb[0].mxu0 %v3837
        %v3839 = vpop.f32.mrb[0].mxu0
        %v3840 = vadd.f32 %v3656, %v3839
        %v3841 = vpop.f32.mrb[0].mxu0
        %3842 = vmatprep.mubr.f32.mxu0 0.0
        %v3843 = vand.u32 %v412, 4294901760
        %v3844 = vsub.f32 %v412, %v3843
        %v3845 = vand.u32 %v3844, 4294901760
        %v3846 = vsub.f32 %v3844, %v3845
        %v3847 = vand.u32 %v3846, 4294901760
        %3848 = vmatmul.mubr.f32.gmra.mrb[0].mxu0 %v3847
        %v3849 = vpop.f32.mrb[0].mxu0
        %v3850 = vadd.f32 %v3663, %v3849
        %v3851 = vpop.f32.mrb[0].mxu0
        %3852 = vmatprep.mubr.f32.mxu0 0.0
        %v3853 = vand.u32 %v415, 4294901760
        %v3854 = vsub.f32 %v415, %v3853
        %v3855 = vand.u32 %v3854, 4294901760
        %v3856 = vsub.f32 %v3854, %v3855
        %v3857 = vand.u32 %v3856, 4294901760
        %3858 = vmatmul.mubr.f32.gmra.mrb[0].mxu0 %v3857
        %v3859 = vpop.f32.mrb[0].mxu0
        %v3860 = vadd.f32 %v3670, %v3859
        %v3861 = vpop.f32.mrb[0].mxu0
        %3862 = vmatprep.mubr.f32.mxu0 0.0
        %v3863 = vand.u32 %v418, 4294901760
        %v3864 = vsub.f32 %v418, %v3863
        %v3865 = vand.u32 %v3864, 4294901760
        %v3866 = vsub.f32 %v3864, %v3865
        %v3867 = vand.u32 %v3866, 4294901760
        %3868 = vmatmul.mubr.f32.gmra.mrb[0].mxu0 %v3867
        %v3869 = vpop.f32.mrb[0].mxu0
        %v3870 = vadd.f32 %v3677, %v3869
        %v3871 = vpop.f32.mrb[0].mxu0
        %3872 = vmatprep.mubr.f32.mxu0 0.0
        %v3873 = vand.u32 %v421, 4294901760
        %v3874 = vsub.f32 %v421, %v3873
        %v3875 = vand.u32 %v3874, 4294901760
        %v3876 = vsub.f32 %v3874, %v3875
        %v3877 = vand.u32 %v3876, 4294901760
        %3878 = vmatmul.mubr.f32.gmra.mrb[0].mxu0 %v3877
        %v3879 = vpop.f32.mrb[0].mxu0
        %v3880 = vadd.f32 %v3684, %v3879
        %v3881 = vpop.f32.mrb[0].mxu0
        %3882 = vmatprep.mubr.f32.mxu0 0.0
        %v3883 = vand.u32 %v424, 4294901760
        %v3884 = vsub.f32 %v424, %v3883
        %v3885 = vand.u32 %v3884, 4294901760
        %v3886 = vsub.f32 %v3884, %v3885
        %v3887 = vand.u32 %v3886, 4294901760
        %3888 = vmatmul.mubr.f32.gmra.mrb[0].mxu0 %v3887
        %v3889 = vpop.f32.mrb[0].mxu0
        %v3890 = vadd.f32 %v3691, %v3889
        %v3891 = vpop.f32.mrb[0].mxu0
        %3892 = vmatprep.mubr.f32.mxu0 0.0
        %v3893 = vand.u32 %v427, 4294901760
        %v3894 = vsub.f32 %v427, %v3893
        %v3895 = vand.u32 %v3894, 4294901760
        %v3896 = vsub.f32 %v3894, %v3895
        %v3897 = vand.u32 %v3896, 4294901760
        %3898 = vmatmul.mubr.f32.gmra.mrb[0].mxu0 %v3897
        %v3899 = vpop.f32.mrb[0].mxu0
        %v3900 = vadd.f32 %v3698, %v3899
        %v3901 = vpop.f32.mrb[0].mxu0
        %3902 = vmatprep.mubr.f32.mxu0 0.0
        %v3903 = vand.u32 %v430, 4294901760
        %v3904 = vsub.f32 %v430, %v3903
        %v3905 = vand.u32 %v3904, 4294901760
        %v3906 = vsub.f32 %v3904, %v3905
        %v3907 = vand.u32 %v3906, 4294901760
        %3908 = vmatmul.mubr.f32.gmra.mrb[0].mxu0 %v3907
        %v3909 = vpop.f32.mrb[0].mxu0
        %v3910 = vadd.f32 %v3705, %v3909
        %v3911 = vpop.f32.mrb[0].mxu0
        %3912 = vmatprep.mubr.f32.mxu0 0.0
        %v3913 = vand.u32 %v433, 4294901760
        %v3914 = vsub.f32 %v433, %v3913
        %v3915 = vand.u32 %v3914, 4294901760
        %v3916 = vsub.f32 %v3914, %v3915
        %v3917 = vand.u32 %v3916, 4294901760
        %3918 = vmatmul.mubr.f32.gmra.mrb[0].mxu0 %v3917
        %v3919 = vpop.f32.mrb[0].mxu0
        %v3920 = vadd.f32 %v3712, %v3919
        %v3921 = vpop.f32.mrb[0].mxu0
        %3922 = vmatprep.mubr.f32.mxu0 0.0
        %v3923 = vand.u32 %v436, 4294901760
        %v3924 = vsub.f32 %v436, %v3923
        %v3925 = vand.u32 %v3924, 4294901760
        %v3926 = vsub.f32 %v3924, %v3925
        %v3927 = vand.u32 %v3926, 4294901760
        %3928 = vmatmul.mubr.f32.gmra.mrb[0].mxu0 %v3927
        %v3929 = vpop.f32.mrb[0].mxu0
        %v3930 = vadd.f32 %v3719, %v3929
        %v3931 = vpop.f32.mrb[0].mxu0
        %3932 = vmatprep.mubr.f32.mxu0 0.0
        %v3933 = vand.u32 %v439, 4294901760
        %v3934 = vsub.f32 %v439, %v3933
        %v3935 = vand.u32 %v3934, 4294901760
        %v3936 = vsub.f32 %v3934, %v3935
        %v3937 = vand.u32 %v3936, 4294901760
        %3938 = vmatmul.mubr.f32.gmra.mrb[0].mxu0 %v3937
        %v3939 = vpop.f32.mrb[0].mxu0
        %v3940 = vadd.f32 %v3726, %v3939
        %v3941 = vpop.f32.mrb[0].mxu0
        %3942 = vmatprep.mubr.f32.mxu0 0.0
        %v3943 = vand.u32 %v442, 4294901760
        %v3944 = vsub.f32 %v442, %v3943
        %v3945 = vand.u32 %v3944, 4294901760
        %v3946 = vsub.f32 %v3944, %v3945
        %v3947 = vand.u32 %v3946, 4294901760
        %3948 = vmatmul.mubr.f32.gmra.mrb[0].mxu0 %v3947
        %v3949 = vpop.f32.mrb[0].mxu0
        %v3950 = vadd.f32 %v3733, %v3949
        %v3951 = vpop.f32.mrb[0].mxu0
        %3952 = vmatprep.mubr.f32.mxu0 0.0
        %v3953 = vand.u32 %v445, 4294901760
        %v3954 = vsub.f32 %v445, %v3953
        %v3955 = vand.u32 %v3954, 4294901760
        %v3956 = vsub.f32 %v3954, %v3955
        %v3957 = vand.u32 %v3956, 4294901760
        %3958 = vmatmul.mubr.f32.gmra.mrb[0].mxu0 %v3957
        %v3959 = vpop.f32.mrb[0].mxu0
        %v3960 = vadd.f32 %v3740, %v3959
        %v3961 = vpop.f32.mrb[0].mxu0
        %3962 = vdwg.mxu0
        %3963 = vmatprep.subr.mxu0 0.0
        %v3964 = vand.u32 %v389, 4294901760
        %v3965 = vsub.f32 %v389, %v3964
        %v3966 = vand.u32 %v3965, 4294901760
        %v3967 = vsub.f32 %v3965, %v3966
        %v3968 = vand.u32 %v3967, 4294901760
        %3969 = vmatpush1.msra.mxu0 %v3968
        %3970 = vmatprep.subr.mxu0 0.0
        %v3971 = vand.u32 %v390, 4294901760
        %v3972 = vsub.f32 %v390, %v3971
        %v3973 = vand.u32 %v3972, 4294901760
        %v3974 = vsub.f32 %v3972, %v3973
        %v3975 = vand.u32 %v3974, 4294901760
        %3976 = vmatpush1.msra.mxu0 %v3975
        %3977 = vmatprep.subr.mxu0 0.0
        %v3978 = vand.u32 %v391, 4294901760
        %v3979 = vsub.f32 %v391, %v3978
        %v3980 = vand.u32 %v3979, 4294901760
        %v3981 = vsub.f32 %v3979, %v3980
        %v3982 = vand.u32 %v3981, 4294901760
        %3983 = vmatpush1.msra.mxu0 %v3982
        %3984 = vmatprep.subr.mxu0 0.0
        %v3985 = vand.u32 %v392, 4294901760
        %v3986 = vsub.f32 %v392, %v3985
        %v3987 = vand.u32 %v3986, 4294901760
        %v3988 = vsub.f32 %v3986, %v3987
        %v3989 = vand.u32 %v3988, 4294901760
        %3990 = vmatpush1.msra.mxu0 %v3989
        %3991 = vmatprep.subr.mxu0 0.0
        %v3992 = vand.u32 %v449, 4294901760
        %v3993 = vsub.f32 %v449, %v3992
        %v3994 = vand.u32 %v3993, 4294901760
        %v3995 = vsub.f32 %v3993, %v3994
        %v3996 = vand.u32 %v3995, 4294901760
        %3997 = vmatpush1.msra.mxu0 %v3996
        %3998 = vmatprep.subr.mxu0 0.0
        %3999 = vmatpush1.msra.mxu0 0.0
        %4000 = vmatprep.subr.mxu0 0.0
        %4001 = vmatpush1.msra.mxu0 0.0
        %4002 = vmatprep.subr.mxu0 0.0
        %4003 = vmatpush1.msra.mxu0 0.0
        %4004 = vmatprep.subr.mxu0 0.0
        %4005 = vmatpush1.msra.mxu0 0.0
        %4006 = vmatprep.subr.mxu0 0.0
        %4007 = vmatpush1.msra.mxu0 0.0
        %4008 = vmatprep.subr.mxu0 0.0
        %4009 = vmatpush1.msra.mxu0 0.0
        %4010 = vmatprep.subr.mxu0 0.0
        %4011 = vmatpush1.msra.mxu0 0.0
        %4012 = vmatprep.subr.mxu0 0.0
        %4013 = vmatpush1.msra.mxu0 0.0
        %4014 = vmatprep.subr.mxu0 0.0
        %4015 = vmatpush1.msra.mxu0 0.0
        %4016 = vmatprep.subr.mxu0 0.0
        %4017 = vmatpush1.msra.mxu0 0.0
        %4018 = vmatprep.subr.mxu0 0.0
        %4019 = vmatpush1.msra.mxu0 0.0
        %4020 = vmatprep.subr.mxu0 0.0
        %4021 = vmatpush1.msra.mxu0 0.0
        %4022 = vmatprep.subr.mxu0 0.0
        %4023 = vmatpush1.msra.mxu0 0.0
        %4024 = vmatprep.subr.mxu0 0.0
        %4025 = vmatpush1.msra.mxu0 0.0
        %4026 = vmatprep.subr.mxu0 0.0
        %4027 = vmatpush1.msra.mxu0 0.0
        %4028 = vmatprep.subr.mxu0 0.0
        %4029 = vmatpush1.msra.mxu0 0.0
        %4030 = vmatprep.subr.mxu0 0.0
        %4031 = vmatpush1.msra.mxu0 0.0
        %4032 = vmatprep.subr.mxu0 0.0
        %4033 = vmatpush1.msra.mxu0 0.0
        %4034 = vmatprep.subr.mxu0 0.0
        %4035 = vmatpush1.msra.mxu0 0.0
        %4036 = vmatprep.subr.mxu0 0.0
        %4037 = vmatpush1.msra.mxu0 0.0
        %4038 = vmatprep.subr.mxu0 0.0
        %4039 = vmatpush1.msra.mxu0 0.0
        %4040 = vmatprep.subr.mxu0 0.0
        %4041 = vmatpush1.msra.mxu0 0.0
        %4042 = vmatprep.subr.mxu0 0.0
        %4043 = vmatpush1.msra.mxu0 0.0
        %4044 = vmatprep.subr.mxu0 0.0
        %4045 = vmatpush1.msra.mxu0 0.0
        %4046 = vmatprep.subr.mxu0 0.0
        %4047 = vmatpush1.msra.mxu0 0.0
        %4048 = vmatprep.subr.mxu0 0.0
        %4049 = vmatpush1.msra.mxu0 0.0
        %4050 = vmatprep.subr.mxu0 0.0
        %4051 = vmatpush1.msra.mxu0 0.0
        %4052 = vmatprep.mubr.f32.mxu0 0.0
        %v4053 = vand.u32 %v403, 4294901760
        %4054 = vmatmul.mubr.f32.gmra.mrb[0].mxu0 %v4053
        %v4055 = vpop.f32.mrb[0].mxu0
        %v4056 = vadd.f32 %v3820, %v4055
        %v4057 = vpop.f32.mrb[0].mxu0
        %4058 = vmatprep.mubr.f32.mxu0 0.0
        %v4059 = vand.u32 %v406, 4294901760
        %4060 = vmatmul.mubr.f32.gmra.mrb[0].mxu0 %v4059
        %v4061 = vpop.f32.mrb[0].mxu0
        %v4062 = vadd.f32 %v3830, %v4061
        %v4063 = vpop.f32.mrb[0].mxu0
        %4064 = vmatprep.mubr.f32.mxu0 0.0
        %v4065 = vand.u32 %v409, 4294901760
        %4066 = vmatmul.mubr.f32.gmra.mrb[0].mxu0 %v4065
        %v4067 = vpop.f32.mrb[0].mxu0
        %v4068 = vadd.f32 %v3840, %v4067
        %v4069 = vpop.f32.mrb[0].mxu0
        %4070 = vmatprep.mubr.f32.mxu0 0.0
        %v4071 = vand.u32 %v412, 4294901760
        %4072 = vmatmul.mubr.f32.gmra.mrb[0].mxu0 %v4071
        %v4073 = vpop.f32.mrb[0].mxu0
        %v4074 = vadd.f32 %v3850, %v4073
        %v4075 = vpop.f32.mrb[0].mxu0
        %4076 = vmatprep.mubr.f32.mxu0 0.0
        %v4077 = vand.u32 %v415, 4294901760
        %4078 = vmatmul.mubr.f32.gmra.mrb[0].mxu0 %v4077
        %v4079 = vpop.f32.mrb[0].mxu0
        %v4080 = vadd.f32 %v3860, %v4079
        %v4081 = vpop.f32.mrb[0].mxu0
        %4082 = vmatprep.mubr.f32.mxu0 0.0
        %v4083 = vand.u32 %v418, 4294901760
        %4084 = vmatmul.mubr.f32.gmra.mrb[0].mxu0 %v4083
        %v4085 = vpop.f32.mrb[0].mxu0
        %v4086 = vadd.f32 %v3870, %v4085
        %v4087 = vpop.f32.mrb[0].mxu0
        %4088 = vmatprep.mubr.f32.mxu0 0.0
        %v4089 = vand.u32 %v421, 4294901760
        %4090 = vmatmul.mubr.f32.gmra.mrb[0].mxu0 %v4089
        %v4091 = vpop.f32.mrb[0].mxu0
        %v4092 = vadd.f32 %v3880, %v4091
        %v4093 = vpop.f32.mrb[0].mxu0
        %4094 = vmatprep.mubr.f32.mxu0 0.0
        %v4095 = vand.u32 %v424, 4294901760
        %4096 = vmatmul.mubr.f32.gmra.mrb[0].mxu0 %v4095
        %v4097 = vpop.f32.mrb[0].mxu0
        %v4098 = vadd.f32 %v3890, %v4097
        %v4099 = vpop.f32.mrb[0].mxu0
        %4100 = vmatprep.mubr.f32.mxu0 0.0
        %v4101 = vand.u32 %v427, 4294901760
        %4102 = vmatmul.mubr.f32.gmra.mrb[0].mxu0 %v4101
        %v4103 = vpop.f32.mrb[0].mxu0
        %v4104 = vadd.f32 %v3900, %v4103
        %v4105 = vpop.f32.mrb[0].mxu0
        %4106 = vmatprep.mubr.f32.mxu0 0.0
        %v4107 = vand.u32 %v430, 4294901760
        %4108 = vmatmul.mubr.f32.gmra.mrb[0].mxu0 %v4107
        %v4109 = vpop.f32.mrb[0].mxu0
        %v4110 = vadd.f32 %v3910, %v4109
        %v4111 = vpop.f32.mrb[0].mxu0
        %4112 = vmatprep.mubr.f32.mxu0 0.0
        %v4113 = vand.u32 %v433, 4294901760
        %4114 = vmatmul.mubr.f32.gmra.mrb[0].mxu0 %v4113
        %v4115 = vpop.f32.mrb[0].mxu0
        %v4116 = vadd.f32 %v3920, %v4115
        %v4117 = vpop.f32.mrb[0].mxu0
        %4118 = vmatprep.mubr.f32.mxu0 0.0
        %v4119 = vand.u32 %v436, 4294901760
        %4120 = vmatmul.mubr.f32.gmra.mrb[0].mxu0 %v4119
        %v4121 = vpop.f32.mrb[0].mxu0
        %v4122 = vadd.f32 %v3930, %v4121
        %v4123 = vpop.f32.mrb[0].mxu0
        %4124 = vmatprep.mubr.f32.mxu0 0.0
        %v4125 = vand.u32 %v439, 4294901760
        %4126 = vmatmul.mubr.f32.gmra.mrb[0].mxu0 %v4125
        %v4127 = vpop.f32.mrb[0].mxu0
        %v4128 = vadd.f32 %v3940, %v4127
        %v4129 = vpop.f32.mrb[0].mxu0
        %4130 = vmatprep.mubr.f32.mxu0 0.0
        %v4131 = vand.u32 %v442, 4294901760
        %4132 = vmatmul.mubr.f32.gmra.mrb[0].mxu0 %v4131
        %v4133 = vpop.f32.mrb[0].mxu0
        %v4134 = vadd.f32 %v3950, %v4133
        %v4135 = vpop.f32.mrb[0].mxu0
        %4136 = vmatprep.mubr.f32.mxu0 0.0
        %v4137 = vand.u32 %v445, 4294901760
        %4138 = vmatmul.mubr.f32.gmra.mrb[0].mxu0 %v4137
        %v4139 = vpop.f32.mrb[0].mxu0
        %v4140 = vadd.f32 %v3960, %v4139
        %v4141 = vpop.f32.mrb[0].mxu0
        %4142 = vdwg.mxu0
        %4143 = vmatprep.subr.mxu0 0.0
        %v4144 = vand.u32 %v389, 4294901760
        %v4145 = vsub.f32 %v389, %v4144
        %4146 = vmatpush1.msra.mxu0 %v4145
        %4147 = vmatprep.subr.mxu0 0.0
        %v4148 = vand.u32 %v390, 4294901760
        %v4149 = vsub.f32 %v390, %v4148
        %4150 = vmatpush1.msra.mxu0 %v4149
        %4151 = vmatprep.subr.mxu0 0.0
        %v4152 = vand.u32 %v391, 4294901760
        %v4153 = vsub.f32 %v391, %v4152
        %4154 = vmatpush1.msra.mxu0 %v4153
        %4155 = vmatprep.subr.mxu0 0.0
        %v4156 = vand.u32 %v392, 4294901760
        %v4157 = vsub.f32 %v392, %v4156
        %4158 = vmatpush1.msra.mxu0 %v4157
        %4159 = vmatprep.subr.mxu0 0.0
        %v4160 = vand.u32 %v449, 4294901760
        %v4161 = vsub.f32 %v449, %v4160
        %4162 = vmatpush1.msra.mxu0 %v4161
        %4163 = vmatprep.subr.mxu0 0.0
        %4164 = vmatpush1.msra.mxu0 0.0
        %4165 = vmatprep.subr.mxu0 0.0
        %4166 = vmatpush1.msra.mxu0 0.0
        %4167 = vmatprep.subr.mxu0 0.0
        %4168 = vmatpush1.msra.mxu0 0.0
        %4169 = vmatprep.subr.mxu0 0.0
        %4170 = vmatpush1.msra.mxu0 0.0
        %4171 = vmatprep.subr.mxu0 0.0
        %4172 = vmatpush1.msra.mxu0 0.0
        %4173 = vmatprep.subr.mxu0 0.0
        %4174 = vmatpush1.msra.mxu0 0.0
        %4175 = vmatprep.subr.mxu0 0.0
        %4176 = vmatpush1.msra.mxu0 0.0
        %4177 = vmatprep.subr.mxu0 0.0
        %4178 = vmatpush1.msra.mxu0 0.0
        %4179 = vmatprep.subr.mxu0 0.0
        %4180 = vmatpush1.msra.mxu0 0.0
        %4181 = vmatprep.subr.mxu0 0.0
        %4182 = vmatpush1.msra.mxu0 0.0
        %4183 = vmatprep.subr.mxu0 0.0
        %4184 = vmatpush1.msra.mxu0 0.0
        %4185 = vmatprep.subr.mxu0 0.0
        %4186 = vmatpush1.msra.mxu0 0.0
        %4187 = vmatprep.subr.mxu0 0.0
        %4188 = vmatpush1.msra.mxu0 0.0
        %4189 = vmatprep.subr.mxu0 0.0
        %4190 = vmatpush1.msra.mxu0 0.0
        %4191 = vmatprep.subr.mxu0 0.0
        %4192 = vmatpush1.msra.mxu0 0.0
        %4193 = vmatprep.subr.mxu0 0.0
        %4194 = vmatpush1.msra.mxu0 0.0
        %4195 = vmatprep.subr.mxu0 0.0
        %4196 = vmatpush1.msra.mxu0 0.0
        %4197 = vmatprep.subr.mxu0 0.0
        %4198 = vmatpush1.msra.mxu0 0.0
        %4199 = vmatprep.subr.mxu0 0.0
        %4200 = vmatpush1.msra.mxu0 0.0
        %4201 = vmatprep.subr.mxu0 0.0
        %4202 = vmatpush1.msra.mxu0 0.0
        %4203 = vmatprep.subr.mxu0 0.0
        %4204 = vmatpush1.msra.mxu0 0.0
        %4205 = vmatprep.subr.mxu0 0.0
        %4206 = vmatpush1.msra.mxu0 0.0
        %4207 = vmatprep.subr.mxu0 0.0
        %4208 = vmatpush1.msra.mxu0 0.0
        %4209 = vmatprep.subr.mxu0 0.0
        %4210 = vmatpush1.msra.mxu0 0.0
        %4211 = vmatprep.subr.mxu0 0.0
        %4212 = vmatpush1.msra.mxu0 0.0
        %4213 = vmatprep.subr.mxu0 0.0
        %4214 = vmatpush1.msra.mxu0 0.0
        %4215 = vmatprep.subr.mxu0 0.0
        %4216 = vmatpush1.msra.mxu0 0.0
        %4217 = vmatprep.mubr.f32.mxu0 0.0
        %v4218 = vand.u32 %v403, 4294901760
        %v4219 = vsub.f32 %v403, %v4218
        %4220 = vmatmul.mubr.f32.gmra.mrb[0].mxu0 %v4219
        %v4221 = vpop.f32.mrb[0].mxu0
        %v4222 = vadd.f32 %v4056, %v4221
        %v4223 = vpop.f32.mrb[0].mxu0
        %4224 = vmatprep.mubr.f32.mxu0 0.0
        %v4225 = vand.u32 %v406, 4294901760
        %v4226 = vsub.f32 %v406, %v4225
        %4227 = vmatmul.mubr.f32.gmra.mrb[0].mxu0 %v4226
        %v4228 = vpop.f32.mrb[0].mxu0
        %v4229 = vadd.f32 %v4062, %v4228
        %v4230 = vpop.f32.mrb[0].mxu0
        %4231 = vmatprep.mubr.f32.mxu0 0.0
        %v4232 = vand.u32 %v409, 4294901760
        %v4233 = vsub.f32 %v409, %v4232
        %4234 = vmatmul.mubr.f32.gmra.mrb[0].mxu0 %v4233
        %v4235 = vpop.f32.mrb[0].mxu0
        %v4236 = vadd.f32 %v4068, %v4235
        %v4237 = vpop.f32.mrb[0].mxu0
        %4238 = vmatprep.mubr.f32.mxu0 0.0
        %v4239 = vand.u32 %v412, 4294901760
        %v4240 = vsub.f32 %v412, %v4239
        %4241 = vmatmul.mubr.f32.gmra.mrb[0].mxu0 %v4240
        %v4242 = vpop.f32.mrb[0].mxu0
        %v4243 = vadd.f32 %v4074, %v4242
        %v4244 = vpop.f32.mrb[0].mxu0
        %4245 = vmatprep.mubr.f32.mxu0 0.0
        %v4246 = vand.u32 %v415, 4294901760
        %v4247 = vsub.f32 %v415, %v4246
        %4248 = vmatmul.mubr.f32.gmra.mrb[0].mxu0 %v4247
        %v4249 = vpop.f32.mrb[0].mxu0
        %v4250 = vadd.f32 %v4080, %v4249
        %v4251 = vpop.f32.mrb[0].mxu0
        %4252 = vmatprep.mubr.f32.mxu0 0.0
        %v4253 = vand.u32 %v418, 4294901760
        %v4254 = vsub.f32 %v418, %v4253
        %4255 = vmatmul.mubr.f32.gmra.mrb[0].mxu0 %v4254
        %v4256 = vpop.f32.mrb[0].mxu0
        %v4257 = vadd.f32 %v4086, %v4256
        %v4258 = vpop.f32.mrb[0].mxu0
        %4259 = vmatprep.mubr.f32.mxu0 0.0
        %v4260 = vand.u32 %v421, 4294901760
        %v4261 = vsub.f32 %v421, %v4260
        %4262 = vmatmul.mubr.f32.gmra.mrb[0].mxu0 %v4261
        %v4263 = vpop.f32.mrb[0].mxu0
        %v4264 = vadd.f32 %v4092, %v4263
        %v4265 = vpop.f32.mrb[0].mxu0
        %4266 = vmatprep.mubr.f32.mxu0 0.0
        %v4267 = vand.u32 %v424, 4294901760
        %v4268 = vsub.f32 %v424, %v4267
        %4269 = vmatmul.mubr.f32.gmra.mrb[0].mxu0 %v4268
        %v4270 = vpop.f32.mrb[0].mxu0
        %v4271 = vadd.f32 %v4098, %v4270
        %v4272 = vpop.f32.mrb[0].mxu0
        %4273 = vmatprep.mubr.f32.mxu0 0.0
        %v4274 = vand.u32 %v427, 4294901760
        %v4275 = vsub.f32 %v427, %v4274
        %4276 = vmatmul.mubr.f32.gmra.mrb[0].mxu0 %v4275
        %v4277 = vpop.f32.mrb[0].mxu0
        %v4278 = vadd.f32 %v4104, %v4277
        %v4279 = vpop.f32.mrb[0].mxu0
        %4280 = vmatprep.mubr.f32.mxu0 0.0
        %v4281 = vand.u32 %v430, 4294901760
        %v4282 = vsub.f32 %v430, %v4281
        %4283 = vmatmul.mubr.f32.gmra.mrb[0].mxu0 %v4282
        %v4284 = vpop.f32.mrb[0].mxu0
        %v4285 = vadd.f32 %v4110, %v4284
        %v4286 = vpop.f32.mrb[0].mxu0
        %4287 = vmatprep.mubr.f32.mxu0 0.0
        %v4288 = vand.u32 %v433, 4294901760
        %v4289 = vsub.f32 %v433, %v4288
        %4290 = vmatmul.mubr.f32.gmra.mrb[0].mxu0 %v4289
        %v4291 = vpop.f32.mrb[0].mxu0
        %v4292 = vadd.f32 %v4116, %v4291
        %v4293 = vpop.f32.mrb[0].mxu0
        %4294 = vmatprep.mubr.f32.mxu0 0.0
        %v4295 = vand.u32 %v436, 4294901760
        %v4296 = vsub.f32 %v436, %v4295
        %4297 = vmatmul.mubr.f32.gmra.mrb[0].mxu0 %v4296
        %v4298 = vpop.f32.mrb[0].mxu0
        %v4299 = vadd.f32 %v4122, %v4298
        %v4300 = vpop.f32.mrb[0].mxu0
        %4301 = vmatprep.mubr.f32.mxu0 0.0
        %v4302 = vand.u32 %v439, 4294901760
        %v4303 = vsub.f32 %v439, %v4302
        %4304 = vmatmul.mubr.f32.gmra.mrb[0].mxu0 %v4303
        %v4305 = vpop.f32.mrb[0].mxu0
        %v4306 = vadd.f32 %v4128, %v4305
        %v4307 = vpop.f32.mrb[0].mxu0
        %4308 = vmatprep.mubr.f32.mxu0 0.0
        %v4309 = vand.u32 %v442, 4294901760
        %v4310 = vsub.f32 %v442, %v4309
        %4311 = vmatmul.mubr.f32.gmra.mrb[0].mxu0 %v4310
        %v4312 = vpop.f32.mrb[0].mxu0
        %v4313 = vadd.f32 %v4134, %v4312
        %v4314 = vpop.f32.mrb[0].mxu0
        %4315 = vmatprep.mubr.f32.mxu0 0.0
        %v4316 = vand.u32 %v445, 4294901760
        %v4317 = vsub.f32 %v445, %v4316
        %4318 = vmatmul.mubr.f32.gmra.mrb[0].mxu0 %v4317
        %v4319 = vpop.f32.mrb[0].mxu0
        %v4320 = vadd.f32 %v4140, %v4319
        %v4321 = vpop.f32.mrb[0].mxu0
        %4322 = vdwg.mxu0
        %4323 = vmatprep.subr.mxu0 0.0
        %v4324 = vand.u32 %v389, 4294901760
        %4325 = vmatpush1.msra.mxu0 %v4324
        %4326 = vmatprep.subr.mxu0 0.0
        %v4327 = vand.u32 %v390, 4294901760
        %4328 = vmatpush1.msra.mxu0 %v4327
        %4329 = vmatprep.subr.mxu0 0.0
        %v4330 = vand.u32 %v391, 4294901760
        %4331 = vmatpush1.msra.mxu0 %v4330
        %4332 = vmatprep.subr.mxu0 0.0
        %v4333 = vand.u32 %v392, 4294901760
        %4334 = vmatpush1.msra.mxu0 %v4333
        %4335 = vmatprep.subr.mxu0 0.0
        %v4336 = vand.u32 %v449, 4294901760
        %4337 = vmatpush1.msra.mxu0 %v4336
        %4338 = vmatprep.subr.mxu0 0.0
        %4339 = vmatpush1.msra.mxu0 0.0
        %4340 = vmatprep.subr.mxu0 0.0
        %4341 = vmatpush1.msra.mxu0 0.0
        %4342 = vmatprep.subr.mxu0 0.0
        %4343 = vmatpush1.msra.mxu0 0.0
        %4344 = vmatprep.subr.mxu0 0.0
        %4345 = vmatpush1.msra.mxu0 0.0
        %4346 = vmatprep.subr.mxu0 0.0
        %4347 = vmatpush1.msra.mxu0 0.0
        %4348 = vmatprep.subr.mxu0 0.0
        %4349 = vmatpush1.msra.mxu0 0.0
        %4350 = vmatprep.subr.mxu0 0.0
        %4351 = vmatpush1.msra.mxu0 0.0
        %4352 = vmatprep.subr.mxu0 0.0
        %4353 = vmatpush1.msra.mxu0 0.0
        %4354 = vmatprep.subr.mxu0 0.0
        %4355 = vmatpush1.msra.mxu0 0.0
        %4356 = vmatprep.subr.mxu0 0.0
        %4357 = vmatpush1.msra.mxu0 0.0
        %4358 = vmatprep.subr.mxu0 0.0
        %4359 = vmatpush1.msra.mxu0 0.0
        %4360 = vmatprep.subr.mxu0 0.0
        %4361 = vmatpush1.msra.mxu0 0.0
        %4362 = vmatprep.subr.mxu0 0.0
        %4363 = vmatpush1.msra.mxu0 0.0
        %4364 = vmatprep.subr.mxu0 0.0
        %4365 = vmatpush1.msra.mxu0 0.0
        %4366 = vmatprep.subr.mxu0 0.0
        %4367 = vmatpush1.msra.mxu0 0.0
        %4368 = vmatprep.subr.mxu0 0.0
        %4369 = vmatpush1.msra.mxu0 0.0
        %4370 = vmatprep.subr.mxu0 0.0
        %4371 = vmatpush1.msra.mxu0 0.0
        %4372 = vmatprep.subr.mxu0 0.0
        %4373 = vmatpush1.msra.mxu0 0.0
        %4374 = vmatprep.subr.mxu0 0.0
        %4375 = vmatpush1.msra.mxu0 0.0
        %4376 = vmatprep.subr.mxu0 0.0
        %4377 = vmatpush1.msra.mxu0 0.0
        %4378 = vmatprep.subr.mxu0 0.0
        %4379 = vmatpush1.msra.mxu0 0.0
        %4380 = vmatprep.subr.mxu0 0.0
        %4381 = vmatpush1.msra.mxu0 0.0
        %4382 = vmatprep.subr.mxu0 0.0
        %4383 = vmatpush1.msra.mxu0 0.0
        %4384 = vmatprep.subr.mxu0 0.0
        %4385 = vmatpush1.msra.mxu0 0.0
        %4386 = vmatprep.subr.mxu0 0.0
        %4387 = vmatpush1.msra.mxu0 0.0
        %4388 = vmatprep.subr.mxu0 0.0
        %4389 = vmatpush1.msra.mxu0 0.0
        %4390 = vmatprep.subr.mxu0 0.0
        %4391 = vmatpush1.msra.mxu0 0.0
        %4392 = vmatprep.mubr.f32.mxu0 0.0
        %v4393 = vand.u32 %v403, 4294901760
        %v4394 = vsub.f32 %v403, %v4393
        %v4395 = vand.u32 %v4394, 4294901760
        %4396 = vmatmul.mubr.f32.gmra.mrb[0].mxu0 %v4395
        %v4397 = vpop.f32.mrb[0].mxu0
        %v4398 = vadd.f32 %v4222, %v4397
        %v4399 = vpop.f32.mrb[0].mxu0
        %4400 = vmatprep.mubr.f32.mxu0 0.0
        %v4401 = vand.u32 %v406, 4294901760
        %v4402 = vsub.f32 %v406, %v4401
        %v4403 = vand.u32 %v4402, 4294901760
        %4404 = vmatmul.mubr.f32.gmra.mrb[0].mxu0 %v4403
        %v4405 = vpop.f32.mrb[0].mxu0
        %v4406 = vadd.f32 %v4229, %v4405
        %v4407 = vpop.f32.mrb[0].mxu0
        %4408 = vmatprep.mubr.f32.mxu0 0.0
        %v4409 = vand.u32 %v409, 4294901760
        %v4410 = vsub.f32 %v409, %v4409
        %v4411 = vand.u32 %v4410, 4294901760
        %4412 = vmatmul.mubr.f32.gmra.mrb[0].mxu0 %v4411
        %v4413 = vpop.f32.mrb[0].mxu0
        %v4414 = vadd.f32 %v4236, %v4413
        %v4415 = vpop.f32.mrb[0].mxu0
        %4416 = vmatprep.mubr.f32.mxu0 0.0
        %v4417 = vand.u32 %v412, 4294901760
        %v4418 = vsub.f32 %v412, %v4417
        %v4419 = vand.u32 %v4418, 4294901760
        %4420 = vmatmul.mubr.f32.gmra.mrb[0].mxu0 %v4419
        %v4421 = vpop.f32.mrb[0].mxu0
        %v4422 = vadd.f32 %v4243, %v4421
        %v4423 = vpop.f32.mrb[0].mxu0
        %4424 = vmatprep.mubr.f32.mxu0 0.0
        %v4425 = vand.u32 %v415, 4294901760
        %v4426 = vsub.f32 %v415, %v4425
        %v4427 = vand.u32 %v4426, 4294901760
        %4428 = vmatmul.mubr.f32.gmra.mrb[0].mxu0 %v4427
        %v4429 = vpop.f32.mrb[0].mxu0
        %v4430 = vadd.f32 %v4250, %v4429
        %v4431 = vpop.f32.mrb[0].mxu0
        %4432 = vmatprep.mubr.f32.mxu0 0.0
        %v4433 = vand.u32 %v418, 4294901760
        %v4434 = vsub.f32 %v418, %v4433
        %v4435 = vand.u32 %v4434, 4294901760
        %4436 = vmatmul.mubr.f32.gmra.mrb[0].mxu0 %v4435
        %v4437 = vpop.f32.mrb[0].mxu0
        %v4438 = vadd.f32 %v4257, %v4437
        %v4439 = vpop.f32.mrb[0].mxu0
        %4440 = vmatprep.mubr.f32.mxu0 0.0
        %v4441 = vand.u32 %v421, 4294901760
        %v4442 = vsub.f32 %v421, %v4441
        %v4443 = vand.u32 %v4442, 4294901760
        %4444 = vmatmul.mubr.f32.gmra.mrb[0].mxu0 %v4443
        %v4445 = vpop.f32.mrb[0].mxu0
        %v4446 = vadd.f32 %v4264, %v4445
        %v4447 = vpop.f32.mrb[0].mxu0
        %4448 = vmatprep.mubr.f32.mxu0 0.0
        %v4449 = vand.u32 %v424, 4294901760
        %v4450 = vsub.f32 %v424, %v4449
        %v4451 = vand.u32 %v4450, 4294901760
        %4452 = vmatmul.mubr.f32.gmra.mrb[0].mxu0 %v4451
        %v4453 = vpop.f32.mrb[0].mxu0
        %v4454 = vadd.f32 %v4271, %v4453
        %v4455 = vpop.f32.mrb[0].mxu0
        %4456 = vmatprep.mubr.f32.mxu0 0.0
        %v4457 = vand.u32 %v427, 4294901760
        %v4458 = vsub.f32 %v427, %v4457
        %v4459 = vand.u32 %v4458, 4294901760
        %4460 = vmatmul.mubr.f32.gmra.mrb[0].mxu0 %v4459
        %v4461 = vpop.f32.mrb[0].mxu0
        %v4462 = vadd.f32 %v4278, %v4461
        %v4463 = vpop.f32.mrb[0].mxu0
        %4464 = vmatprep.mubr.f32.mxu0 0.0
        %v4465 = vand.u32 %v430, 4294901760
        %v4466 = vsub.f32 %v430, %v4465
        %v4467 = vand.u32 %v4466, 4294901760
        %4468 = vmatmul.mubr.f32.gmra.mrb[0].mxu0 %v4467
        %v4469 = vpop.f32.mrb[0].mxu0
        %v4470 = vadd.f32 %v4285, %v4469
        %v4471 = vpop.f32.mrb[0].mxu0
        %4472 = vmatprep.mubr.f32.mxu0 0.0
        %v4473 = vand.u32 %v433, 4294901760
        %v4474 = vsub.f32 %v433, %v4473
        %v4475 = vand.u32 %v4474, 4294901760
        %4476 = vmatmul.mubr.f32.gmra.mrb[0].mxu0 %v4475
        %v4477 = vpop.f32.mrb[0].mxu0
        %v4478 = vadd.f32 %v4292, %v4477
        %v4479 = vpop.f32.mrb[0].mxu0
        %4480 = vmatprep.mubr.f32.mxu0 0.0
        %v4481 = vand.u32 %v436, 4294901760
        %v4482 = vsub.f32 %v436, %v4481
        %v4483 = vand.u32 %v4482, 4294901760
        %4484 = vmatmul.mubr.f32.gmra.mrb[0].mxu0 %v4483
        %v4485 = vpop.f32.mrb[0].mxu0
        %v4486 = vadd.f32 %v4299, %v4485
        %v4487 = vpop.f32.mrb[0].mxu0
        %4488 = vmatprep.mubr.f32.mxu0 0.0
        %v4489 = vand.u32 %v439, 4294901760
        %v4490 = vsub.f32 %v439, %v4489
        %v4491 = vand.u32 %v4490, 4294901760
        %4492 = vmatmul.mubr.f32.gmra.mrb[0].mxu0 %v4491
        %v4493 = vpop.f32.mrb[0].mxu0
        %v4494 = vadd.f32 %v4306, %v4493
        %v4495 = vpop.f32.mrb[0].mxu0
        %4496 = vmatprep.mubr.f32.mxu0 0.0
        %v4497 = vand.u32 %v442, 4294901760
        %v4498 = vsub.f32 %v442, %v4497
        %v4499 = vand.u32 %v4498, 4294901760
        %4500 = vmatmul.mubr.f32.gmra.mrb[0].mxu0 %v4499
        %v4501 = vpop.f32.mrb[0].mxu0
        %v4502 = vadd.f32 %v4313, %v4501
        %v4503 = vpop.f32.mrb[0].mxu0
        %4504 = vmatprep.mubr.f32.mxu0 0.0
        %v4505 = vand.u32 %v445, 4294901760
        %v4506 = vsub.f32 %v445, %v4505
        %v4507 = vand.u32 %v4506, 4294901760
        %4508 = vmatmul.mubr.f32.gmra.mrb[0].mxu0 %v4507
        %v4509 = vpop.f32.mrb[0].mxu0
        %v4510 = vadd.f32 %v4320, %v4509
        %v4511 = vpop.f32.mrb[0].mxu0
        %4512 = vdwg.mxu0
        %4513 = vmatprep.subr.mxu0 0.0
        %v4514 = vand.u32 %v389, 4294901760
        %v4515 = vsub.f32 %v389, %v4514
        %v4516 = vand.u32 %v4515, 4294901760
        %4517 = vmatpush1.msra.mxu0 %v4516
        %4518 = vmatprep.subr.mxu0 0.0
        %v4519 = vand.u32 %v390, 4294901760
        %v4520 = vsub.f32 %v390, %v4519
        %v4521 = vand.u32 %v4520, 4294901760
        %4522 = vmatpush1.msra.mxu0 %v4521
        %4523 = vmatprep.subr.mxu0 0.0
        %v4524 = vand.u32 %v391, 4294901760
        %v4525 = vsub.f32 %v391, %v4524
        %v4526 = vand.u32 %v4525, 4294901760
        %4527 = vmatpush1.msra.mxu0 %v4526
        %4528 = vmatprep.subr.mxu0 0.0
        %v4529 = vand.u32 %v392, 4294901760
        %v4530 = vsub.f32 %v392, %v4529
        %v4531 = vand.u32 %v4530, 4294901760
        %4532 = vmatpush1.msra.mxu0 %v4531
        %4533 = vmatprep.subr.mxu0 0.0
        %v4534 = vand.u32 %v449, 4294901760
        %v4535 = vsub.f32 %v449, %v4534
        %v4536 = vand.u32 %v4535, 4294901760
        %4537 = vmatpush1.msra.mxu0 %v4536
        %4538 = vmatprep.subr.mxu0 0.0
        %4539 = vmatpush1.msra.mxu0 0.0
        %4540 = vmatprep.subr.mxu0 0.0
        %4541 = vmatpush1.msra.mxu0 0.0
        %4542 = vmatprep.subr.mxu0 0.0
        %4543 = vmatpush1.msra.mxu0 0.0
        %4544 = vmatprep.subr.mxu0 0.0
        %4545 = vmatpush1.msra.mxu0 0.0
        %4546 = vmatprep.subr.mxu0 0.0
        %4547 = vmatpush1.msra.mxu0 0.0
        %4548 = vmatprep.subr.mxu0 0.0
        %4549 = vmatpush1.msra.mxu0 0.0
        %4550 = vmatprep.subr.mxu0 0.0
        %4551 = vmatpush1.msra.mxu0 0.0
        %4552 = vmatprep.subr.mxu0 0.0
        %4553 = vmatpush1.msra.mxu0 0.0
        %4554 = vmatprep.subr.mxu0 0.0
        %4555 = vmatpush1.msra.mxu0 0.0
        %4556 = vmatprep.subr.mxu0 0.0
        %4557 = vmatpush1.msra.mxu0 0.0
        %4558 = vmatprep.subr.mxu0 0.0
        %4559 = vmatpush1.msra.mxu0 0.0
        %4560 = vmatprep.subr.mxu0 0.0
        %4561 = vmatpush1.msra.mxu0 0.0
        %4562 = vmatprep.subr.mxu0 0.0
        %4563 = vmatpush1.msra.mxu0 0.0
        %4564 = vmatprep.subr.mxu0 0.0
        %4565 = vmatpush1.msra.mxu0 0.0
        %4566 = vmatprep.subr.mxu0 0.0
        %4567 = vmatpush1.msra.mxu0 0.0
        %4568 = vmatprep.subr.mxu0 0.0
        %4569 = vmatpush1.msra.mxu0 0.0
        %4570 = vmatprep.subr.mxu0 0.0
        %4571 = vmatpush1.msra.mxu0 0.0
        %4572 = vmatprep.subr.mxu0 0.0
        %4573 = vmatpush1.msra.mxu0 0.0
        %4574 = vmatprep.subr.mxu0 0.0
        %4575 = vmatpush1.msra.mxu0 0.0
        %4576 = vmatprep.subr.mxu0 0.0
        %4577 = vmatpush1.msra.mxu0 0.0
        %4578 = vmatprep.subr.mxu0 0.0
        %4579 = vmatpush1.msra.mxu0 0.0
        %4580 = vmatprep.subr.mxu0 0.0
        %4581 = vmatpush1.msra.mxu0 0.0
        %4582 = vmatprep.subr.mxu0 0.0
        %4583 = vmatpush1.msra.mxu0 0.0
        %4584 = vmatprep.subr.mxu0 0.0
        %4585 = vmatpush1.msra.mxu0 0.0
        %4586 = vmatprep.subr.mxu0 0.0
        %4587 = vmatpush1.msra.mxu0 0.0
        %4588 = vmatprep.subr.mxu0 0.0
        %4589 = vmatpush1.msra.mxu0 0.0
        %4590 = vmatprep.subr.mxu0 0.0
        %4591 = vmatpush1.msra.mxu0 0.0
        %4592 = vmatprep.mubr.f32.mxu0 0.0
        %v4593 = vand.u32 %v403, 4294901760
        %4594 = vmatmul.mubr.f32.gmra.mrb[0].mxu0 %v4593
        %v4595 = vpop.f32.mrb[0].mxu0
        %v4596 = vadd.f32 %v4398, %v4595
        %v4597 = vpop.f32.mrb[0].mxu0
        %4598 = vmatprep.mubr.f32.mxu0 0.0
        %v4599 = vand.u32 %v406, 4294901760
        %4600 = vmatmul.mubr.f32.gmra.mrb[0].mxu0 %v4599
        %v4601 = vpop.f32.mrb[0].mxu0
        %v4602 = vadd.f32 %v4406, %v4601
        %v4603 = vpop.f32.mrb[0].mxu0
        %4604 = vmatprep.mubr.f32.mxu0 0.0
        %v4605 = vand.u32 %v409, 4294901760
        %4606 = vmatmul.mubr.f32.gmra.mrb[0].mxu0 %v4605
        %v4607 = vpop.f32.mrb[0].mxu0
        %v4608 = vadd.f32 %v4414, %v4607
        %v4609 = vpop.f32.mrb[0].mxu0
        %4610 = vmatprep.mubr.f32.mxu0 0.0
        %v4611 = vand.u32 %v412, 4294901760
        %4612 = vmatmul.mubr.f32.gmra.mrb[0].mxu0 %v4611
        %v4613 = vpop.f32.mrb[0].mxu0
        %v4614 = vadd.f32 %v4422, %v4613
        %v4615 = vpop.f32.mrb[0].mxu0
        %4616 = vmatprep.mubr.f32.mxu0 0.0
        %v4617 = vand.u32 %v415, 4294901760
        %4618 = vmatmul.mubr.f32.gmra.mrb[0].mxu0 %v4617
        %v4619 = vpop.f32.mrb[0].mxu0
        %v4620 = vadd.f32 %v4430, %v4619
        %v4621 = vpop.f32.mrb[0].mxu0
        %4622 = vmatprep.mubr.f32.mxu0 0.0
        %v4623 = vand.u32 %v418, 4294901760
        %4624 = vmatmul.mubr.f32.gmra.mrb[0].mxu0 %v4623
        %v4625 = vpop.f32.mrb[0].mxu0
        %v4626 = vadd.f32 %v4438, %v4625
        %v4627 = vpop.f32.mrb[0].mxu0
        %4628 = vmatprep.mubr.f32.mxu0 0.0
        %v4629 = vand.u32 %v421, 4294901760
        %4630 = vmatmul.mubr.f32.gmra.mrb[0].mxu0 %v4629
        %v4631 = vpop.f32.mrb[0].mxu0
        %v4632 = vadd.f32 %v4446, %v4631
        %v4633 = vpop.f32.mrb[0].mxu0
        %4634 = vmatprep.mubr.f32.mxu0 0.0
        %v4635 = vand.u32 %v424, 4294901760
        %4636 = vmatmul.mubr.f32.gmra.mrb[0].mxu0 %v4635
        %v4637 = vpop.f32.mrb[0].mxu0
        %v4638 = vadd.f32 %v4454, %v4637
        %v4639 = vpop.f32.mrb[0].mxu0
        %4640 = vmatprep.mubr.f32.mxu0 0.0
        %v4641 = vand.u32 %v427, 4294901760
        %4642 = vmatmul.mubr.f32.gmra.mrb[0].mxu0 %v4641
        %v4643 = vpop.f32.mrb[0].mxu0
        %v4644 = vadd.f32 %v4462, %v4643
        %v4645 = vpop.f32.mrb[0].mxu0
        %4646 = vmatprep.mubr.f32.mxu0 0.0
        %v4647 = vand.u32 %v430, 4294901760
        %4648 = vmatmul.mubr.f32.gmra.mrb[0].mxu0 %v4647
        %v4649 = vpop.f32.mrb[0].mxu0
        %v4650 = vadd.f32 %v4470, %v4649
        %v4651 = vpop.f32.mrb[0].mxu0
        %4652 = vmatprep.mubr.f32.mxu0 0.0
        %v4653 = vand.u32 %v433, 4294901760
        %4654 = vmatmul.mubr.f32.gmra.mrb[0].mxu0 %v4653
        %v4655 = vpop.f32.mrb[0].mxu0
        %v4656 = vadd.f32 %v4478, %v4655
        %v4657 = vpop.f32.mrb[0].mxu0
        %4658 = vmatprep.mubr.f32.mxu0 0.0
        %v4659 = vand.u32 %v436, 4294901760
        %4660 = vmatmul.mubr.f32.gmra.mrb[0].mxu0 %v4659
        %v4661 = vpop.f32.mrb[0].mxu0
        %v4662 = vadd.f32 %v4486, %v4661
        %v4663 = vpop.f32.mrb[0].mxu0
        %4664 = vmatprep.mubr.f32.mxu0 0.0
        %v4665 = vand.u32 %v439, 4294901760
        %4666 = vmatmul.mubr.f32.gmra.mrb[0].mxu0 %v4665
        %v4667 = vpop.f32.mrb[0].mxu0
        %v4668 = vadd.f32 %v4494, %v4667
        %v4669 = vpop.f32.mrb[0].mxu0
        %4670 = vmatprep.mubr.f32.mxu0 0.0
        %v4671 = vand.u32 %v442, 4294901760
        %4672 = vmatmul.mubr.f32.gmra.mrb[0].mxu0 %v4671
        %v4673 = vpop.f32.mrb[0].mxu0
        %v4674 = vadd.f32 %v4502, %v4673
        %v4675 = vpop.f32.mrb[0].mxu0
        %4676 = vmatprep.mubr.f32.mxu0 0.0
        %v4677 = vand.u32 %v445, 4294901760
        %4678 = vmatmul.mubr.f32.gmra.mrb[0].mxu0 %v4677
        %v4679 = vpop.f32.mrb[0].mxu0
        %v4680 = vadd.f32 %v4510, %v4679
        %v4681 = vpop.f32.mrb[0].mxu0
        %4682 = vdwg.mxu0
        %4683 = vmatprep.subr.mxu0 0.0
        %v4684 = vand.u32 %v389, 4294901760
        %4685 = vmatpush1.msra.mxu0 %v4684
        %4686 = vmatprep.subr.mxu0 0.0
        %v4687 = vand.u32 %v390, 4294901760
        %4688 = vmatpush1.msra.mxu0 %v4687
        %4689 = vmatprep.subr.mxu0 0.0
        %v4690 = vand.u32 %v391, 4294901760
        %4691 = vmatpush1.msra.mxu0 %v4690
        %4692 = vmatprep.subr.mxu0 0.0
        %v4693 = vand.u32 %v392, 4294901760
        %4694 = vmatpush1.msra.mxu0 %v4693
        %4695 = vmatprep.subr.mxu0 0.0
        %v4696 = vand.u32 %v449, 4294901760
        %4697 = vmatpush1.msra.mxu0 %v4696
        %4698 = vmatprep.subr.mxu0 0.0
        %4699 = vmatpush1.msra.mxu0 0.0
        %4700 = vmatprep.subr.mxu0 0.0
        %4701 = vmatpush1.msra.mxu0 0.0
        %4702 = vmatprep.subr.mxu0 0.0
        %4703 = vmatpush1.msra.mxu0 0.0
        %4704 = vmatprep.subr.mxu0 0.0
        %4705 = vmatpush1.msra.mxu0 0.0
        %4706 = vmatprep.subr.mxu0 0.0
        %4707 = vmatpush1.msra.mxu0 0.0
        %4708 = vmatprep.subr.mxu0 0.0
        %4709 = vmatpush1.msra.mxu0 0.0
        %4710 = vmatprep.subr.mxu0 0.0
        %4711 = vmatpush1.msra.mxu0 0.0
        %4712 = vmatprep.subr.mxu0 0.0
        %4713 = vmatpush1.msra.mxu0 0.0
        %4714 = vmatprep.subr.mxu0 0.0
        %4715 = vmatpush1.msra.mxu0 0.0
        %4716 = vmatprep.subr.mxu0 0.0
        %4717 = vmatpush1.msra.mxu0 0.0
        %4718 = vmatprep.subr.mxu0 0.0
        %4719 = vmatpush1.msra.mxu0 0.0
        %4720 = vmatprep.subr.mxu0 0.0
        %4721 = vmatpush1.msra.mxu0 0.0
        %4722 = vmatprep.subr.mxu0 0.0
        %4723 = vmatpush1.msra.mxu0 0.0
        %4724 = vmatprep.subr.mxu0 0.0
        %4725 = vmatpush1.msra.mxu0 0.0
        %4726 = vmatprep.subr.mxu0 0.0
        %4727 = vmatpush1.msra.mxu0 0.0
        %4728 = vmatprep.subr.mxu0 0.0
        %4729 = vmatpush1.msra.mxu0 0.0
        %4730 = vmatprep.subr.mxu0 0.0
        %4731 = vmatpush1.msra.mxu0 0.0
        %4732 = vmatprep.subr.mxu0 0.0
        %4733 = vmatpush1.msra.mxu0 0.0
        %4734 = vmatprep.subr.mxu0 0.0
        %4735 = vmatpush1.msra.mxu0 0.0
        %4736 = vmatprep.subr.mxu0 0.0
        %4737 = vmatpush1.msra.mxu0 0.0
        %4738 = vmatprep.subr.mxu0 0.0
        %4739 = vmatpush1.msra.mxu0 0.0
        %4740 = vmatprep.subr.mxu0 0.0
        %4741 = vmatpush1.msra.mxu0 0.0
        %4742 = vmatprep.subr.mxu0 0.0
        %4743 = vmatpush1.msra.mxu0 0.0
        %4744 = vmatprep.subr.mxu0 0.0
        %4745 = vmatpush1.msra.mxu0 0.0
        %4746 = vmatprep.subr.mxu0 0.0
        %4747 = vmatpush1.msra.mxu0 0.0
        %4748 = vmatprep.subr.mxu0 0.0
        %4749 = vmatpush1.msra.mxu0 0.0
        %4750 = vmatprep.subr.mxu0 0.0
        %4751 = vmatpush1.msra.mxu0 0.0
        %4752 = vmatprep.mubr.f32.mxu0 0.0
        %v4753 = vand.u32 %v403, 4294901760
        %4754 = vmatmul.mubr.f32.gmra.mrb[0].mxu0 %v4753
        %v4755 = vpop.f32.mrb[0].mxu0
        %v4756 = vadd.f32 %v4596, %v4755
        %v4757 = vpop.f32.mrb[0].mxu0
        %4758 = vmatprep.mubr.f32.mxu0 0.0
        %v4759 = vand.u32 %v406, 4294901760
        %4760 = vmatmul.mubr.f32.gmra.mrb[0].mxu0 %v4759
        %v4761 = vpop.f32.mrb[0].mxu0
        %v4762 = vadd.f32 %v4602, %v4761
        %v4763 = vpop.f32.mrb[0].mxu0
        %4764 = vmatprep.mubr.f32.mxu0 0.0
        %v4765 = vand.u32 %v409, 4294901760
        %4766 = vmatmul.mubr.f32.gmra.mrb[0].mxu0 %v4765
        %v4767 = vpop.f32.mrb[0].mxu0
        %v4768 = vadd.f32 %v4608, %v4767
        %v4769 = vpop.f32.mrb[0].mxu0
        %4770 = vmatprep.mubr.f32.mxu0 0.0
        %v4771 = vand.u32 %v412, 4294901760
        %4772 = vmatmul.mubr.f32.gmra.mrb[0].mxu0 %v4771
        %v4773 = vpop.f32.mrb[0].mxu0
        %v4774 = vadd.f32 %v4614, %v4773
        %v4775 = vpop.f32.mrb[0].mxu0
        %4776 = vmatprep.mubr.f32.mxu0 0.0
        %v4777 = vand.u32 %v415, 4294901760
        %4778 = vmatmul.mubr.f32.gmra.mrb[0].mxu0 %v4777
        %v4779 = vpop.f32.mrb[0].mxu0
        %v4780 = vadd.f32 %v4620, %v4779
        %v4781 = vpop.f32.mrb[0].mxu0
        %4782 = vmatprep.mubr.f32.mxu0 0.0
        %v4783 = vand.u32 %v418, 4294901760
        %4784 = vmatmul.mubr.f32.gmra.mrb[0].mxu0 %v4783
        %v4785 = vpop.f32.mrb[0].mxu0
        %v4786 = vadd.f32 %v4626, %v4785
        %v4787 = vpop.f32.mrb[0].mxu0
        %4788 = vmatprep.mubr.f32.mxu0 0.0
        %v4789 = vand.u32 %v421, 4294901760
        %4790 = vmatmul.mubr.f32.gmra.mrb[0].mxu0 %v4789
        %v4791 = vpop.f32.mrb[0].mxu0
        %v4792 = vadd.f32 %v4632, %v4791
        %v4793 = vpop.f32.mrb[0].mxu0
        %4794 = vmatprep.mubr.f32.mxu0 0.0
        %v4795 = vand.u32 %v424, 4294901760
        %4796 = vmatmul.mubr.f32.gmra.mrb[0].mxu0 %v4795
        %v4797 = vpop.f32.mrb[0].mxu0
        %v4798 = vadd.f32 %v4638, %v4797
        %v4799 = vpop.f32.mrb[0].mxu0
        %4800 = vmatprep.mubr.f32.mxu0 0.0
        %v4801 = vand.u32 %v427, 4294901760
        %4802 = vmatmul.mubr.f32.gmra.mrb[0].mxu0 %v4801
        %v4803 = vpop.f32.mrb[0].mxu0
        %v4804 = vadd.f32 %v4644, %v4803
        %v4805 = vpop.f32.mrb[0].mxu0
        %4806 = vmatprep.mubr.f32.mxu0 0.0
        %v4807 = vand.u32 %v430, 4294901760
        %4808 = vmatmul.mubr.f32.gmra.mrb[0].mxu0 %v4807
        %v4809 = vpop.f32.mrb[0].mxu0
        %v4810 = vadd.f32 %v4650, %v4809
        %v4811 = vpop.f32.mrb[0].mxu0
        %4812 = vmatprep.mubr.f32.mxu0 0.0
        %v4813 = vand.u32 %v433, 4294901760
        %4814 = vmatmul.mubr.f32.gmra.mrb[0].mxu0 %v4813
        %v4815 = vpop.f32.mrb[0].mxu0
        %v4816 = vadd.f32 %v4656, %v4815
        %v4817 = vpop.f32.mrb[0].mxu0
        %4818 = vmatprep.mubr.f32.mxu0 0.0
        %v4819 = vand.u32 %v436, 4294901760
        %4820 = vmatmul.mubr.f32.gmra.mrb[0].mxu0 %v4819
        %v4821 = vpop.f32.mrb[0].mxu0
        %v4822 = vadd.f32 %v4662, %v4821
        %v4823 = vpop.f32.mrb[0].mxu0
        %4824 = vmatprep.mubr.f32.mxu0 0.0
        %v4825 = vand.u32 %v439, 4294901760
        %4826 = vmatmul.mubr.f32.gmra.mrb[0].mxu0 %v4825
        %v4827 = vpop.f32.mrb[0].mxu0
        %v4828 = vadd.f32 %v4668, %v4827
        %v4829 = vpop.f32.mrb[0].mxu0
        %4830 = vmatprep.mubr.f32.mxu0 0.0
        %v4831 = vand.u32 %v442, 4294901760
        %4832 = vmatmul.mubr.f32.gmra.mrb[0].mxu0 %v4831
        %v4833 = vpop.f32.mrb[0].mxu0
        %v4834 = vadd.f32 %v4674, %v4833
        %v4835 = vpop.f32.mrb[0].mxu0
        %4836 = vmatprep.mubr.f32.mxu0 0.0
        %v4837 = vand.u32 %v445, 4294901760
        %4838 = vmatmul.mubr.f32.gmra.mrb[0].mxu0 %v4837
        %v4839 = vpop.f32.mrb[0].mxu0
        %v4840 = vadd.f32 %v4680, %v4839
        %v4841 = vpop.f32.mrb[0].mxu0
        %4842 = vdwg.mxu0
        %vm4843 = vcmp.gt.f32.partialorder %v4756, 0.0
        %vm4844 = vcmp.gt.f32.partialorder %v4762, 0.0
        %vm4845 = vcmp.gt.f32.partialorder %v4768, 0.0
        %vm4846 = vcmp.gt.f32.partialorder %v4774, 0.0
        %vm4847 = vcmp.gt.f32.partialorder %v4780, 0.0
        %vm4848 = vcmp.gt.f32.partialorder %v4786, 0.0
        %vm4849 = vcmp.gt.f32.partialorder %v4792, 0.0
        %vm4850 = vcmp.gt.f32.partialorder %v4798, 0.0
        %vm4851 = vcmp.gt.f32.partialorder %v4804, 0.0
        %vm4852 = vcmp.gt.f32.partialorder %v4810, 0.0
        %vm4853 = vcmp.gt.f32.partialorder %v4816, 0.0
        %vm4854 = vcmp.gt.f32.partialorder %v4822, 0.0
        %vm4855 = vcmp.gt.f32.partialorder %v4828, 0.0
        %vm4856 = vcmp.gt.f32.partialorder %v4834, 0.0
        %vm4857 = vcmp.gt.f32.partialorder %v4840, 0.0
        %v4858 = vmul.f32 %v4756, 1.442695
        %v4859 = vpow.pop %v4858
        %v4860 = vmul.f32 %v4762, 1.442695
        %v4861 = vpow.pop %v4860
        %v4862 = vmul.f32 %v4768, 1.442695
        %v4863 = vpow.pop %v4862
        %v4864 = vmul.f32 %v4774, 1.442695
        %v4865 = vpow.pop %v4864
        %v4866 = vmul.f32 %v4780, 1.442695
        %v4867 = vpow.pop %v4866
        %v4868 = vmul.f32 %v4786, 1.442695
        %v4869 = vpow.pop %v4868
        %v4870 = vmul.f32 %v4792, 1.442695
        %v4871 = vpow.pop %v4870
        %v4872 = vmul.f32 %v4798, 1.442695
        %v4873 = vpow.pop %v4872
        %v4874 = vmul.f32 %v4804, 1.442695
        %v4875 = vpow.pop %v4874
        %v4876 = vmul.f32 %v4810, 1.442695
        %v4877 = vpow.pop %v4876
        %v4878 = vmul.f32 %v4816, 1.442695
        %v4879 = vpow.pop %v4878
        %v4880 = vmul.f32 %v4822, 1.442695
        %v4881 = vpow.pop %v4880
        %v4882 = vmul.f32 %v4828, 1.442695
        %v4883 = vpow.pop %v4882
        %v4884 = vmul.f32 %v4834, 1.442695
        %v4885 = vpow.pop %v4884
        %v4886 = vmul.f32 %v4840, 1.442695
        %v4887 = vpow.pop %v4886
        %v4888 = vsub.f32 %v4859, 1.0
        %v4889 = vsub.f32 %v4861, 1.0
        %v4890 = vsub.f32 %v4863, 1.0
        %v4891 = vsub.f32 %v4865, 1.0
        %v4892 = vsub.f32 %v4867, 1.0
        %v4893 = vsub.f32 %v4869, 1.0
        %v4894 = vsub.f32 %v4871, 1.0
        %v4895 = vsub.f32 %v4873, 1.0
        %v4896 = vsub.f32 %v4875, 1.0
        %v4897 = vsub.f32 %v4877, 1.0
        %v4898 = vsub.f32 %v4879, 1.0
        %v4899 = vsub.f32 %v4881, 1.0
        %v4900 = vsub.f32 %v4883, 1.0
        %v4901 = vsub.f32 %v4885, 1.0
        %v4902 = vsub.f32 %v4887, 1.0
        %v4903 = vsel %vm4843, %v4756, %v4888
        %v4904 = vsel %vm4844, %v4762, %v4889
        %v4905 = vsel %vm4845, %v4768, %v4890
        %v4906 = vsel %vm4846, %v4774, %v4891
        %v4907 = vsel %vm4847, %v4780, %v4892
        %v4908 = vsel %vm4848, %v4786, %v4893
        %v4909 = vsel %vm4849, %v4792, %v4894
        %v4910 = vsel %vm4850, %v4798, %v4895
        %v4911 = vsel %vm4851, %v4804, %v4896
        %v4912 = vsel %vm4852, %v4810, %v4897
        %v4913 = vsel %vm4853, %v4816, %v4898
        %v4914 = vsel %vm4854, %v4822, %v4899
        %v4915 = vsel %vm4855, %v4828, %v4900
        %v4916 = vsel %vm4856, %v4834, %v4901
        %v4917 = vsel %vm4857, %v4840, %v4902
        %v4918 = vmul.f32 %v4903, %v4903
        %v4919 = vmul.f32 %v4904, %v4904
        %v4920 = vmul.f32 %v4905, %v4905
        %v4921 = vmul.f32 %v4906, %v4906
        %v4922 = vmul.f32 %v4907, %v4907
        %v4923 = vmul.f32 %v4908, %v4908
        %v4924 = vmul.f32 %v4909, %v4909
        %v4925 = vmul.f32 %v4910, %v4910
        %v4926 = vmul.f32 %v4911, %v4911
        %v4927 = vmul.f32 %v4912, %v4912
        %v4928 = vmul.f32 %v4913, %v4913
        %v4929 = vmul.f32 %v4914, %v4914
        %v4930 = vmul.f32 %v4915, %v4915
        %v4931 = vmul.f32 %v4916, %v4916
        %v4932 = vmul.f32 %v4917, %v4917
        %v4933 = vld [vmem:[%s3] sm:$0xff]
        %v4934 = vld [vmem:[%s3 + $0x8] sm:$0xff]
        %vm4935 = vcmask 916480
        %v4937 = vsel %vm4935, %v4934, 0
        %4939 = vmatprep.subr.mxu0 0.0
        %v4940 = vand.u32 %v4903, 4294901760
        %4941 = vmatpush1.msra.mxu0 %v4940
        %4942 = vmatprep.subr.mxu0 0.0
        %v4943 = vand.u32 %v4904, 4294901760
        %4944 = vmatpush1.msra.mxu0 %v4943
        %4945 = vmatprep.subr.mxu0 0.0
        %v4946 = vand.u32 %v4905, 4294901760
        %4947 = vmatpush1.msra.mxu0 %v4946
        %4948 = vmatprep.subr.mxu0 0.0
        %v4949 = vand.u32 %v4906, 4294901760
        %4950 = vmatpush1.msra.mxu0 %v4949
        %4951 = vmatprep.subr.mxu0 0.0
        %v4952 = vand.u32 %v4907, 4294901760
        %4953 = vmatpush1.msra.mxu0 %v4952
        %4954 = vmatprep.subr.mxu0 0.0
        %v4955 = vand.u32 %v4908, 4294901760
        %4956 = vmatpush1.msra.mxu0 %v4955
        %4957 = vmatprep.subr.mxu0 0.0
        %v4958 = vand.u32 %v4909, 4294901760
        %4959 = vmatpush1.msra.mxu0 %v4958
        %4960 = vmatprep.subr.mxu0 0.0
        %v4961 = vand.u32 %v4910, 4294901760
        %4962 = vmatpush1.msra.mxu0 %v4961
        %4963 = vmatprep.subr.mxu0 0.0
        %v4964 = vand.u32 %v4911, 4294901760
        %4965 = vmatpush1.msra.mxu0 %v4964
        %4966 = vmatprep.subr.mxu0 0.0
        %v4967 = vand.u32 %v4912, 4294901760
        %4968 = vmatpush1.msra.mxu0 %v4967
        %4969 = vmatprep.subr.mxu0 0.0
        %v4970 = vand.u32 %v4913, 4294901760
        %4971 = vmatpush1.msra.mxu0 %v4970
        %4972 = vmatprep.subr.mxu0 0.0
        %v4973 = vand.u32 %v4914, 4294901760
        %4974 = vmatpush1.msra.mxu0 %v4973
        %4975 = vmatprep.subr.mxu0 0.0
        %v4976 = vand.u32 %v4915, 4294901760
        %4977 = vmatpush1.msra.mxu0 %v4976
        %4978 = vmatprep.subr.mxu0 0.0
        %v4979 = vand.u32 %v4916, 4294901760
        %4980 = vmatpush1.msra.mxu0 %v4979
        %4981 = vmatprep.subr.mxu0 0.0
        %v4982 = vand.u32 %v4917, 4294901760
        %4983 = vmatpush1.msra.mxu0 %v4982
        %4984 = vmatprep.subr.mxu0 0.0
        %v4985 = vand.u32 %v4918, 4294901760
        %4986 = vmatpush1.msra.mxu0 %v4985
        %4987 = vmatprep.subr.mxu0 0.0
        %v4988 = vand.u32 %v4919, 4294901760
        %4989 = vmatpush1.msra.mxu0 %v4988
        %4990 = vmatprep.subr.mxu0 0.0
        %v4991 = vand.u32 %v4920, 4294901760
        %4992 = vmatpush1.msra.mxu0 %v4991
        %4993 = vmatprep.subr.mxu0 0.0
        %v4994 = vand.u32 %v4921, 4294901760
        %4995 = vmatpush1.msra.mxu0 %v4994
        %4996 = vmatprep.subr.mxu0 0.0
        %v4997 = vand.u32 %v4922, 4294901760
        %4998 = vmatpush1.msra.mxu0 %v4997
        %4999 = vmatprep.subr.mxu0 0.0
        %v5000 = vand.u32 %v4923, 4294901760
        %5001 = vmatpush1.msra.mxu0 %v5000
        %5002 = vmatprep.subr.mxu0 0.0
        %v5003 = vand.u32 %v4924, 4294901760
        %5004 = vmatpush1.msra.mxu0 %v5003
        %5005 = vmatprep.subr.mxu0 0.0
        %v5006 = vand.u32 %v4925, 4294901760
        %5007 = vmatpush1.msra.mxu0 %v5006
        %5008 = vmatprep.subr.mxu0 0.0
        %v5009 = vand.u32 %v4926, 4294901760
        %5010 = vmatpush1.msra.mxu0 %v5009
        %5011 = vmatprep.subr.mxu0 0.0
        %v5012 = vand.u32 %v4927, 4294901760
        %5013 = vmatpush1.msra.mxu0 %v5012
        %5014 = vmatprep.subr.mxu0 0.0
        %v5015 = vand.u32 %v4928, 4294901760
        %5016 = vmatpush1.msra.mxu0 %v5015
        %5017 = vmatprep.subr.mxu0 0.0
        %v5018 = vand.u32 %v4929, 4294901760
        %5019 = vmatpush1.msra.mxu0 %v5018
        %5020 = vmatprep.subr.mxu0 0.0
        %v5021 = vand.u32 %v4930, 4294901760
        %5022 = vmatpush1.msra.mxu0 %v5021
        %5023 = vmatprep.subr.mxu0 0.0
        %v5024 = vand.u32 %v4931, 4294901760
        %5025 = vmatpush1.msra.mxu0 %v5024
        %5026 = vmatprep.subr.mxu0 0.0
        %v5027 = vand.u32 %v4932, 4294901760
        %5028 = vmatpush1.msra.mxu0 %v5027
        %5029 = vmatprep.subr.mxu0 0.0
        %5030 = vmatpush1.msra.mxu0 0.0
        %5031 = vmatprep.subr.mxu0 0.0
        %5032 = vmatpush1.msra.mxu0 0.0
        %v5033 = vand.u32 %v4937, 4294901760
        %v5034 = vsub.f32 %v4937, %v5033
        %v5035 = vand.u32 %v5034, 4294901760
        %v5036 = vsub.f32 %v5034, %v5035
        %v5037 = vand.u32 %v5036, 4294901760
        %5038 = vmatprep.mubr.f32.mxu0 %v5037
        %v5039 = vand.u32 %v4933, 4294901760
        %v5040 = vsub.f32 %v4933, %v5039
        %v5041 = vand.u32 %v5040, 4294901760
        %v5042 = vsub.f32 %v5040, %v5041
        %v5043 = vand.u32 %v5042, 4294901760
        %5044 = vmatmul.mubr.f32.gmra.mrb[0].mxu0 %v5043
        %v5045 = vpop.f32.mrb[0].mxu0
        %v5046 = vadd.f32 0.0, %v5045
        %v5047 = vpop.f32.mrb[0].mxu0
        %5048 = vdwg.mxu0
        %5049 = vmatprep.subr.mxu0 0.0
        %v5050 = vand.u32 %v4903, 4294901760
        %v5051 = vsub.f32 %v4903, %v5050
        %v5052 = vand.u32 %v5051, 4294901760
        %v5053 = vsub.f32 %v5051, %v5052
        %v5054 = vand.u32 %v5053, 4294901760
        %5055 = vmatpush1.msra.mxu0 %v5054
        %5056 = vmatprep.subr.mxu0 0.0
        %v5057 = vand.u32 %v4904, 4294901760
        %v5058 = vsub.f32 %v4904, %v5057
        %v5059 = vand.u32 %v5058, 4294901760
        %v5060 = vsub.f32 %v5058, %v5059
        %v5061 = vand.u32 %v5060, 4294901760
        %5062 = vmatpush1.msra.mxu0 %v5061
        %5063 = vmatprep.subr.mxu0 0.0
        %v5064 = vand.u32 %v4905, 4294901760
        %v5065 = vsub.f32 %v4905, %v5064
        %v5066 = vand.u32 %v5065, 4294901760
        %v5067 = vsub.f32 %v5065, %v5066
        %v5068 = vand.u32 %v5067, 4294901760
        %5069 = vmatpush1.msra.mxu0 %v5068
        %5070 = vmatprep.subr.mxu0 0.0
        %v5071 = vand.u32 %v4906, 4294901760
        %v5072 = vsub.f32 %v4906, %v5071
        %v5073 = vand.u32 %v5072, 4294901760
        %v5074 = vsub.f32 %v5072, %v5073
        %v5075 = vand.u32 %v5074, 4294901760
        %5076 = vmatpush1.msra.mxu0 %v5075
        %5077 = vmatprep.subr.mxu0 0.0
        %v5078 = vand.u32 %v4907, 4294901760
        %v5079 = vsub.f32 %v4907, %v5078
        %v5080 = vand.u32 %v5079, 4294901760
        %v5081 = vsub.f32 %v5079, %v5080
        %v5082 = vand.u32 %v5081, 4294901760
        %5083 = vmatpush1.msra.mxu0 %v5082
        %5084 = vmatprep.subr.mxu0 0.0
        %v5085 = vand.u32 %v4908, 4294901760
        %v5086 = vsub.f32 %v4908, %v5085
        %v5087 = vand.u32 %v5086, 4294901760
        %v5088 = vsub.f32 %v5086, %v5087
        %v5089 = vand.u32 %v5088, 4294901760
        %5090 = vmatpush1.msra.mxu0 %v5089
        %5091 = vmatprep.subr.mxu0 0.0
        %v5092 = vand.u32 %v4909, 4294901760
        %v5093 = vsub.f32 %v4909, %v5092
        %v5094 = vand.u32 %v5093, 4294901760
        %v5095 = vsub.f32 %v5093, %v5094
        %v5096 = vand.u32 %v5095, 4294901760
        %5097 = vmatpush1.msra.mxu0 %v5096
        %5098 = vmatprep.subr.mxu0 0.0
        %v5099 = vand.u32 %v4910, 4294901760
        %v5100 = vsub.f32 %v4910, %v5099
        %v5101 = vand.u32 %v5100, 4294901760
        %v5102 = vsub.f32 %v5100, %v5101
        %v5103 = vand.u32 %v5102, 4294901760
        %5104 = vmatpush1.msra.mxu0 %v5103
        %5105 = vmatprep.subr.mxu0 0.0
        %v5106 = vand.u32 %v4911, 4294901760
        %v5107 = vsub.f32 %v4911, %v5106
        %v5108 = vand.u32 %v5107, 4294901760
        %v5109 = vsub.f32 %v5107, %v5108
        %v5110 = vand.u32 %v5109, 4294901760
        %5111 = vmatpush1.msra.mxu0 %v5110
        %5112 = vmatprep.subr.mxu0 0.0
        %v5113 = vand.u32 %v4912, 4294901760
        %v5114 = vsub.f32 %v4912, %v5113
        %v5115 = vand.u32 %v5114, 4294901760
        %v5116 = vsub.f32 %v5114, %v5115
        %v5117 = vand.u32 %v5116, 4294901760
        %5118 = vmatpush1.msra.mxu0 %v5117
        %5119 = vmatprep.subr.mxu0 0.0
        %v5120 = vand.u32 %v4913, 4294901760
        %v5121 = vsub.f32 %v4913, %v5120
        %v5122 = vand.u32 %v5121, 4294901760
        %v5123 = vsub.f32 %v5121, %v5122
        %v5124 = vand.u32 %v5123, 4294901760
        %5125 = vmatpush1.msra.mxu0 %v5124
        %5126 = vmatprep.subr.mxu0 0.0
        %v5127 = vand.u32 %v4914, 4294901760
        %v5128 = vsub.f32 %v4914, %v5127
        %v5129 = vand.u32 %v5128, 4294901760
        %v5130 = vsub.f32 %v5128, %v5129
        %v5131 = vand.u32 %v5130, 4294901760
        %5132 = vmatpush1.msra.mxu0 %v5131
        %5133 = vmatprep.subr.mxu0 0.0
        %v5134 = vand.u32 %v4915, 4294901760
        %v5135 = vsub.f32 %v4915, %v5134
        %v5136 = vand.u32 %v5135, 4294901760
        %v5137 = vsub.f32 %v5135, %v5136
        %v5138 = vand.u32 %v5137, 4294901760
        %5139 = vmatpush1.msra.mxu0 %v5138
        %5140 = vmatprep.subr.mxu0 0.0
        %v5141 = vand.u32 %v4916, 4294901760
        %v5142 = vsub.f32 %v4916, %v5141
        %v5143 = vand.u32 %v5142, 4294901760
        %v5144 = vsub.f32 %v5142, %v5143
        %v5145 = vand.u32 %v5144, 4294901760
        %5146 = vmatpush1.msra.mxu0 %v5145
        %5147 = vmatprep.subr.mxu0 0.0
        %v5148 = vand.u32 %v4917, 4294901760
        %v5149 = vsub.f32 %v4917, %v5148
        %v5150 = vand.u32 %v5149, 4294901760
        %v5151 = vsub.f32 %v5149, %v5150
        %v5152 = vand.u32 %v5151, 4294901760
        %5153 = vmatpush1.msra.mxu0 %v5152
        %5154 = vmatprep.subr.mxu0 0.0
        %v5155 = vand.u32 %v4918, 4294901760
        %v5156 = vsub.f32 %v4918, %v5155
        %v5157 = vand.u32 %v5156, 4294901760
        %v5158 = vsub.f32 %v5156, %v5157
        %v5159 = vand.u32 %v5158, 4294901760
        %5160 = vmatpush1.msra.mxu0 %v5159
        %5161 = vmatprep.subr.mxu0 0.0
        %v5162 = vand.u32 %v4919, 4294901760
        %v5163 = vsub.f32 %v4919, %v5162
        %v5164 = vand.u32 %v5163, 4294901760
        %v5165 = vsub.f32 %v5163, %v5164
        %v5166 = vand.u32 %v5165, 4294901760
        %5167 = vmatpush1.msra.mxu0 %v5166
        %5168 = vmatprep.subr.mxu0 0.0
        %v5169 = vand.u32 %v4920, 4294901760
        %v5170 = vsub.f32 %v4920, %v5169
        %v5171 = vand.u32 %v5170, 4294901760
        %v5172 = vsub.f32 %v5170, %v5171
        %v5173 = vand.u32 %v5172, 4294901760
        %5174 = vmatpush1.msra.mxu0 %v5173
        %5175 = vmatprep.subr.mxu0 0.0
        %v5176 = vand.u32 %v4921, 4294901760
        %v5177 = vsub.f32 %v4921, %v5176
        %v5178 = vand.u32 %v5177, 4294901760
        %v5179 = vsub.f32 %v5177, %v5178
        %v5180 = vand.u32 %v5179, 4294901760
        %5181 = vmatpush1.msra.mxu0 %v5180
        %5182 = vmatprep.subr.mxu0 0.0
        %v5183 = vand.u32 %v4922, 4294901760
        %v5184 = vsub.f32 %v4922, %v5183
        %v5185 = vand.u32 %v5184, 4294901760
        %v5186 = vsub.f32 %v5184, %v5185
        %v5187 = vand.u32 %v5186, 4294901760
        %5188 = vmatpush1.msra.mxu0 %v5187
        %5189 = vmatprep.subr.mxu0 0.0
        %v5190 = vand.u32 %v4923, 4294901760
        %v5191 = vsub.f32 %v4923, %v5190
        %v5192 = vand.u32 %v5191, 4294901760
        %v5193 = vsub.f32 %v5191, %v5192
        %v5194 = vand.u32 %v5193, 4294901760
        %5195 = vmatpush1.msra.mxu0 %v5194
        %5196 = vmatprep.subr.mxu0 0.0
        %v5197 = vand.u32 %v4924, 4294901760
        %v5198 = vsub.f32 %v4924, %v5197
        %v5199 = vand.u32 %v5198, 4294901760
        %v5200 = vsub.f32 %v5198, %v5199
        %v5201 = vand.u32 %v5200, 4294901760
        %5202 = vmatpush1.msra.mxu0 %v5201
        %5203 = vmatprep.subr.mxu0 0.0
        %v5204 = vand.u32 %v4925, 4294901760
        %v5205 = vsub.f32 %v4925, %v5204
        %v5206 = vand.u32 %v5205, 4294901760
        %v5207 = vsub.f32 %v5205, %v5206
        %v5208 = vand.u32 %v5207, 4294901760
        %5209 = vmatpush1.msra.mxu0 %v5208
        %5210 = vmatprep.subr.mxu0 0.0
        %v5211 = vand.u32 %v4926, 4294901760
        %v5212 = vsub.f32 %v4926, %v5211
        %v5213 = vand.u32 %v5212, 4294901760
        %v5214 = vsub.f32 %v5212, %v5213
        %v5215 = vand.u32 %v5214, 4294901760
        %5216 = vmatpush1.msra.mxu0 %v5215
        %5217 = vmatprep.subr.mxu0 0.0
        %v5218 = vand.u32 %v4927, 4294901760
        %v5219 = vsub.f32 %v4927, %v5218
        %v5220 = vand.u32 %v5219, 4294901760
        %v5221 = vsub.f32 %v5219, %v5220
        %v5222 = vand.u32 %v5221, 4294901760
        %5223 = vmatpush1.msra.mxu0 %v5222
        %5224 = vmatprep.subr.mxu0 0.0
        %v5225 = vand.u32 %v4928, 4294901760
        %v5226 = vsub.f32 %v4928, %v5225
        %v5227 = vand.u32 %v5226, 4294901760
        %v5228 = vsub.f32 %v5226, %v5227
        %v5229 = vand.u32 %v5228, 4294901760
        %5230 = vmatpush1.msra.mxu0 %v5229
        %5231 = vmatprep.subr.mxu0 0.0
        %v5232 = vand.u32 %v4929, 4294901760
        %v5233 = vsub.f32 %v4929, %v5232
        %v5234 = vand.u32 %v5233, 4294901760
        %v5235 = vsub.f32 %v5233, %v5234
        %v5236 = vand.u32 %v5235, 4294901760
        %5237 = vmatpush1.msra.mxu0 %v5236
        %5238 = vmatprep.subr.mxu0 0.0
        %v5239 = vand.u32 %v4930, 4294901760
        %v5240 = vsub.f32 %v4930, %v5239
        %v5241 = vand.u32 %v5240, 4294901760
        %v5242 = vsub.f32 %v5240, %v5241
        %v5243 = vand.u32 %v5242, 4294901760
        %5244 = vmatpush1.msra.mxu0 %v5243
        %5245 = vmatprep.subr.mxu0 0.0
        %v5246 = vand.u32 %v4931, 4294901760
        %v5247 = vsub.f32 %v4931, %v5246
        %v5248 = vand.u32 %v5247, 4294901760
        %v5249 = vsub.f32 %v5247, %v5248
        %v5250 = vand.u32 %v5249, 4294901760
        %5251 = vmatpush1.msra.mxu0 %v5250
        %5252 = vmatprep.subr.mxu0 0.0
        %v5253 = vand.u32 %v4932, 4294901760
        %v5254 = vsub.f32 %v4932, %v5253
        %v5255 = vand.u32 %v5254, 4294901760
        %v5256 = vsub.f32 %v5254, %v5255
        %v5257 = vand.u32 %v5256, 4294901760
        %5258 = vmatpush1.msra.mxu0 %v5257
        %5259 = vmatprep.subr.mxu0 0.0
        %5260 = vmatpush1.msra.mxu0 0.0
        %5261 = vmatprep.subr.mxu0 0.0
        %5262 = vmatpush1.msra.mxu0 0.0
        %v5263 = vand.u32 %v4937, 4294901760
        %5264 = vmatprep.mubr.f32.mxu0 %v5263
        %v5265 = vand.u32 %v4933, 4294901760
        %5266 = vmatmul.mubr.f32.gmra.mrb[0].mxu0 %v5265
        %v5267 = vpop.f32.mrb[0].mxu0
        %v5268 = vadd.f32 %v5046, %v5267
        %v5269 = vpop.f32.mrb[0].mxu0
        %5270 = vdwg.mxu0
        %5271 = vmatprep.subr.mxu0 0.0
        %v5272 = vand.u32 %v4903, 4294901760
        %v5273 = vsub.f32 %v4903, %v5272
        %5274 = vmatpush1.msra.mxu0 %v5273
        %5275 = vmatprep.subr.mxu0 0.0
        %v5276 = vand.u32 %v4904, 4294901760
        %v5277 = vsub.f32 %v4904, %v5276
        %5278 = vmatpush1.msra.mxu0 %v5277
        %5279 = vmatprep.subr.mxu0 0.0
        %v5280 = vand.u32 %v4905, 4294901760
        %v5281 = vsub.f32 %v4905, %v5280
        %5282 = vmatpush1.msra.mxu0 %v5281
        %5283 = vmatprep.subr.mxu0 0.0
        %v5284 = vand.u32 %v4906, 4294901760
        %v5285 = vsub.f32 %v4906, %v5284
        %5286 = vmatpush1.msra.mxu0 %v5285
        %5287 = vmatprep.subr.mxu0 0.0
        %v5288 = vand.u32 %v4907, 4294901760
        %v5289 = vsub.f32 %v4907, %v5288
        %5290 = vmatpush1.msra.mxu0 %v5289
        %5291 = vmatprep.subr.mxu0 0.0
        %v5292 = vand.u32 %v4908, 4294901760
        %v5293 = vsub.f32 %v4908, %v5292
        %5294 = vmatpush1.msra.mxu0 %v5293
        %5295 = vmatprep.subr.mxu0 0.0
        %v5296 = vand.u32 %v4909, 4294901760
        %v5297 = vsub.f32 %v4909, %v5296
        %5298 = vmatpush1.msra.mxu0 %v5297
        %5299 = vmatprep.subr.mxu0 0.0
        %v5300 = vand.u32 %v4910, 4294901760
        %v5301 = vsub.f32 %v4910, %v5300
        %5302 = vmatpush1.msra.mxu0 %v5301
        %5303 = vmatprep.subr.mxu0 0.0
        %v5304 = vand.u32 %v4911, 4294901760
        %v5305 = vsub.f32 %v4911, %v5304
        %5306 = vmatpush1.msra.mxu0 %v5305
        %5307 = vmatprep.subr.mxu0 0.0
        %v5308 = vand.u32 %v4912, 4294901760
        %v5309 = vsub.f32 %v4912, %v5308
        %5310 = vmatpush1.msra.mxu0 %v5309
        %5311 = vmatprep.subr.mxu0 0.0
        %v5312 = vand.u32 %v4913, 4294901760
        %v5313 = vsub.f32 %v4913, %v5312
        %5314 = vmatpush1.msra.mxu0 %v5313
        %5315 = vmatprep.subr.mxu0 0.0
        %v5316 = vand.u32 %v4914, 4294901760
        %v5317 = vsub.f32 %v4914, %v5316
        %5318 = vmatpush1.msra.mxu0 %v5317
        %5319 = vmatprep.subr.mxu0 0.0
        %v5320 = vand.u32 %v4915, 4294901760
        %v5321 = vsub.f32 %v4915, %v5320
        %5322 = vmatpush1.msra.mxu0 %v5321
        %5323 = vmatprep.subr.mxu0 0.0
        %v5324 = vand.u32 %v4916, 4294901760
        %v5325 = vsub.f32 %v4916, %v5324
        %5326 = vmatpush1.msra.mxu0 %v5325
        %5327 = vmatprep.subr.mxu0 0.0
        %v5328 = vand.u32 %v4917, 4294901760
        %v5329 = vsub.f32 %v4917, %v5328
        %5330 = vmatpush1.msra.mxu0 %v5329
        %5331 = vmatprep.subr.mxu0 0.0
        %v5332 = vand.u32 %v4918, 4294901760
        %v5333 = vsub.f32 %v4918, %v5332
        %5334 = vmatpush1.msra.mxu0 %v5333
        %5335 = vmatprep.subr.mxu0 0.0
        %v5336 = vand.u32 %v4919, 4294901760
        %v5337 = vsub.f32 %v4919, %v5336
        %5338 = vmatpush1.msra.mxu0 %v5337
        %5339 = vmatprep.subr.mxu0 0.0
        %v5340 = vand.u32 %v4920, 4294901760
        %v5341 = vsub.f32 %v4920, %v5340
        %5342 = vmatpush1.msra.mxu0 %v5341
        %5343 = vmatprep.subr.mxu0 0.0
        %v5344 = vand.u32 %v4921, 4294901760
        %v5345 = vsub.f32 %v4921, %v5344
        %5346 = vmatpush1.msra.mxu0 %v5345
        %5347 = vmatprep.subr.mxu0 0.0
        %v5348 = vand.u32 %v4922, 4294901760
        %v5349 = vsub.f32 %v4922, %v5348
        %5350 = vmatpush1.msra.mxu0 %v5349
        %5351 = vmatprep.subr.mxu0 0.0
        %v5352 = vand.u32 %v4923, 4294901760
        %v5353 = vsub.f32 %v4923, %v5352
        %5354 = vmatpush1.msra.mxu0 %v5353
        %5355 = vmatprep.subr.mxu0 0.0
        %v5356 = vand.u32 %v4924, 4294901760
        %v5357 = vsub.f32 %v4924, %v5356
        %5358 = vmatpush1.msra.mxu0 %v5357
        %5359 = vmatprep.subr.mxu0 0.0
        %v5360 = vand.u32 %v4925, 4294901760
        %v5361 = vsub.f32 %v4925, %v5360
        %5362 = vmatpush1.msra.mxu0 %v5361
        %5363 = vmatprep.subr.mxu0 0.0
        %v5364 = vand.u32 %v4926, 4294901760
        %v5365 = vsub.f32 %v4926, %v5364
        %5366 = vmatpush1.msra.mxu0 %v5365
        %5367 = vmatprep.subr.mxu0 0.0
        %v5368 = vand.u32 %v4927, 4294901760
        %v5369 = vsub.f32 %v4927, %v5368
        %5370 = vmatpush1.msra.mxu0 %v5369
        %5371 = vmatprep.subr.mxu0 0.0
        %v5372 = vand.u32 %v4928, 4294901760
        %v5373 = vsub.f32 %v4928, %v5372
        %5374 = vmatpush1.msra.mxu0 %v5373
        %5375 = vmatprep.subr.mxu0 0.0
        %v5376 = vand.u32 %v4929, 4294901760
        %v5377 = vsub.f32 %v4929, %v5376
        %5378 = vmatpush1.msra.mxu0 %v5377
        %5379 = vmatprep.subr.mxu0 0.0
        %v5380 = vand.u32 %v4930, 4294901760
        %v5381 = vsub.f32 %v4930, %v5380
        %5382 = vmatpush1.msra.mxu0 %v5381
        %5383 = vmatprep.subr.mxu0 0.0
        %v5384 = vand.u32 %v4931, 4294901760
        %v5385 = vsub.f32 %v4931, %v5384
        %5386 = vmatpush1.msra.mxu0 %v5385
        %5387 = vmatprep.subr.mxu0 0.0
        %v5388 = vand.u32 %v4932, 4294901760
        %v5389 = vsub.f32 %v4932, %v5388
        %5390 = vmatpush1.msra.mxu0 %v5389
        %5391 = vmatprep.subr.mxu0 0.0
        %5392 = vmatpush1.msra.mxu0 0.0
        %5393 = vmatprep.subr.mxu0 0.0
        %5394 = vmatpush1.msra.mxu0 0.0
        %v5395 = vand.u32 %v4937, 4294901760
        %v5396 = vsub.f32 %v4937, %v5395
        %5397 = vmatprep.mubr.f32.mxu0 %v5396
        %v5398 = vand.u32 %v4933, 4294901760
        %v5399 = vsub.f32 %v4933, %v5398
        %5400 = vmatmul.mubr.f32.gmra.mrb[0].mxu0 %v5399
        %v5401 = vpop.f32.mrb[0].mxu0
        %v5402 = vadd.f32 %v5268, %v5401
        %v5403 = vpop.f32.mrb[0].mxu0
        %5404 = vdwg.mxu0
        %5405 = vmatprep.subr.mxu0 0.0
        %v5406 = vand.u32 %v4903, 4294901760
        %5407 = vmatpush1.msra.mxu0 %v5406
        %5408 = vmatprep.subr.mxu0 0.0
        %v5409 = vand.u32 %v4904, 4294901760
        %5410 = vmatpush1.msra.mxu0 %v5409
        %5411 = vmatprep.subr.mxu0 0.0
        %v5412 = vand.u32 %v4905, 4294901760
        %5413 = vmatpush1.msra.mxu0 %v5412
        %5414 = vmatprep.subr.mxu0 0.0
        %v5415 = vand.u32 %v4906, 4294901760
        %5416 = vmatpush1.msra.mxu0 %v5415
        %5417 = vmatprep.subr.mxu0 0.0
        %v5418 = vand.u32 %v4907, 4294901760
        %5419 = vmatpush1.msra.mxu0 %v5418
        %5420 = vmatprep.subr.mxu0 0.0
        %v5421 = vand.u32 %v4908, 4294901760
        %5422 = vmatpush1.msra.mxu0 %v5421
        %5423 = vmatprep.subr.mxu0 0.0
        %v5424 = vand.u32 %v4909, 4294901760
        %5425 = vmatpush1.msra.mxu0 %v5424
        %5426 = vmatprep.subr.mxu0 0.0
        %v5427 = vand.u32 %v4910, 4294901760
        %5428 = vmatpush1.msra.mxu0 %v5427
        %5429 = vmatprep.subr.mxu0 0.0
        %v5430 = vand.u32 %v4911, 4294901760
        %5431 = vmatpush1.msra.mxu0 %v5430
        %5432 = vmatprep.subr.mxu0 0.0
        %v5433 = vand.u32 %v4912, 4294901760
        %5434 = vmatpush1.msra.mxu0 %v5433
        %5435 = vmatprep.subr.mxu0 0.0
        %v5436 = vand.u32 %v4913, 4294901760
        %5437 = vmatpush1.msra.mxu0 %v5436
        %5438 = vmatprep.subr.mxu0 0.0
        %v5439 = vand.u32 %v4914, 4294901760
        %5440 = vmatpush1.msra.mxu0 %v5439
        %5441 = vmatprep.subr.mxu0 0.0
        %v5442 = vand.u32 %v4915, 4294901760
        %5443 = vmatpush1.msra.mxu0 %v5442
        %5444 = vmatprep.subr.mxu0 0.0
        %v5445 = vand.u32 %v4916, 4294901760
        %5446 = vmatpush1.msra.mxu0 %v5445
        %5447 = vmatprep.subr.mxu0 0.0
        %v5448 = vand.u32 %v4917, 4294901760
        %5449 = vmatpush1.msra.mxu0 %v5448
        %5450 = vmatprep.subr.mxu0 0.0
        %v5451 = vand.u32 %v4918, 4294901760
        %5452 = vmatpush1.msra.mxu0 %v5451
        %5453 = vmatprep.subr.mxu0 0.0
        %v5454 = vand.u32 %v4919, 4294901760
        %5455 = vmatpush1.msra.mxu0 %v5454
        %5456 = vmatprep.subr.mxu0 0.0
        %v5457 = vand.u32 %v4920, 4294901760
        %5458 = vmatpush1.msra.mxu0 %v5457
        %5459 = vmatprep.subr.mxu0 0.0
        %v5460 = vand.u32 %v4921, 4294901760
        %5461 = vmatpush1.msra.mxu0 %v5460
        %5462 = vmatprep.subr.mxu0 0.0
        %v5463 = vand.u32 %v4922, 4294901760
        %5464 = vmatpush1.msra.mxu0 %v5463
        %5465 = vmatprep.subr.mxu0 0.0
        %v5466 = vand.u32 %v4923, 4294901760
        %5467 = vmatpush1.msra.mxu0 %v5466
        %5468 = vmatprep.subr.mxu0 0.0
        %v5469 = vand.u32 %v4924, 4294901760
        %5470 = vmatpush1.msra.mxu0 %v5469
        %5471 = vmatprep.subr.mxu0 0.0
        %v5472 = vand.u32 %v4925, 4294901760
        %5473 = vmatpush1.msra.mxu0 %v5472
        %5474 = vmatprep.subr.mxu0 0.0
        %v5475 = vand.u32 %v4926, 4294901760
        %5476 = vmatpush1.msra.mxu0 %v5475
        %5477 = vmatprep.subr.mxu0 0.0
        %v5478 = vand.u32 %v4927, 4294901760
        %5479 = vmatpush1.msra.mxu0 %v5478
        %5480 = vmatprep.subr.mxu0 0.0
        %v5481 = vand.u32 %v4928, 4294901760
        %5482 = vmatpush1.msra.mxu0 %v5481
        %5483 = vmatprep.subr.mxu0 0.0
        %v5484 = vand.u32 %v4929, 4294901760
        %5485 = vmatpush1.msra.mxu0 %v5484
        %5486 = vmatprep.subr.mxu0 0.0
        %v5487 = vand.u32 %v4930, 4294901760
        %5488 = vmatpush1.msra.mxu0 %v5487
        %5489 = vmatprep.subr.mxu0 0.0
        %v5490 = vand.u32 %v4931, 4294901760
        %5491 = vmatpush1.msra.mxu0 %v5490
        %5492 = vmatprep.subr.mxu0 0.0
        %v5493 = vand.u32 %v4932, 4294901760
        %5494 = vmatpush1.msra.mxu0 %v5493
        %5495 = vmatprep.subr.mxu0 0.0
        %5496 = vmatpush1.msra.mxu0 0.0
        %5497 = vmatprep.subr.mxu0 0.0
        %5498 = vmatpush1.msra.mxu0 0.0
        %v5499 = vand.u32 %v4937, 4294901760
        %v5500 = vsub.f32 %v4937, %v5499
        %v5501 = vand.u32 %v5500, 4294901760
        %5502 = vmatprep.mubr.f32.mxu0 %v5501
        %v5503 = vand.u32 %v4933, 4294901760
        %v5504 = vsub.f32 %v4933, %v5503
        %v5505 = vand.u32 %v5504, 4294901760
        %5506 = vmatmul.mubr.f32.gmra.mrb[0].mxu0 %v5505
        %v5507 = vpop.f32.mrb[0].mxu0
        %v5508 = vadd.f32 %v5402, %v5507
        %v5509 = vpop.f32.mrb[0].mxu0
        %5510 = vdwg.mxu0
        %5511 = vmatprep.subr.mxu0 0.0
        %v5512 = vand.u32 %v4903, 4294901760
        %v5513 = vsub.f32 %v4903, %v5512
        %v5514 = vand.u32 %v5513, 4294901760
        %5515 = vmatpush1.msra.mxu0 %v5514
        %5516 = vmatprep.subr.mxu0 0.0
        %v5517 = vand.u32 %v4904, 4294901760
        %v5518 = vsub.f32 %v4904, %v5517
        %v5519 = vand.u32 %v5518, 4294901760
        %5520 = vmatpush1.msra.mxu0 %v5519
        %5521 = vmatprep.subr.mxu0 0.0
        %v5522 = vand.u32 %v4905, 4294901760
        %v5523 = vsub.f32 %v4905, %v5522
        %v5524 = vand.u32 %v5523, 4294901760
        %5525 = vmatpush1.msra.mxu0 %v5524
        %5526 = vmatprep.subr.mxu0 0.0
        %v5527 = vand.u32 %v4906, 4294901760
        %v5528 = vsub.f32 %v4906, %v5527
        %v5529 = vand.u32 %v5528, 4294901760
        %5530 = vmatpush1.msra.mxu0 %v5529
        %5531 = vmatprep.subr.mxu0 0.0
        %v5532 = vand.u32 %v4907, 4294901760
        %v5533 = vsub.f32 %v4907, %v5532
        %v5534 = vand.u32 %v5533, 4294901760
        %5535 = vmatpush1.msra.mxu0 %v5534
        %5536 = vmatprep.subr.mxu0 0.0
        %v5537 = vand.u32 %v4908, 4294901760
        %v5538 = vsub.f32 %v4908, %v5537
        %v5539 = vand.u32 %v5538, 4294901760
        %5540 = vmatpush1.msra.mxu0 %v5539
        %5541 = vmatprep.subr.mxu0 0.0
        %v5542 = vand.u32 %v4909, 4294901760
        %v5543 = vsub.f32 %v4909, %v5542
        %v5544 = vand.u32 %v5543, 4294901760
        %5545 = vmatpush1.msra.mxu0 %v5544
        %5546 = vmatprep.subr.mxu0 0.0
        %v5547 = vand.u32 %v4910, 4294901760
        %v5548 = vsub.f32 %v4910, %v5547
        %v5549 = vand.u32 %v5548, 4294901760
        %5550 = vmatpush1.msra.mxu0 %v5549
        %5551 = vmatprep.subr.mxu0 0.0
        %v5552 = vand.u32 %v4911, 4294901760
        %v5553 = vsub.f32 %v4911, %v5552
        %v5554 = vand.u32 %v5553, 4294901760
        %5555 = vmatpush1.msra.mxu0 %v5554
        %5556 = vmatprep.subr.mxu0 0.0
        %v5557 = vand.u32 %v4912, 4294901760
        %v5558 = vsub.f32 %v4912, %v5557
        %v5559 = vand.u32 %v5558, 4294901760
        %5560 = vmatpush1.msra.mxu0 %v5559
        %5561 = vmatprep.subr.mxu0 0.0
        %v5562 = vand.u32 %v4913, 4294901760
        %v5563 = vsub.f32 %v4913, %v5562
        %v5564 = vand.u32 %v5563, 4294901760
        %5565 = vmatpush1.msra.mxu0 %v5564
        %5566 = vmatprep.subr.mxu0 0.0
        %v5567 = vand.u32 %v4914, 4294901760
        %v5568 = vsub.f32 %v4914, %v5567
        %v5569 = vand.u32 %v5568, 4294901760
        %5570 = vmatpush1.msra.mxu0 %v5569
        %5571 = vmatprep.subr.mxu0 0.0
        %v5572 = vand.u32 %v4915, 4294901760
        %v5573 = vsub.f32 %v4915, %v5572
        %v5574 = vand.u32 %v5573, 4294901760
        %5575 = vmatpush1.msra.mxu0 %v5574
        %5576 = vmatprep.subr.mxu0 0.0
        %v5577 = vand.u32 %v4916, 4294901760
        %v5578 = vsub.f32 %v4916, %v5577
        %v5579 = vand.u32 %v5578, 4294901760
        %5580 = vmatpush1.msra.mxu0 %v5579
        %5581 = vmatprep.subr.mxu0 0.0
        %v5582 = vand.u32 %v4917, 4294901760
        %v5583 = vsub.f32 %v4917, %v5582
        %v5584 = vand.u32 %v5583, 4294901760
        %5585 = vmatpush1.msra.mxu0 %v5584
        %5586 = vmatprep.subr.mxu0 0.0
        %v5587 = vand.u32 %v4918, 4294901760
        %v5588 = vsub.f32 %v4918, %v5587
        %v5589 = vand.u32 %v5588, 4294901760
        %5590 = vmatpush1.msra.mxu0 %v5589
        %5591 = vmatprep.subr.mxu0 0.0
        %v5592 = vand.u32 %v4919, 4294901760
        %v5593 = vsub.f32 %v4919, %v5592
        %v5594 = vand.u32 %v5593, 4294901760
        %5595 = vmatpush1.msra.mxu0 %v5594
        %5596 = vmatprep.subr.mxu0 0.0
        %v5597 = vand.u32 %v4920, 4294901760
        %v5598 = vsub.f32 %v4920, %v5597
        %v5599 = vand.u32 %v5598, 4294901760
        %5600 = vmatpush1.msra.mxu0 %v5599
        %5601 = vmatprep.subr.mxu0 0.0
        %v5602 = vand.u32 %v4921, 4294901760
        %v5603 = vsub.f32 %v4921, %v5602
        %v5604 = vand.u32 %v5603, 4294901760
        %5605 = vmatpush1.msra.mxu0 %v5604
        %5606 = vmatprep.subr.mxu0 0.0
        %v5607 = vand.u32 %v4922, 4294901760
        %v5608 = vsub.f32 %v4922, %v5607
        %v5609 = vand.u32 %v5608, 4294901760
        %5610 = vmatpush1.msra.mxu0 %v5609
        %5611 = vmatprep.subr.mxu0 0.0
        %v5612 = vand.u32 %v4923, 4294901760
        %v5613 = vsub.f32 %v4923, %v5612
        %v5614 = vand.u32 %v5613, 4294901760
        %5615 = vmatpush1.msra.mxu0 %v5614
        %5616 = vmatprep.subr.mxu0 0.0
        %v5617 = vand.u32 %v4924, 4294901760
        %v5618 = vsub.f32 %v4924, %v5617
        %v5619 = vand.u32 %v5618, 4294901760
        %5620 = vmatpush1.msra.mxu0 %v5619
        %5621 = vmatprep.subr.mxu0 0.0
        %v5622 = vand.u32 %v4925, 4294901760
        %v5623 = vsub.f32 %v4925, %v5622
        %v5624 = vand.u32 %v5623, 4294901760
        %5625 = vmatpush1.msra.mxu0 %v5624
        %5626 = vmatprep.subr.mxu0 0.0
        %v5627 = vand.u32 %v4926, 4294901760
        %v5628 = vsub.f32 %v4926, %v5627
        %v5629 = vand.u32 %v5628, 4294901760
        %5630 = vmatpush1.msra.mxu0 %v5629
        %5631 = vmatprep.subr.mxu0 0.0
        %v5632 = vand.u32 %v4927, 4294901760
        %v5633 = vsub.f32 %v4927, %v5632
        %v5634 = vand.u32 %v5633, 4294901760
        %5635 = vmatpush1.msra.mxu0 %v5634
        %5636 = vmatprep.subr.mxu0 0.0
        %v5637 = vand.u32 %v4928, 4294901760
        %v5638 = vsub.f32 %v4928, %v5637
        %v5639 = vand.u32 %v5638, 4294901760
        %5640 = vmatpush1.msra.mxu0 %v5639
        %5641 = vmatprep.subr.mxu0 0.0
        %v5642 = vand.u32 %v4929, 4294901760
        %v5643 = vsub.f32 %v4929, %v5642
        %v5644 = vand.u32 %v5643, 4294901760
        %5645 = vmatpush1.msra.mxu0 %v5644
        %5646 = vmatprep.subr.mxu0 0.0
        %v5647 = vand.u32 %v4930, 4294901760
        %v5648 = vsub.f32 %v4930, %v5647
        %v5649 = vand.u32 %v5648, 4294901760
        %5650 = vmatpush1.msra.mxu0 %v5649
        %5651 = vmatprep.subr.mxu0 0.0
        %v5652 = vand.u32 %v4931, 4294901760
        %v5653 = vsub.f32 %v4931, %v5652
        %v5654 = vand.u32 %v5653, 4294901760
        %5655 = vmatpush1.msra.mxu0 %v5654
        %5656 = vmatprep.subr.mxu0 0.0
        %v5657 = vand.u32 %v4932, 4294901760
        %v5658 = vsub.f32 %v4932, %v5657
        %v5659 = vand.u32 %v5658, 4294901760
        %5660 = vmatpush1.msra.mxu0 %v5659
        %5661 = vmatprep.subr.mxu0 0.0
        %5662 = vmatpush1.msra.mxu0 0.0
        %5663 = vmatprep.subr.mxu0 0.0
        %5664 = vmatpush1.msra.mxu0 0.0
        %v5665 = vand.u32 %v4937, 4294901760
        %5666 = vmatprep.mubr.f32.mxu0 %v5665
        %v5667 = vand.u32 %v4933, 4294901760
        %5668 = vmatmul.mubr.f32.gmra.mrb[0].mxu0 %v5667
        %v5669 = vpop.f32.mrb[0].mxu0
        %v5670 = vadd.f32 %v5508, %v5669
        %v5671 = vpop.f32.mrb[0].mxu0
        %5672 = vdwg.mxu0
        %5673 = vmatprep.subr.mxu0 0.0
        %v5674 = vand.u32 %v4903, 4294901760
        %5675 = vmatpush1.msra.mxu0 %v5674
        %5676 = vmatprep.subr.mxu0 0.0
        %v5677 = vand.u32 %v4904, 4294901760
        %5678 = vmatpush1.msra.mxu0 %v5677
        %5679 = vmatprep.subr.mxu0 0.0
        %v5680 = vand.u32 %v4905, 4294901760
        %5681 = vmatpush1.msra.mxu0 %v5680
        %5682 = vmatprep.subr.mxu0 0.0
        %v5683 = vand.u32 %v4906, 4294901760
        %5684 = vmatpush1.msra.mxu0 %v5683
        %5685 = vmatprep.subr.mxu0 0.0
        %v5686 = vand.u32 %v4907, 4294901760
        %5687 = vmatpush1.msra.mxu0 %v5686
        %5688 = vmatprep.subr.mxu0 0.0
        %v5689 = vand.u32 %v4908, 4294901760
        %5690 = vmatpush1.msra.mxu0 %v5689
        %5691 = vmatprep.subr.mxu0 0.0
        %v5692 = vand.u32 %v4909, 4294901760
        %5693 = vmatpush1.msra.mxu0 %v5692
        %5694 = vmatprep.subr.mxu0 0.0
        %v5695 = vand.u32 %v4910, 4294901760
        %5696 = vmatpush1.msra.mxu0 %v5695
        %5697 = vmatprep.subr.mxu0 0.0
        %v5698 = vand.u32 %v4911, 4294901760
        %5699 = vmatpush1.msra.mxu0 %v5698
        %5700 = vmatprep.subr.mxu0 0.0
        %v5701 = vand.u32 %v4912, 4294901760
        %5702 = vmatpush1.msra.mxu0 %v5701
        %5703 = vmatprep.subr.mxu0 0.0
        %v5704 = vand.u32 %v4913, 4294901760
        %5705 = vmatpush1.msra.mxu0 %v5704
        %5706 = vmatprep.subr.mxu0 0.0
        %v5707 = vand.u32 %v4914, 4294901760
        %5708 = vmatpush1.msra.mxu0 %v5707
        %5709 = vmatprep.subr.mxu0 0.0
        %v5710 = vand.u32 %v4915, 4294901760
        %5711 = vmatpush1.msra.mxu0 %v5710
        %5712 = vmatprep.subr.mxu0 0.0
        %v5713 = vand.u32 %v4916, 4294901760
        %5714 = vmatpush1.msra.mxu0 %v5713
        %5715 = vmatprep.subr.mxu0 0.0
        %v5716 = vand.u32 %v4917, 4294901760
        %5717 = vmatpush1.msra.mxu0 %v5716
        %5718 = vmatprep.subr.mxu0 0.0
        %v5719 = vand.u32 %v4918, 4294901760
        %5720 = vmatpush1.msra.mxu0 %v5719
        %5721 = vmatprep.subr.mxu0 0.0
        %v5722 = vand.u32 %v4919, 4294901760
        %5723 = vmatpush1.msra.mxu0 %v5722
        %5724 = vmatprep.subr.mxu0 0.0
        %v5725 = vand.u32 %v4920, 4294901760
        %5726 = vmatpush1.msra.mxu0 %v5725
        %5727 = vmatprep.subr.mxu0 0.0
        %v5728 = vand.u32 %v4921, 4294901760
        %5729 = vmatpush1.msra.mxu0 %v5728
        %5730 = vmatprep.subr.mxu0 0.0
        %v5731 = vand.u32 %v4922, 4294901760
        %5732 = vmatpush1.msra.mxu0 %v5731
        %5733 = vmatprep.subr.mxu0 0.0
        %v5734 = vand.u32 %v4923, 4294901760
        %5735 = vmatpush1.msra.mxu0 %v5734
        %5736 = vmatprep.subr.mxu0 0.0
        %v5737 = vand.u32 %v4924, 4294901760
        %5738 = vmatpush1.msra.mxu0 %v5737
        %5739 = vmatprep.subr.mxu0 0.0
        %v5740 = vand.u32 %v4925, 4294901760
        %5741 = vmatpush1.msra.mxu0 %v5740
        %5742 = vmatprep.subr.mxu0 0.0
        %v5743 = vand.u32 %v4926, 4294901760
        %5744 = vmatpush1.msra.mxu0 %v5743
        %5745 = vmatprep.subr.mxu0 0.0
        %v5746 = vand.u32 %v4927, 4294901760
        %5747 = vmatpush1.msra.mxu0 %v5746
        %5748 = vmatprep.subr.mxu0 0.0
        %v5749 = vand.u32 %v4928, 4294901760
        %5750 = vmatpush1.msra.mxu0 %v5749
        %5751 = vmatprep.subr.mxu0 0.0
        %v5752 = vand.u32 %v4929, 4294901760
        %5753 = vmatpush1.msra.mxu0 %v5752
        %5754 = vmatprep.subr.mxu0 0.0
        %v5755 = vand.u32 %v4930, 4294901760
        %5756 = vmatpush1.msra.mxu0 %v5755
        %5757 = vmatprep.subr.mxu0 0.0
        %v5758 = vand.u32 %v4931, 4294901760
        %5759 = vmatpush1.msra.mxu0 %v5758
        %5760 = vmatprep.subr.mxu0 0.0
        %v5761 = vand.u32 %v4932, 4294901760
        %5762 = vmatpush1.msra.mxu0 %v5761
        %5763 = vmatprep.subr.mxu0 0.0
        %5764 = vmatpush1.msra.mxu0 0.0
        %5765 = vmatprep.subr.mxu0 0.0
        %5766 = vmatpush1.msra.mxu0 0.0
        %v5767 = vand.u32 %v4937, 4294901760
        %5768 = vmatprep.mubr.f32.mxu0 %v5767
        %v5769 = vand.u32 %v4933, 4294901760
        %5770 = vmatmul.mubr.f32.gmra.mrb[0].mxu0 %v5769
        %v5771 = vpop.f32.mrb[0].mxu0
        %v5772 = vadd.f32 %v5670, %v5771
        %v5773 = vpop.f32.mrb[0].mxu0
        %5774 = vdwg.mxu0
        %v5775 = vmul.f32 %v5772, %v5772
        %v5777 = vrot.slane %v5775, 4
        %v5779 = vsub.f32 %v5772, %v5777
        %v5780 = vld [vmem:[%s4] sm:$0xff]
        %v5781 = vld [vmem:[%s4 + $0x8] sm:$0xff]
        %v5782 = vld [vmem:[%s4 + $0x10] sm:$0xff]
        %v5783 = vld [vmem:[%s4 + $0x18] sm:$0xff]
        %v5784 = vld [vmem:[%s4 + $0x20] sm:$0xff]
        %v5785 = vld [vmem:[%s5] sm:$0x1]
        %v5787 = vlaneseq
        %v5788 = vshrl.u32 %v5787, 7
        %v5789 = vsub.s32 0, %v5788
        %v5790 = vrot.slane %v5785, %v5789
        %v5793 = vrot.slane %v5779, 4
        %vm5794 = vcmask 326656
        %v5795 = vsel %vm5794, %v5793, 0
        %5797 = vmatprep.subr.mxu0 0.0
        %v5798 = vand.u32 %v5780, 4294901760
        %5799 = vmatpush1.msra.mxu0 %v5798
        %5800 = vmatprep.subr.mxu0 0.0
        %v5801 = vand.u32 %v5781, 4294901760
        %5802 = vmatpush1.msra.mxu0 %v5801
        %5803 = vmatprep.subr.mxu0 0.0
        %v5804 = vand.u32 %v5782, 4294901760
        %5805 = vmatpush1.msra.mxu0 %v5804
        %5806 = vmatprep.subr.mxu0 0.0
        %v5807 = vand.u32 %v5783, 4294901760
        %5808 = vmatpush1.msra.mxu0 %v5807
        %5809 = vmatprep.subr.mxu0 0.0
        %v5810 = vand.u32 %v5784, 4294901760
        %5811 = vmatpush1.msra.mxu0 %v5810
        %5812 = vmatprep.subr.mxu0 0.0
        %5813 = vmatpush1.msra.mxu0 0.0
        %5814 = vmatprep.subr.mxu0 0.0
        %5815 = vmatpush1.msra.mxu0 0.0
        %5816 = vmatprep.subr.mxu0 0.0
        %5817 = vmatpush1.msra.mxu0 0.0
        %5818 = vmatprep.subr.mxu0 0.0
        %5819 = vmatpush1.msra.mxu0 0.0
        %5820 = vmatprep.subr.mxu0 0.0
        %5821 = vmatpush1.msra.mxu0 0.0
        %5822 = vmatprep.subr.mxu0 0.0
        %5823 = vmatpush1.msra.mxu0 0.0
        %5824 = vmatprep.subr.mxu0 0.0
        %5825 = vmatpush1.msra.mxu0 0.0
        %5826 = vmatprep.subr.mxu0 0.0
        %5827 = vmatpush1.msra.mxu0 0.0
        %5828 = vmatprep.subr.mxu0 0.0
        %5829 = vmatpush1.msra.mxu0 0.0
        %5830 = vmatprep.subr.mxu0 0.0
        %5831 = vmatpush1.msra.mxu0 0.0
        %5832 = vmatprep.subr.mxu0 0.0
        %5833 = vmatpush1.msra.mxu0 0.0
        %5834 = vmatprep.subr.mxu0 0.0
        %5835 = vmatpush1.msra.mxu0 0.0
        %5836 = vmatprep.subr.mxu0 0.0
        %5837 = vmatpush1.msra.mxu0 0.0
        %5838 = vmatprep.subr.mxu0 0.0
        %5839 = vmatpush1.msra.mxu0 0.0
        %5840 = vmatprep.subr.mxu0 0.0
        %5841 = vmatpush1.msra.mxu0 0.0
        %5842 = vmatprep.subr.mxu0 0.0
        %5843 = vmatpush1.msra.mxu0 0.0
        %5844 = vmatprep.subr.mxu0 0.0
        %5845 = vmatpush1.msra.mxu0 0.0
        %5846 = vmatprep.subr.mxu0 0.0
        %5847 = vmatpush1.msra.mxu0 0.0
        %5848 = vmatprep.subr.mxu0 0.0
        %5849 = vmatpush1.msra.mxu0 0.0
        %5850 = vmatprep.subr.mxu0 0.0
        %5851 = vmatpush1.msra.mxu0 0.0
        %5852 = vmatprep.subr.mxu0 0.0
        %5853 = vmatpush1.msra.mxu0 0.0
        %5854 = vmatprep.subr.mxu0 0.0
        %5855 = vmatpush1.msra.mxu0 0.0
        %5856 = vmatprep.subr.mxu0 0.0
        %5857 = vmatpush1.msra.mxu0 0.0
        %5858 = vmatprep.subr.mxu0 0.0
        %5859 = vmatpush1.msra.mxu0 0.0
        %5860 = vmatprep.subr.mxu0 0.0
        %5861 = vmatpush1.msra.mxu0 0.0
        %5862 = vmatprep.subr.mxu0 0.0
        %5863 = vmatpush1.msra.mxu0 0.0
        %5864 = vmatprep.subr.mxu0 0.0
        %5865 = vmatpush1.msra.mxu0 0.0
        %5866 = vmatprep.mubr.f32.mxu0 0.0
        %v5867 = vand.u32 %v5795, 4294901760
        %v5868 = vsub.f32 %v5795, %v5867
        %v5869 = vand.u32 %v5868, 4294901760
        %v5870 = vsub.f32 %v5868, %v5869
        %v5871 = vand.u32 %v5870, 4294901760
        %5872 = vmatmul.mubr.f32.gmra.mrb[0].mxu0 %v5871
        %v5873 = vpop.f32.mrb[0].mxu0
        %v5874 = vadd.f32 %v5790, %v5873
        %v5875 = vpop.f32.mrb[0].mxu0
        %5876 = vdwg.mxu0
        %5877 = vmatprep.subr.mxu0 0.0
        %v5878 = vand.u32 %v5780, 4294901760
        %v5879 = vsub.f32 %v5780, %v5878
        %v5880 = vand.u32 %v5879, 4294901760
        %v5881 = vsub.f32 %v5879, %v5880
        %v5882 = vand.u32 %v5881, 4294901760
        %5883 = vmatpush1.msra.mxu0 %v5882
        %5884 = vmatprep.subr.mxu0 0.0
        %v5885 = vand.u32 %v5781, 4294901760
        %v5886 = vsub.f32 %v5781, %v5885
        %v5887 = vand.u32 %v5886, 4294901760
        %v5888 = vsub.f32 %v5886, %v5887
        %v5889 = vand.u32 %v5888, 4294901760
        %5890 = vmatpush1.msra.mxu0 %v5889
        %5891 = vmatprep.subr.mxu0 0.0
        %v5892 = vand.u32 %v5782, 4294901760
        %v5893 = vsub.f32 %v5782, %v5892
        %v5894 = vand.u32 %v5893, 4294901760
        %v5895 = vsub.f32 %v5893, %v5894
        %v5896 = vand.u32 %v5895, 4294901760
        %5897 = vmatpush1.msra.mxu0 %v5896
        %5898 = vmatprep.subr.mxu0 0.0
        %v5899 = vand.u32 %v5783, 4294901760
        %v5900 = vsub.f32 %v5783, %v5899
        %v5901 = vand.u32 %v5900, 4294901760
        %v5902 = vsub.f32 %v5900, %v5901
        %v5903 = vand.u32 %v5902, 4294901760
        %5904 = vmatpush1.msra.mxu0 %v5903
        %5905 = vmatprep.subr.mxu0 0.0
        %v5906 = vand.u32 %v5784, 4294901760
        %v5907 = vsub.f32 %v5784, %v5906
        %v5908 = vand.u32 %v5907, 4294901760
        %v5909 = vsub.f32 %v5907, %v5908
        %v5910 = vand.u32 %v5909, 4294901760
        %5911 = vmatpush1.msra.mxu0 %v5910
        %5912 = vmatprep.subr.mxu0 0.0
        %5913 = vmatpush1.msra.mxu0 0.0
        %5914 = vmatprep.subr.mxu0 0.0
        %5915 = vmatpush1.msra.mxu0 0.0
        %5916 = vmatprep.subr.mxu0 0.0
        %5917 = vmatpush1.msra.mxu0 0.0
        %5918 = vmatprep.subr.mxu0 0.0
        %5919 = vmatpush1.msra.mxu0 0.0
        %5920 = vmatprep.subr.mxu0 0.0
        %5921 = vmatpush1.msra.mxu0 0.0
        %5922 = vmatprep.subr.mxu0 0.0
        %5923 = vmatpush1.msra.mxu0 0.0
        %5924 = vmatprep.subr.mxu0 0.0
        %5925 = vmatpush1.msra.mxu0 0.0
        %5926 = vmatprep.subr.mxu0 0.0
        %5927 = vmatpush1.msra.mxu0 0.0
        %5928 = vmatprep.subr.mxu0 0.0
        %5929 = vmatpush1.msra.mxu0 0.0
        %5930 = vmatprep.subr.mxu0 0.0
        %5931 = vmatpush1.msra.mxu0 0.0
        %5932 = vmatprep.subr.mxu0 0.0
        %5933 = vmatpush1.msra.mxu0 0.0
        %5934 = vmatprep.subr.mxu0 0.0
        %5935 = vmatpush1.msra.mxu0 0.0
        %5936 = vmatprep.subr.mxu0 0.0
        %5937 = vmatpush1.msra.mxu0 0.0
        %5938 = vmatprep.subr.mxu0 0.0
        %5939 = vmatpush1.msra.mxu0 0.0
        %5940 = vmatprep.subr.mxu0 0.0
        %5941 = vmatpush1.msra.mxu0 0.0
        %5942 = vmatprep.subr.mxu0 0.0
        %5943 = vmatpush1.msra.mxu0 0.0
        %5944 = vmatprep.subr.mxu0 0.0
        %5945 = vmatpush1.msra.mxu0 0.0
        %5946 = vmatprep.subr.mxu0 0.0
        %5947 = vmatpush1.msra.mxu0 0.0
        %5948 = vmatprep.subr.mxu0 0.0
        %5949 = vmatpush1.msra.mxu0 0.0
        %5950 = vmatprep.subr.mxu0 0.0
        %5951 = vmatpush1.msra.mxu0 0.0
        %5952 = vmatprep.subr.mxu0 0.0
        %5953 = vmatpush1.msra.mxu0 0.0
        %5954 = vmatprep.subr.mxu0 0.0
        %5955 = vmatpush1.msra.mxu0 0.0
        %5956 = vmatprep.subr.mxu0 0.0
        %5957 = vmatpush1.msra.mxu0 0.0
        %5958 = vmatprep.subr.mxu0 0.0
        %5959 = vmatpush1.msra.mxu0 0.0
        %5960 = vmatprep.subr.mxu0 0.0
        %5961 = vmatpush1.msra.mxu0 0.0
        %5962 = vmatprep.subr.mxu0 0.0
        %5963 = vmatpush1.msra.mxu0 0.0
        %5964 = vmatprep.subr.mxu0 0.0
        %5965 = vmatpush1.msra.mxu0 0.0
        %5966 = vmatprep.mubr.f32.mxu0 0.0
        %v5967 = vand.u32 %v5795, 4294901760
        %5968 = vmatmul.mubr.f32.gmra.mrb[0].mxu0 %v5967
        %v5969 = vpop.f32.mrb[0].mxu0
        %v5970 = vadd.f32 %v5874, %v5969
        %v5971 = vpop.f32.mrb[0].mxu0
        %5972 = vdwg.mxu0
        %5973 = vmatprep.subr.mxu0 0.0
        %v5974 = vand.u32 %v5780, 4294901760
        %v5975 = vsub.f32 %v5780, %v5974
        %5976 = vmatpush1.msra.mxu0 %v5975
        %5977 = vmatprep.subr.mxu0 0.0
        %v5978 = vand.u32 %v5781, 4294901760
        %v5979 = vsub.f32 %v5781, %v5978
        %5980 = vmatpush1.msra.mxu0 %v5979
        %5981 = vmatprep.subr.mxu0 0.0
        %v5982 = vand.u32 %v5782, 4294901760
        %v5983 = vsub.f32 %v5782, %v5982
        %5984 = vmatpush1.msra.mxu0 %v5983
        %5985 = vmatprep.subr.mxu0 0.0
        %v5986 = vand.u32 %v5783, 4294901760
        %v5987 = vsub.f32 %v5783, %v5986
        %5988 = vmatpush1.msra.mxu0 %v5987
        %5989 = vmatprep.subr.mxu0 0.0
        %v5990 = vand.u32 %v5784, 4294901760
        %v5991 = vsub.f32 %v5784, %v5990
        %5992 = vmatpush1.msra.mxu0 %v5991
        %5993 = vmatprep.subr.mxu0 0.0
        %5994 = vmatpush1.msra.mxu0 0.0
        %5995 = vmatprep.subr.mxu0 0.0
        %5996 = vmatpush1.msra.mxu0 0.0
        %5997 = vmatprep.subr.mxu0 0.0
        %5998 = vmatpush1.msra.mxu0 0.0
        %5999 = vmatprep.subr.mxu0 0.0
        %6000 = vmatpush1.msra.mxu0 0.0
        %6001 = vmatprep.subr.mxu0 0.0
        %6002 = vmatpush1.msra.mxu0 0.0
        %6003 = vmatprep.subr.mxu0 0.0
        %6004 = vmatpush1.msra.mxu0 0.0
        %6005 = vmatprep.subr.mxu0 0.0
        %6006 = vmatpush1.msra.mxu0 0.0
        %6007 = vmatprep.subr.mxu0 0.0
        %6008 = vmatpush1.msra.mxu0 0.0
        %6009 = vmatprep.subr.mxu0 0.0
        %6010 = vmatpush1.msra.mxu0 0.0
        %6011 = vmatprep.subr.mxu0 0.0
        %6012 = vmatpush1.msra.mxu0 0.0
        %6013 = vmatprep.subr.mxu0 0.0
        %6014 = vmatpush1.msra.mxu0 0.0
        %6015 = vmatprep.subr.mxu0 0.0
        %6016 = vmatpush1.msra.mxu0 0.0
        %6017 = vmatprep.subr.mxu0 0.0
        %6018 = vmatpush1.msra.mxu0 0.0
        %6019 = vmatprep.subr.mxu0 0.0
        %6020 = vmatpush1.msra.mxu0 0.0
        %6021 = vmatprep.subr.mxu0 0.0
        %6022 = vmatpush1.msra.mxu0 0.0
        %6023 = vmatprep.subr.mxu0 0.0
        %6024 = vmatpush1.msra.mxu0 0.0
        %6025 = vmatprep.subr.mxu0 0.0
        %6026 = vmatpush1.msra.mxu0 0.0
        %6027 = vmatprep.subr.mxu0 0.0
        %6028 = vmatpush1.msra.mxu0 0.0
        %6029 = vmatprep.subr.mxu0 0.0
        %6030 = vmatpush1.msra.mxu0 0.0
        %6031 = vmatprep.subr.mxu0 0.0
        %6032 = vmatpush1.msra.mxu0 0.0
        %6033 = vmatprep.subr.mxu0 0.0
        %6034 = vmatpush1.msra.mxu0 0.0
        %6035 = vmatprep.subr.mxu0 0.0
        %6036 = vmatpush1.msra.mxu0 0.0
        %6037 = vmatprep.subr.mxu0 0.0
        %6038 = vmatpush1.msra.mxu0 0.0
        %6039 = vmatprep.subr.mxu0 0.0
        %6040 = vmatpush1.msra.mxu0 0.0
        %6041 = vmatprep.subr.mxu0 0.0
        %6042 = vmatpush1.msra.mxu0 0.0
        %6043 = vmatprep.subr.mxu0 0.0
        %6044 = vmatpush1.msra.mxu0 0.0
        %6045 = vmatprep.subr.mxu0 0.0
        %6046 = vmatpush1.msra.mxu0 0.0
        %6047 = vmatprep.mubr.f32.mxu0 0.0
        %v6048 = vand.u32 %v5795, 4294901760
        %v6049 = vsub.f32 %v5795, %v6048
        %6050 = vmatmul.mubr.f32.gmra.mrb[0].mxu0 %v6049
        %v6051 = vpop.f32.mrb[0].mxu0
        %v6052 = vadd.f32 %v5970, %v6051
        %v6053 = vpop.f32.mrb[0].mxu0
        %6054 = vdwg.mxu0
        %6055 = vmatprep.subr.mxu0 0.0
        %v6056 = vand.u32 %v5780, 4294901760
        %6057 = vmatpush1.msra.mxu0 %v6056
        %6058 = vmatprep.subr.mxu0 0.0
        %v6059 = vand.u32 %v5781, 4294901760
        %6060 = vmatpush1.msra.mxu0 %v6059
        %6061 = vmatprep.subr.mxu0 0.0
        %v6062 = vand.u32 %v5782, 4294901760
        %6063 = vmatpush1.msra.mxu0 %v6062
        %6064 = vmatprep.subr.mxu0 0.0
        %v6065 = vand.u32 %v5783, 4294901760
        %6066 = vmatpush1.msra.mxu0 %v6065
        %6067 = vmatprep.subr.mxu0 0.0
        %v6068 = vand.u32 %v5784, 4294901760
        %6069 = vmatpush1.msra.mxu0 %v6068
        %6070 = vmatprep.subr.mxu0 0.0
        %6071 = vmatpush1.msra.mxu0 0.0
        %6072 = vmatprep.subr.mxu0 0.0
        %6073 = vmatpush1.msra.mxu0 0.0
        %6074 = vmatprep.subr.mxu0 0.0
        %6075 = vmatpush1.msra.mxu0 0.0
        %6076 = vmatprep.subr.mxu0 0.0
        %6077 = vmatpush1.msra.mxu0 0.0
        %6078 = vmatprep.subr.mxu0 0.0
        %6079 = vmatpush1.msra.mxu0 0.0
        %6080 = vmatprep.subr.mxu0 0.0
        %6081 = vmatpush1.msra.mxu0 0.0
        %6082 = vmatprep.subr.mxu0 0.0
        %6083 = vmatpush1.msra.mxu0 0.0
        %6084 = vmatprep.subr.mxu0 0.0
        %6085 = vmatpush1.msra.mxu0 0.0
        %6086 = vmatprep.subr.mxu0 0.0
        %6087 = vmatpush1.msra.mxu0 0.0
        %6088 = vmatprep.subr.mxu0 0.0
        %6089 = vmatpush1.msra.mxu0 0.0
        %6090 = vmatprep.subr.mxu0 0.0
        %6091 = vmatpush1.msra.mxu0 0.0
        %6092 = vmatprep.subr.mxu0 0.0
        %6093 = vmatpush1.msra.mxu0 0.0
        %6094 = vmatprep.subr.mxu0 0.0
        %6095 = vmatpush1.msra.mxu0 0.0
        %6096 = vmatprep.subr.mxu0 0.0
        %6097 = vmatpush1.msra.mxu0 0.0
        %6098 = vmatprep.subr.mxu0 0.0
        %6099 = vmatpush1.msra.mxu0 0.0
        %6100 = vmatprep.subr.mxu0 0.0
        %6101 = vmatpush1.msra.mxu0 0.0
        %6102 = vmatprep.subr.mxu0 0.0
        %6103 = vmatpush1.msra.mxu0 0.0
        %6104 = vmatprep.subr.mxu0 0.0
        %6105 = vmatpush1.msra.mxu0 0.0
        %6106 = vmatprep.subr.mxu0 0.0
        %6107 = vmatpush1.msra.mxu0 0.0
        %6108 = vmatprep.subr.mxu0 0.0
        %6109 = vmatpush1.msra.mxu0 0.0
        %6110 = vmatprep.subr.mxu0 0.0
        %6111 = vmatpush1.msra.mxu0 0.0
        %6112 = vmatprep.subr.mxu0 0.0
        %6113 = vmatpush1.msra.mxu0 0.0
        %6114 = vmatprep.subr.mxu0 0.0
        %6115 = vmatpush1.msra.mxu0 0.0
        %6116 = vmatprep.subr.mxu0 0.0
        %6117 = vmatpush1.msra.mxu0 0.0
        %6118 = vmatprep.subr.mxu0 0.0
        %6119 = vmatpush1.msra.mxu0 0.0
        %6120 = vmatprep.subr.mxu0 0.0
        %6121 = vmatpush1.msra.mxu0 0.0
        %6122 = vmatprep.subr.mxu0 0.0
        %6123 = vmatpush1.msra.mxu0 0.0
        %6124 = vmatprep.mubr.f32.mxu0 0.0
        %v6125 = vand.u32 %v5795, 4294901760
        %v6126 = vsub.f32 %v5795, %v6125
        %v6127 = vand.u32 %v6126, 4294901760
        %6128 = vmatmul.mubr.f32.gmra.mrb[0].mxu0 %v6127
        %v6129 = vpop.f32.mrb[0].mxu0
        %v6130 = vadd.f32 %v6052, %v6129
        %v6131 = vpop.f32.mrb[0].mxu0
        %6132 = vdwg.mxu0
        %6133 = vmatprep.subr.mxu0 0.0
        %v6134 = vand.u32 %v5780, 4294901760
        %v6135 = vsub.f32 %v5780, %v6134
        %v6136 = vand.u32 %v6135, 4294901760
        %6137 = vmatpush1.msra.mxu0 %v6136
        %6138 = vmatprep.subr.mxu0 0.0
        %v6139 = vand.u32 %v5781, 4294901760
        %v6140 = vsub.f32 %v5781, %v6139
        %v6141 = vand.u32 %v6140, 4294901760
        %6142 = vmatpush1.msra.mxu0 %v6141
        %6143 = vmatprep.subr.mxu0 0.0
        %v6144 = vand.u32 %v5782, 4294901760
        %v6145 = vsub.f32 %v5782, %v6144
        %v6146 = vand.u32 %v6145, 4294901760
        %6147 = vmatpush1.msra.mxu0 %v6146
        %6148 = vmatprep.subr.mxu0 0.0
        %v6149 = vand.u32 %v5783, 4294901760
        %v6150 = vsub.f32 %v5783, %v6149
        %v6151 = vand.u32 %v6150, 4294901760
        %6152 = vmatpush1.msra.mxu0 %v6151
        %6153 = vmatprep.subr.mxu0 0.0
        %v6154 = vand.u32 %v5784, 4294901760
        %v6155 = vsub.f32 %v5784, %v6154
        %v6156 = vand.u32 %v6155, 4294901760
        %6157 = vmatpush1.msra.mxu0 %v6156
        %6158 = vmatprep.subr.mxu0 0.0
        %6159 = vmatpush1.msra.mxu0 0.0
        %6160 = vmatprep.subr.mxu0 0.0
        %6161 = vmatpush1.msra.mxu0 0.0
        %6162 = vmatprep.subr.mxu0 0.0
        %6163 = vmatpush1.msra.mxu0 0.0
        %6164 = vmatprep.subr.mxu0 0.0
        %6165 = vmatpush1.msra.mxu0 0.0
        %6166 = vmatprep.subr.mxu0 0.0
        %6167 = vmatpush1.msra.mxu0 0.0
        %6168 = vmatprep.subr.mxu0 0.0
        %6169 = vmatpush1.msra.mxu0 0.0
        %6170 = vmatprep.subr.mxu0 0.0
        %6171 = vmatpush1.msra.mxu0 0.0
        %6172 = vmatprep.subr.mxu0 0.0
        %6173 = vmatpush1.msra.mxu0 0.0
        %6174 = vmatprep.subr.mxu0 0.0
        %6175 = vmatpush1.msra.mxu0 0.0
        %6176 = vmatprep.subr.mxu0 0.0
        %6177 = vmatpush1.msra.mxu0 0.0
        %6178 = vmatprep.subr.mxu0 0.0
        %6179 = vmatpush1.msra.mxu0 0.0
        %6180 = vmatprep.subr.mxu0 0.0
        %6181 = vmatpush1.msra.mxu0 0.0
        %6182 = vmatprep.subr.mxu0 0.0
        %6183 = vmatpush1.msra.mxu0 0.0
        %6184 = vmatprep.subr.mxu0 0.0
        %6185 = vmatpush1.msra.mxu0 0.0
        %6186 = vmatprep.subr.mxu0 0.0
        %6187 = vmatpush1.msra.mxu0 0.0
        %6188 = vmatprep.subr.mxu0 0.0
        %6189 = vmatpush1.msra.mxu0 0.0
        %6190 = vmatprep.subr.mxu0 0.0
        %6191 = vmatpush1.msra.mxu0 0.0
        %6192 = vmatprep.subr.mxu0 0.0
        %6193 = vmatpush1.msra.mxu0 0.0
        %6194 = vmatprep.subr.mxu0 0.0
        %6195 = vmatpush1.msra.mxu0 0.0
        %6196 = vmatprep.subr.mxu0 0.0
        %6197 = vmatpush1.msra.mxu0 0.0
        %6198 = vmatprep.subr.mxu0 0.0
        %6199 = vmatpush1.msra.mxu0 0.0
        %6200 = vmatprep.subr.mxu0 0.0
        %6201 = vmatpush1.msra.mxu0 0.0
        %6202 = vmatprep.subr.mxu0 0.0
        %6203 = vmatpush1.msra.mxu0 0.0
        %6204 = vmatprep.subr.mxu0 0.0
        %6205 = vmatpush1.msra.mxu0 0.0
        %6206 = vmatprep.subr.mxu0 0.0
        %6207 = vmatpush1.msra.mxu0 0.0
        %6208 = vmatprep.subr.mxu0 0.0
        %6209 = vmatpush1.msra.mxu0 0.0
        %6210 = vmatprep.subr.mxu0 0.0
        %6211 = vmatpush1.msra.mxu0 0.0
        %6212 = vmatprep.mubr.f32.mxu0 0.0
        %v6213 = vand.u32 %v5795, 4294901760
        %6214 = vmatmul.mubr.f32.gmra.mrb[0].mxu0 %v6213
        %v6215 = vpop.f32.mrb[0].mxu0
        %v6216 = vadd.f32 %v6130, %v6215
        %v6217 = vpop.f32.mrb[0].mxu0
        %6218 = vdwg.mxu0
        %6219 = vmatprep.subr.mxu0 0.0
        %v6220 = vand.u32 %v5780, 4294901760
        %6221 = vmatpush1.msra.mxu0 %v6220
        %6222 = vmatprep.subr.mxu0 0.0
        %v6223 = vand.u32 %v5781, 4294901760
        %6224 = vmatpush1.msra.mxu0 %v6223
        %6225 = vmatprep.subr.mxu0 0.0
        %v6226 = vand.u32 %v5782, 4294901760
        %6227 = vmatpush1.msra.mxu0 %v6226
        %6228 = vmatprep.subr.mxu0 0.0
        %v6229 = vand.u32 %v5783, 4294901760
        %6230 = vmatpush1.msra.mxu0 %v6229
        %6231 = vmatprep.subr.mxu0 0.0
        %v6232 = vand.u32 %v5784, 4294901760
        %6233 = vmatpush1.msra.mxu0 %v6232
        %6234 = vmatprep.subr.mxu0 0.0
        %6235 = vmatpush1.msra.mxu0 0.0
        %6236 = vmatprep.subr.mxu0 0.0
        %6237 = vmatpush1.msra.mxu0 0.0
        %6238 = vmatprep.subr.mxu0 0.0
        %6239 = vmatpush1.msra.mxu0 0.0
        %6240 = vmatprep.subr.mxu0 0.0
        %6241 = vmatpush1.msra.mxu0 0.0
        %6242 = vmatprep.subr.mxu0 0.0
        %6243 = vmatpush1.msra.mxu0 0.0
        %6244 = vmatprep.subr.mxu0 0.0
        %6245 = vmatpush1.msra.mxu0 0.0
        %6246 = vmatprep.subr.mxu0 0.0
        %6247 = vmatpush1.msra.mxu0 0.0
        %6248 = vmatprep.subr.mxu0 0.0
        %6249 = vmatpush1.msra.mxu0 0.0
        %6250 = vmatprep.subr.mxu0 0.0
        %6251 = vmatpush1.msra.mxu0 0.0
        %6252 = vmatprep.subr.mxu0 0.0
        %6253 = vmatpush1.msra.mxu0 0.0
        %6254 = vmatprep.subr.mxu0 0.0
        %6255 = vmatpush1.msra.mxu0 0.0
        %6256 = vmatprep.subr.mxu0 0.0
        %6257 = vmatpush1.msra.mxu0 0.0
        %6258 = vmatprep.subr.mxu0 0.0
        %6259 = vmatpush1.msra.mxu0 0.0
        %6260 = vmatprep.subr.mxu0 0.0
        %6261 = vmatpush1.msra.mxu0 0.0
        %6262 = vmatprep.subr.mxu0 0.0
        %6263 = vmatpush1.msra.mxu0 0.0
        %6264 = vmatprep.subr.mxu0 0.0
        %6265 = vmatpush1.msra.mxu0 0.0
        %6266 = vmatprep.subr.mxu0 0.0
        %6267 = vmatpush1.msra.mxu0 0.0
        %6268 = vmatprep.subr.mxu0 0.0
        %6269 = vmatpush1.msra.mxu0 0.0
        %6270 = vmatprep.subr.mxu0 0.0
        %6271 = vmatpush1.msra.mxu0 0.0
        %6272 = vmatprep.subr.mxu0 0.0
        %6273 = vmatpush1.msra.mxu0 0.0
        %6274 = vmatprep.subr.mxu0 0.0
        %6275 = vmatpush1.msra.mxu0 0.0
        %6276 = vmatprep.subr.mxu0 0.0
        %6277 = vmatpush1.msra.mxu0 0.0
        %6278 = vmatprep.subr.mxu0 0.0
        %6279 = vmatpush1.msra.mxu0 0.0
        %6280 = vmatprep.subr.mxu0 0.0
        %6281 = vmatpush1.msra.mxu0 0.0
        %6282 = vmatprep.subr.mxu0 0.0
        %6283 = vmatpush1.msra.mxu0 0.0
        %6284 = vmatprep.subr.mxu0 0.0
        %6285 = vmatpush1.msra.mxu0 0.0
        %6286 = vmatprep.subr.mxu0 0.0
        %6287 = vmatpush1.msra.mxu0 0.0
        %6288 = vmatprep.mubr.f32.mxu0 0.0
        %v6289 = vand.u32 %v5795, 4294901760
        %6290 = vmatmul.mubr.f32.gmra.mrb[0].mxu0 %v6289
        %v6291 = vpop.f32.mrb[0].mxu0
        %v6292 = vadd.f32 %v6216, %v6291
        %v6293 = vpop.f32.mrb[0].mxu0
        %6294 = vdwg.mxu0
        %vm6295 = vcmask 322560
        %6296 = vst.msk [vmem:[%s244] sm:$0xf] %vm6295, %v6292
        %s6297 = sand.u32 %s159, 1
        %s6298 = scalar_lea.sflag [#allocation3], %s6297
        %s6299 = sand.u32 %s159, 1
        %s6300 = smul.addr %s6299, 4
        %s6301 = scalar_lea.vmem [#allocation2], %s6300
        // Predicated region
        $region45: #{tpu_custom_call.1} parent=43 // pred_check
          %p6302 = pneg %p169
        $region46: #{tpu_custom_call.1} parent=43 // pred_check_branch
          %6304 = sbr.rel (%p6302) target = $region48
        $region47: #{tpu_custom_call.1} parent=43 // pred_region
          %s6306 = ssub.s32 64, 64
          %6307 = vsyncadd %s6298, %s6306
          %s6308 = smul.addr %s20, 64
          %s6309 = scalar_lea.hbm %s6, %s6308
          %s6311 = sshll.u32 %s6301, 4
          %s6312 = int_to_ptr.vmem [resolvable:$true] %s6311
          %6314 = dma.vmem_to_hbm [thread:$0]  %s6312, 64, %s6309, %s6298
        $region48: #{tpu_custom_call.1} parent=43 // pred_fallthru
          _
      $region44: #{tpu_custom_call.1} parent=5 // pred_fallthru
        _
      %p6315 = scmp.le.s32.totalorder 2, %s15
      // Predicated region
      $region49: #{tpu_custom_call.1} parent=5 // pred_check
        %p6316 = pneg %p6315
      $region50: #{tpu_custom_call.1} parent=5 // pred_check_branch
        %6318 = sbr.rel (%p6316) target = $region52
      $region51: #{tpu_custom_call.1} parent=5 // pred_region
        %s6319 = ssub.s32 %s15, 2
        // Predicated region
        $region53: #{tpu_custom_call.1} parent=51 // pred_check
          %p6320 = pneg %p175
        $region54: #{tpu_custom_call.1} parent=51 // pred_check_branch
          %6322 = sbr.rel (%p6320) target = $region56
        $region55: #{tpu_custom_call.1} parent=51 // pred_region
          %s6323 = sand.u32 %s160, 1
          %s6324 = scalar_lea.sflag [#allocation3], %s6323
          %s6325 = sand.u32 %s160, 1
          %s6326 = smul.addr %s6325, 4
          %s6327 = scalar_lea.vmem [#allocation2], %s6326
          %6328 = dma.done %s6324, 64
        $region56: #{tpu_custom_call.1} parent=51 // pred_fallthru
          _
      $region52: #{tpu_custom_call.1} parent=5 // pred_fallthru
        _
    $region6: #{tpu_custom_call.1} parent=1 // loop_footer
      %s19 = sadd.s32 1, %s15
    $region7: #{tpu_custom_call.1} parent=1 // loop_footer_branch
      %14 = sbr.rel target = $region3
    $region8: #{tpu_custom_call.1} parent=1 // loop_exit
      _
    %6329 = vsyncpa [#allocation3], 1
    %s6330 = scalar_lea.sflag [#allocation3], 1
    %6331 = vsyncpa %s6330, 1

</llo_original>
